<compile_context>
chip_gen: v7x
topology: tpu7x:2x2x1
jax: 0.10.0
libtpu: 0.0.40
codegen_flags: <defaults>
</compile_context>

<pallas_src>
import functools
import math

import jax
import jax.numpy as jnp
import numpy as np
from jax.experimental import pallas as pl
from jax.experimental.pallas import tpu as pltpu

HIDDEN_DIM = 32          # embed_dim
NUM_HEADS = 4
NUM_LAYERS = 2
HEAD_DIM = HIDDEN_DIM // NUM_HEADS
FF_DIM = HIDDEN_DIM * NUM_HEADS   # feedforward hidden = hidden_dim * num_heads
LN_EPS = 1e-5
COMPUTE_DT = jnp.bfloat16         # MXU operand dtype (f32 accumulation everywhere)


def _layer_norm(x, gamma, beta):
    # torch.nn.LayerNorm over last dim, biased variance, eps=1e-5
    mean = jnp.mean(x, axis=-1, keepdims=True)
    var = jnp.mean((x - mean) ** 2, axis=-1, keepdims=True)
    return (x - mean) * jax.lax.rsqrt(var + LN_EPS) * gamma + beta


def transformer_kernel(x_ref, bias_ref, wqkv_ref, wo_ref, w1_ref, w2_ref, vec_ref,
                       out_ref, *, batch, seq):
    """Full forward (all layers, all batch elements) in one grid step.

    x_ref    : (B*S, D) f32 activations (resident in VMEM across layers)
    bias_ref : (B*H, 1, S) f32 additive attention bias (== mask.float())
    wqkv_ref : (L, D, 3D) bf16 fused QKV weights (1/sqrt(hd) folded into Q part)
    wo_ref   : (L, D, D) bf16 output projection
    w1_ref   : (L, D, FF) bf16 ; w2_ref: (L, FF, D) bf16
    vec_ref  : (L, 8, 128) f32 packed small vectors (biases / LN params / bqkv)
    """
    B, S = batch, seq
    D, H, hd = HIDDEN_DIM, NUM_HEADS, HEAD_DIM

    x = x_ref[...]          # (B*S, D) f32
    bias = bias_ref[...]    # (B*H, 1, S) f32, hoisted once

    for l in range(NUM_LAYERS):          # static unroll: all layers fused
        vec = vec_ref[l]                 # (8, 128) packed small params
        bo = vec[0:1, :D]
        g1 = vec[1:2, :D]
        be1 = vec[2:3, :D]
        b1 = vec[3:4, :FF_DIM]
        b2 = vec[4:5, :D]
        g2 = vec[5:6, :D]
        be2 = vec[6:7, :D]
        bqkv = vec[7:8, :3 * D]          # (1, 3D), lane-dense, Q part pre-scaled

        # ---- fused QKV projection: one (B*S, D) @ (D, 3D) MXU push ----
        qkv = jnp.dot(x.astype(COMPUTE_DT), wqkv_ref[l],
                      preferred_element_type=jnp.float32) + bqkv      # (B*S, 3D) f32

        # Head split via static slices (sublane-aligned batch rows + lane slice per
        # head), stacked on a new leading axis -> (B*H, S, hd). No 4D transposes.
        def split_heads(col0):
            tiles = [qkv[b * S:(b + 1) * S, col0 + h * hd: col0 + (h + 1) * hd]
                     for b in range(B) for h in range(H)]              # n = b*H + h
            return jnp.stack(tiles, axis=0).astype(COMPUTE_DT)

        q3 = split_heads(0)
        k3 = split_heads(D)
        v3 = split_heads(2 * D)

        # ---- scores + softmax (scale already folded into Wq/bq) ----
        sc = jnp.einsum('nqe,nke->nqk', q3, k3,
                        preferred_element_type=jnp.float32) + bias     # (B*H, S, S)
        sc = sc - jnp.max(sc, axis=-1, keepdims=True)
        p = jnp.exp(sc)
        p = p * pl.reciprocal(jnp.sum(p, axis=-1, keepdims=True), approx=True)

        ph = jnp.einsum('nqk,nke->nqe', p.astype(COMPUTE_DT), v3,
                        preferred_element_type=jnp.float32)            # (B*H, S, hd)

        # Merge heads: lane-concat per batch element, sublane-concat across batch,
        # then ONE output-projection matmul.
        merged = jnp.concatenate(
            [jnp.concatenate([ph[b * H + h] for h in range(H)], axis=-1)
             for b in range(B)], axis=0)                               # (B*S, D) f32
        attn = jnp.dot(merged.astype(COMPUTE_DT), wo_ref[l],
                       preferred_element_type=jnp.float32) + bo        # (B*S, D)

        # ---- residual + LayerNorm 1 ----
        x1 = _layer_norm(x + attn, g1, be1)

        # ---- feedforward: Linear(D, D*H) -> ReLU -> Linear(D*H, D) ----
        h1 = jnp.dot(x1.astype(COMPUTE_DT), w1_ref[l],
                     preferred_element_type=jnp.float32) + b1
        h1 = jnp.maximum(h1, 0.0)
        ff = jnp.dot(h1.astype(COMPUTE_DT), w2_ref[l],
                     preferred_element_type=jnp.float32) + b2
        # Dropout(p=0.1) is identity in eval mode.
        # TODO(synk): training-mode stochastic dropout not implemented (eval semantics).

        # ---- residual + LayerNorm 2 ----
        x = _layer_norm(x1 + ff, g2, be2)

    # Output last dim is 32 (<128): masked store, but total output ~2 KB -> noise.
    out_ref[...] = x


def transformer_forward(x, mask, packed):
    """Single pallas_call, single grid step; whole batch processed at once."""
    B, S, D = x.shape
    wqkv, wo, w1, w2, vecs = packed

    x_flat = x.reshape(B * S, D)
    # Additive attention bias == mask.float(); pre-expand per head so kernel-side
    # broadcast against (B*H, S, S) is a plain vector add (n = b*H + h ordering).
    bias = jnp.repeat(mask.astype(jnp.float32)[:, None, :], NUM_HEADS, axis=0)  # (B*H,1,S)

    def resident(arr):                    # full array, constant block index
        n = arr.ndim
        return pl.BlockSpec(arr.shape, lambda i, _n=n: (0,) * _n)

    kernel = functools.partial(transformer_kernel, batch=B, seq=S)
    out = pl.pallas_call(
        kernel,
        out_shape=jax.ShapeDtypeStruct((B * S, D), jnp.float32),
        grid=(1,),
        in_specs=[resident(x_flat), resident(bias), resident(wqkv), resident(wo),
                  resident(w1), resident(w2), resident(vecs)],
        out_specs=pl.BlockSpec((B * S, D), lambda i: (0, 0)),
        compiler_params=pltpu.CompilerParams(dimension_semantics=("arbitrary",)),
    )(x_flat, bias, wqkv, wo, w1, w2, vecs)
    return out.reshape(B, S, D)


def init_params(key):
    """Deterministic synthetic weights (PyTorch-faithful layout, pre-transposed to
    (in_dim, out_dim) so x @ W applies directly). Used by the pure-JAX reference."""
    layers = []
    for l in range(NUM_LAYERS):
        ks = jax.random.split(jax.random.fold_in(key, l), 8)
        wqkv = 0.1 * jax.random.normal(ks[0], (HIDDEN_DIM, 3 * HIDDEN_DIM), jnp.float32)
        bqkv = 0.1 * jax.random.normal(ks[1], (1, 3 * HIDDEN_DIM), jnp.float32)
        wo = 0.1 * jax.random.normal(ks[2], (HIDDEN_DIM, HIDDEN_DIM), jnp.float32)
        bo = 0.1 * jax.random.normal(ks[3], (1, HIDDEN_DIM), jnp.float32)
        g1 = jnp.ones((1, HIDDEN_DIM), jnp.float32)
        be1 = jnp.zeros((1, HIDDEN_DIM), jnp.float32)
        w1 = 0.1 * jax.random.normal(ks[4], (HIDDEN_DIM, FF_DIM), jnp.float32)
        b1 = 0.1 * jax.random.normal(ks[5], (1, FF_DIM), jnp.float32)
        w2 = 0.1 * jax.random.normal(ks[6], (FF_DIM, HIDDEN_DIM), jnp.float32)
        b2 = 0.1 * jax.random.normal(ks[7], (1, HIDDEN_DIM), jnp.float32)
        g2 = jnp.ones((1, HIDDEN_DIM), jnp.float32)
        be2 = jnp.zeros((1, HIDDEN_DIM), jnp.float32)
        layers.append([wqkv, bqkv, wo, bo, g1, be1, w1, b1, w2, b2, g2, be2])
    return layers


def pack_params(layers):
    """Repack per-layer params into 5 stacked, lane-dense kernel buffers:
    - fused QKV weights (L, D, 3D) bf16, 1/sqrt(hd) folded into the Q columns
    - output projection (L, D, D) bf16
    - FF weights (L, D, FF) / (L, FF, D) bf16
    - all small vectors (biases, LN params, scaled bqkv) packed into one
      (L, 8, 128) f32 block."""
    D = HIDDEN_DIM
    scale = 1.0 / math.sqrt(HEAD_DIM)
    wqkv_l, wo_l, w1_l, w2_l, vec_l = [], [], [], [], []
    for (wqkv, bqkv, wo, bo, g1, be1, w1, b1, w2, b2, g2, be2) in layers:
        wq_scaled = wqkv.at[:, :D].multiply(scale)     # fold 1/sqrt(hd) into Wq columns
        bq_scaled = bqkv.at[:, :D].multiply(scale)     # (1, 3D)
        wqkv_l.append(wq_scaled.astype(COMPUTE_DT))
        wo_l.append(wo.astype(COMPUTE_DT))
        w1_l.append(w1.astype(COMPUTE_DT))
        w2_l.append(w2.astype(COMPUTE_DT))
        vec = jnp.zeros((8, 128), jnp.float32)
        vec = vec.at[0, :D].set(bo.reshape(-1))
        vec = vec.at[1, :D].set(g1.reshape(-1))
        vec = vec.at[2, :D].set(be1.reshape(-1))
        vec = vec.at[3, :FF_DIM].set(b1.reshape(-1))
        vec = vec.at[4, :D].set(b2.reshape(-1))
        vec = vec.at[5, :D].set(g2.reshape(-1))
        vec = vec.at[6, :D].set(be2.reshape(-1))
        vec = vec.at[7, :3 * D].set(bq_scaled.reshape(-1))
        vec_l.append(vec)
    return (jnp.stack(wqkv_l), jnp.stack(wo_l), jnp.stack(w1_l),
            jnp.stack(w2_l), jnp.stack(vec_l))


def reference_forward(x, mask, layers):
    """Pure-JAX f32 reference mirroring the PyTorch forward (eval mode).
    The chained masked_fill in the PyTorch code nets out to an additive bias equal
    to mask.float() (both conditions are evaluated on the original mask)."""
    B, S, D = x.shape
    mask_add = jnp.broadcast_to(mask.astype(jnp.float32)[:, None, :], (B, S, S))
    for (wqkv, bqkv, wo, bo, g1, be1, w1, b1, w2, b2, g2, be2) in layers:
        qkv = x @ wqkv + bqkv
        q, k, v = jnp.split(qkv, 3, axis=-1)
        q = q.reshape(B, S, NUM_HEADS, HEAD_DIM).transpose(0, 2, 1, 3)
        k = k.reshape(B, S, NUM_HEADS, HEAD_DIM).transpose(0, 2, 1, 3)
        v = v.reshape(B, S, NUM_HEADS, HEAD_DIM).transpose(0, 2, 1, 3)
        sc = (q / math.sqrt(HEAD_DIM)) @ k.transpose(0, 1, 3, 2) + mask_add[:, None]
        p = jax.nn.softmax(sc, axis=-1)
        o = (p @ v).transpose(0, 2, 1, 3).reshape(B, S, D)
        attn = o @ wo + bo
        x = _layer_norm(x + attn, g1, be1)
        ff = jnp.maximum(x @ w1 + b1, 0.0) @ w2 + b2
        x = _layer_norm(x + ff, g2, be2)
    return x


if __name__ == "__main__":
    key = jax.random.PRNGKey(0)
    kx, km, kp = jax.random.split(key, 3)

    B, S = 2, 8
    x = jax.random.normal(kx, (B, S, HIDDEN_DIM), dtype=jnp.float32)
    mask = (jax.random.uniform(km, (B, S)) > 0.3).astype(jnp.int32)   # 0/1 mask
    layers = init_params(kp)
    packed = pack_params(layers)

    out = transformer_forward(x, mask, packed)
    out = jax.block_until_ready(out)

    ref = reference_forward(x, mask, layers)
    assert out.shape == (B, S, HIDDEN_DIM)
    # bf16 matmul operands + approx reciprocal vs f32 reference -> loose tolerance.
    np.testing.assert_allclose(np.asarray(out), np.asarray(ref), atol=2e-2, rtol=2e-2)

    print("KERNEL_OK")
</pallas_src>

<mosaic_0001>
module attributes {stable_mosaic.version = 11 : i64} {
  func.func @transformer_kernel(%arg0: i32, %arg1: memref<16x32xf32, #tpu.memory_space<vmem>>, %arg2: memref<8x1x8xf32, #tpu.memory_space<vmem>>, %arg3: memref<2x32x96xbf16, #tpu.memory_space<vmem>>, %arg4: memref<2x32x32xbf16, #tpu.memory_space<vmem>>, %arg5: memref<2x32x128xbf16, #tpu.memory_space<vmem>>, %arg6: memref<2x128x32xbf16, #tpu.memory_space<vmem>>, %arg7: memref<2x8x128xf32, #tpu.memory_space<vmem>>, %arg8: memref<16x32xf32, #tpu.memory_space<vmem>>) attributes {dimension_semantics = [#tpu.dimension_semantics<arbitrary>], iteration_bounds = array<i64: 1>, scalar_prefetch = 0 : i64, scratch_operands = 0 : i64, tpu.core_type = #tpu.core_type<tc>, window_params = [{pipeline_mode = #tpu.pipeline_mode<synchronous>, transform_indices = @transform_0, window_bounds = array<i64: 16, 32>}, {pipeline_mode = #tpu.pipeline_mode<synchronous>, transform_indices = @transform_1, window_bounds = array<i64: 8, 1, 8>}, {pipeline_mode = #tpu.pipeline_mode<synchronous>, transform_indices = @transform_2, window_bounds = array<i64: 2, 32, 96>}, {pipeline_mode = #tpu.pipeline_mode<synchronous>, transform_indices = @transform_3, window_bounds = array<i64: 2, 32, 32>}, {pipeline_mode = #tpu.pipeline_mode<synchronous>, transform_indices = @transform_4, window_bounds = array<i64: 2, 32, 128>}, {pipeline_mode = #tpu.pipeline_mode<synchronous>, transform_indices = @transform_5, window_bounds = array<i64: 2, 128, 32>}, {pipeline_mode = #tpu.pipeline_mode<synchronous>, transform_indices = @transform_6, window_bounds = array<i64: 2, 8, 128>}, {pipeline_mode = #tpu.pipeline_mode<synchronous>, transform_indices = @transform_7, window_bounds = array<i64: 16, 32>}]} {
    %c0 = arith.constant 0 : index
    %c0_0 = arith.constant 0 : index
    %0 = vector.load %arg1[%c0, %c0_0] : memref<16x32xf32, #tpu.memory_space<vmem>>, vector<16x32xf32>
    %c0_1 = arith.constant 0 : index
    %c0_2 = arith.constant 0 : index
    %c0_3 = arith.constant 0 : index
    %1 = vector.load %arg2[%c0_1, %c0_2, %c0_3] : memref<8x1x8xf32, #tpu.memory_space<vmem>>, vector<8x1x8xf32>
    %c0_4 = arith.constant 0 : index
    %c0_5 = arith.constant 0 : index
    %c0_6 = arith.constant 0 : index
    %2 = vector.load %arg7[%c0_4, %c0_5, %c0_6] : memref<2x8x128xf32, #tpu.memory_space<vmem>>, vector<1x8x128xf32>
    %3 = vector.shape_cast %2 : vector<1x8x128xf32> to vector<8x128xf32>
    %4 = vector.extract_strided_slice %3 {offsets = [0, 0], sizes = [1, 32], strides = [1, 1]} : vector<8x128xf32> to vector<1x32xf32>
    %5 = vector.extract_strided_slice %3 {offsets = [1, 0], sizes = [1, 32], strides = [1, 1]} : vector<8x128xf32> to vector<1x32xf32>
    %6 = vector.extract_strided_slice %3 {offsets = [2, 0], sizes = [1, 32], strides = [1, 1]} : vector<8x128xf32> to vector<1x32xf32>
    %7 = vector.extract_strided_slice %3 {offsets = [3, 0], sizes = [1, 128], strides = [1, 1]} : vector<8x128xf32> to vector<1x128xf32>
    %8 = vector.extract_strided_slice %3 {offsets = [4, 0], sizes = [1, 32], strides = [1, 1]} : vector<8x128xf32> to vector<1x32xf32>
    %9 = vector.extract_strided_slice %3 {offsets = [5, 0], sizes = [1, 32], strides = [1, 1]} : vector<8x128xf32> to vector<1x32xf32>
    %10 = vector.extract_strided_slice %3 {offsets = [6, 0], sizes = [1, 32], strides = [1, 1]} : vector<8x128xf32> to vector<1x32xf32>
    %11 = vector.extract_strided_slice %3 {offsets = [7, 0], sizes = [1, 96], strides = [1, 1]} : vector<8x128xf32> to vector<1x96xf32>
    %12 = arith.truncf %0 : vector<16x32xf32> to vector<16x32xbf16>
    %c0_7 = arith.constant 0 : index
    %c0_8 = arith.constant 0 : index
    %c0_9 = arith.constant 0 : index
    %13 = vector.load %arg3[%c0_7, %c0_8, %c0_9] : memref<2x32x96xbf16, #tpu.memory_space<vmem>>, vector<1x32x96xbf16>
    %14 = vector.shape_cast %13 : vector<1x32x96xbf16> to vector<32x96xbf16>
    %cst = arith.constant dense<0.000000e+00> : vector<16x96xf32>
    %15 = tpu.matmul %12, %14, %cst {dimension_numbers = #tpu.dot_dimension_numbers<[1], [0], [0], [1], [0, 0, 1, 1], [], []>} : vector<16x32xbf16>, vector<32x96xbf16>, vector<16x96xf32> -> vector<16x96xf32>
    %16 = vector.broadcast %11 : vector<1x96xf32> to vector<16x96xf32>
    %17 = arith.addf %15, %16 : vector<16x96xf32>
    %18 = vector.extract_strided_slice %17 {offsets = [0, 0], sizes = [8, 8], strides = [1, 1]} : vector<16x96xf32> to vector<8x8xf32>
    %19 = vector.extract_strided_slice %17 {offsets = [0, 8], sizes = [8, 8], strides = [1, 1]} : vector<16x96xf32> to vector<8x8xf32>
    %20 = vector.extract_strided_slice %17 {offsets = [0, 16], sizes = [8, 8], strides = [1, 1]} : vector<16x96xf32> to vector<8x8xf32>
    %21 = vector.extract_strided_slice %17 {offsets = [0, 24], sizes = [8, 8], strides = [1, 1]} : vector<16x96xf32> to vector<8x8xf32>
    %22 = vector.extract_strided_slice %17 {offsets = [8, 0], sizes = [8, 8], strides = [1, 1]} : vector<16x96xf32> to vector<8x8xf32>
    %23 = vector.extract_strided_slice %17 {offsets = [8, 8], sizes = [8, 8], strides = [1, 1]} : vector<16x96xf32> to vector<8x8xf32>
    %24 = vector.extract_strided_slice %17 {offsets = [8, 16], sizes = [8, 8], strides = [1, 1]} : vector<16x96xf32> to vector<8x8xf32>
    %25 = vector.extract_strided_slice %17 {offsets = [8, 24], sizes = [8, 8], strides = [1, 1]} : vector<16x96xf32> to vector<8x8xf32>
    %26 = vector.shape_cast %18 : vector<8x8xf32> to vector<1x8x8xf32>
    %27 = vector.shape_cast %19 : vector<8x8xf32> to vector<1x8x8xf32>
    %28 = vector.shape_cast %20 : vector<8x8xf32> to vector<1x8x8xf32>
    %29 = vector.shape_cast %21 : vector<8x8xf32> to vector<1x8x8xf32>
    %30 = vector.shape_cast %22 : vector<8x8xf32> to vector<1x8x8xf32>
    %31 = vector.shape_cast %23 : vector<8x8xf32> to vector<1x8x8xf32>
    %32 = vector.shape_cast %24 : vector<8x8xf32> to vector<1x8x8xf32>
    %33 = vector.shape_cast %25 : vector<8x8xf32> to vector<1x8x8xf32>
    %34 = tpu.concatenate %26, %27, %28, %29, %30, %31, %32, %33 in 0 : vector<1x8x8xf32>, vector<1x8x8xf32>, vector<1x8x8xf32>, vector<1x8x8xf32>, vector<1x8x8xf32>, vector<1x8x8xf32>, vector<1x8x8xf32>, vector<1x8x8xf32> -> vector<8x8x8xf32>
    %35 = arith.truncf %34 : vector<8x8x8xf32> to vector<8x8x8xbf16>
    %36 = vector.extract_strided_slice %17 {offsets = [0, 32], sizes = [8, 8], strides = [1, 1]} : vector<16x96xf32> to vector<8x8xf32>
    %37 = vector.extract_strided_slice %17 {offsets = [0, 40], sizes = [8, 8], strides = [1, 1]} : vector<16x96xf32> to vector<8x8xf32>
    %38 = vector.extract_strided_slice %17 {offsets = [0, 48], sizes = [8, 8], strides = [1, 1]} : vector<16x96xf32> to vector<8x8xf32>
    %39 = vector.extract_strided_slice %17 {offsets = [0, 56], sizes = [8, 8], strides = [1, 1]} : vector<16x96xf32> to vector<8x8xf32>
    %40 = vector.extract_strided_slice %17 {offsets = [8, 32], sizes = [8, 8], strides = [1, 1]} : vector<16x96xf32> to vector<8x8xf32>
    %41 = vector.extract_strided_slice %17 {offsets = [8, 40], sizes = [8, 8], strides = [1, 1]} : vector<16x96xf32> to vector<8x8xf32>
    %42 = vector.extract_strided_slice %17 {offsets = [8, 48], sizes = [8, 8], strides = [1, 1]} : vector<16x96xf32> to vector<8x8xf32>
    %43 = vector.extract_strided_slice %17 {offsets = [8, 56], sizes = [8, 8], strides = [1, 1]} : vector<16x96xf32> to vector<8x8xf32>
    %44 = vector.shape_cast %36 : vector<8x8xf32> to vector<1x8x8xf32>
    %45 = vector.shape_cast %37 : vector<8x8xf32> to vector<1x8x8xf32>
    %46 = vector.shape_cast %38 : vector<8x8xf32> to vector<1x8x8xf32>
    %47 = vector.shape_cast %39 : vector<8x8xf32> to vector<1x8x8xf32>
    %48 = vector.shape_cast %40 : vector<8x8xf32> to vector<1x8x8xf32>
    %49 = vector.shape_cast %41 : vector<8x8xf32> to vector<1x8x8xf32>
    %50 = vector.shape_cast %42 : vector<8x8xf32> to vector<1x8x8xf32>
    %51 = vector.shape_cast %43 : vector<8x8xf32> to vector<1x8x8xf32>
    %52 = tpu.concatenate %44, %45, %46, %47, %48, %49, %50, %51 in 0 : vector<1x8x8xf32>, vector<1x8x8xf32>, vector<1x8x8xf32>, vector<1x8x8xf32>, vector<1x8x8xf32>, vector<1x8x8xf32>, vector<1x8x8xf32>, vector<1x8x8xf32> -> vector<8x8x8xf32>
    %53 = arith.truncf %52 : vector<8x8x8xf32> to vector<8x8x8xbf16>
    %54 = vector.extract_strided_slice %17 {offsets = [0, 64], sizes = [8, 8], strides = [1, 1]} : vector<16x96xf32> to vector<8x8xf32>
    %55 = vector.extract_strided_slice %17 {offsets = [0, 72], sizes = [8, 8], strides = [1, 1]} : vector<16x96xf32> to vector<8x8xf32>
    %56 = vector.extract_strided_slice %17 {offsets = [0, 80], sizes = [8, 8], strides = [1, 1]} : vector<16x96xf32> to vector<8x8xf32>
    %57 = vector.extract_strided_slice %17 {offsets = [0, 88], sizes = [8, 8], strides = [1, 1]} : vector<16x96xf32> to vector<8x8xf32>
    %58 = vector.extract_strided_slice %17 {offsets = [8, 64], sizes = [8, 8], strides = [1, 1]} : vector<16x96xf32> to vector<8x8xf32>
    %59 = vector.extract_strided_slice %17 {offsets = [8, 72], sizes = [8, 8], strides = [1, 1]} : vector<16x96xf32> to vector<8x8xf32>
    %60 = vector.extract_strided_slice %17 {offsets = [8, 80], sizes = [8, 8], strides = [1, 1]} : vector<16x96xf32> to vector<8x8xf32>
    %61 = vector.extract_strided_slice %17 {offsets = [8, 88], sizes = [8, 8], strides = [1, 1]} : vector<16x96xf32> to vector<8x8xf32>
    %62 = vector.shape_cast %54 : vector<8x8xf32> to vector<1x8x8xf32>
    %63 = vector.shape_cast %55 : vector<8x8xf32> to vector<1x8x8xf32>
    %64 = vector.shape_cast %56 : vector<8x8xf32> to vector<1x8x8xf32>
    %65 = vector.shape_cast %57 : vector<8x8xf32> to vector<1x8x8xf32>
    %66 = vector.shape_cast %58 : vector<8x8xf32> to vector<1x8x8xf32>
    %67 = vector.shape_cast %59 : vector<8x8xf32> to vector<1x8x8xf32>
    %68 = vector.shape_cast %60 : vector<8x8xf32> to vector<1x8x8xf32>
    %69 = vector.shape_cast %61 : vector<8x8xf32> to vector<1x8x8xf32>
    %70 = tpu.concatenate %62, %63, %64, %65, %66, %67, %68, %69 in 0 : vector<1x8x8xf32>, vector<1x8x8xf32>, vector<1x8x8xf32>, vector<1x8x8xf32>, vector<1x8x8xf32>, vector<1x8x8xf32>, vector<1x8x8xf32>, vector<1x8x8xf32> -> vector<8x8x8xf32>
    %71 = arith.truncf %70 : vector<8x8x8xf32> to vector<8x8x8xbf16>
    "tpu.trace_start"() <{level = 10 : i32, message = "nqe,nke->nqk"}> : () -> ()
    %cst_10 = arith.constant dense<0.000000e+00> : vector<8x8x8xf32>
    %72 = tpu.matmul %35, %53, %cst_10 {dimension_numbers = #tpu.dot_dimension_numbers<[2], [2], [1], [1], [0, 0, 0, 1, 1, 1], [0], [0]>} : vector<8x8x8xbf16>, vector<8x8x8xbf16>, vector<8x8x8xf32> -> vector<8x8x8xf32>
    "tpu.trace_stop"() : () -> ()
    %73 = vector.broadcast %1 : vector<8x1x8xf32> to vector<8x8x8xf32>
    %74 = arith.addf %72, %73 : vector<8x8x8xf32>
    %cst_11 = arith.constant dense<0xFF800000> : vector<8x8xf32>
    %75 = vector.multi_reduction <maximumf>, %74, %cst_11 [2] : vector<8x8x8xf32> to vector<8x8xf32>
    %76 = vector.shape_cast %75 : vector<8x8xf32> to vector<8x8x1xf32>
    %77 = vector.broadcast %76 : vector<8x8x1xf32> to vector<8x8x8xf32>
    %78 = arith.subf %74, %77 : vector<8x8x8xf32>
    %79 = math.exp %78 : vector<8x8x8xf32>
    %cst_12 = arith.constant dense<0.000000e+00> : vector<8x8xf32>
    %80 = vector.multi_reduction <add>, %79, %cst_12 [2] : vector<8x8x8xf32> to vector<8x8xf32>
    %81 = vector.shape_cast %80 : vector<8x8xf32> to vector<8x8x1xf32>
    %82 = tpu.reciprocal %81 {approx = true} : vector<8x8x1xf32> -> vector<8x8x1xf32>
    %83 = vector.broadcast %82 : vector<8x8x1xf32> to vector<8x8x8xf32>
    %84 = arith.mulf %79, %83 : vector<8x8x8xf32>
    %85 = arith.truncf %84 : vector<8x8x8xf32> to vector<8x8x8xbf16>
    "tpu.trace_start"() <{level = 10 : i32, message = "nqk,nke->nqe"}> : () -> ()
    %cst_13 = arith.constant dense<0.000000e+00> : vector<8x8x8xf32>
    %86 = tpu.matmul %85, %71, %cst_13 {dimension_numbers = #tpu.dot_dimension_numbers<[2], [1], [1], [2], [0, 0, 0, 1, 1, 2], [0], [0]>} : vector<8x8x8xbf16>, vector<8x8x8xbf16>, vector<8x8x8xf32> -> vector<8x8x8xf32>
    "tpu.trace_stop"() : () -> ()
    %87 = vector.extract_strided_slice %86 {offsets = [0, 0, 0], sizes = [1, 8, 8], strides = [1, 1, 1]} : vector<8x8x8xf32> to vector<1x8x8xf32>
    %88 = vector.shape_cast %87 : vector<1x8x8xf32> to vector<8x8xf32>
    %89 = vector.extract_strided_slice %86 {offsets = [1, 0, 0], sizes = [1, 8, 8], strides = [1, 1, 1]} : vector<8x8x8xf32> to vector<1x8x8xf32>
    %90 = vector.shape_cast %89 : vector<1x8x8xf32> to vector<8x8xf32>
    %91 = vector.extract_strided_slice %86 {offsets = [2, 0, 0], sizes = [1, 8, 8], strides = [1, 1, 1]} : vector<8x8x8xf32> to vector<1x8x8xf32>
    %92 = vector.shape_cast %91 : vector<1x8x8xf32> to vector<8x8xf32>
    %93 = vector.extract_strided_slice %86 {offsets = [3, 0, 0], sizes = [1, 8, 8], strides = [1, 1, 1]} : vector<8x8x8xf32> to vector<1x8x8xf32>
    %94 = vector.shape_cast %93 : vector<1x8x8xf32> to vector<8x8xf32>
    %95 = tpu.concatenate %88, %90, %92, %94 in 1 : vector<8x8xf32>, vector<8x8xf32>, vector<8x8xf32>, vector<8x8xf32> -> vector<8x32xf32>
    %96 = vector.extract_strided_slice %86 {offsets = [4, 0, 0], sizes = [1, 8, 8], strides = [1, 1, 1]} : vector<8x8x8xf32> to vector<1x8x8xf32>
    %97 = vector.shape_cast %96 : vector<1x8x8xf32> to vector<8x8xf32>
    %98 = vector.extract_strided_slice %86 {offsets = [5, 0, 0], sizes = [1, 8, 8], strides = [1, 1, 1]} : vector<8x8x8xf32> to vector<1x8x8xf32>
    %99 = vector.shape_cast %98 : vector<1x8x8xf32> to vector<8x8xf32>
    %100 = vector.extract_strided_slice %86 {offsets = [6, 0, 0], sizes = [1, 8, 8], strides = [1, 1, 1]} : vector<8x8x8xf32> to vector<1x8x8xf32>
    %101 = vector.shape_cast %100 : vector<1x8x8xf32> to vector<8x8xf32>
    %102 = vector.extract_strided_slice %86 {offsets = [7, 0, 0], sizes = [1, 8, 8], strides = [1, 1, 1]} : vector<8x8x8xf32> to vector<1x8x8xf32>
    %103 = vector.shape_cast %102 : vector<1x8x8xf32> to vector<8x8xf32>
    %104 = tpu.concatenate %97, %99, %101, %103 in 1 : vector<8x8xf32>, vector<8x8xf32>, vector<8x8xf32>, vector<8x8xf32> -> vector<8x32xf32>
    %105 = tpu.concatenate %95, %104 in 0 : vector<8x32xf32>, vector<8x32xf32> -> vector<16x32xf32>
    %106 = arith.truncf %105 : vector<16x32xf32> to vector<16x32xbf16>
    %c0_14 = arith.constant 0 : index
    %c0_15 = arith.constant 0 : index
    %c0_16 = arith.constant 0 : index
    %107 = vector.load %arg4[%c0_14, %c0_15, %c0_16] : memref<2x32x32xbf16, #tpu.memory_space<vmem>>, vector<1x32x32xbf16>
    %108 = vector.shape_cast %107 : vector<1x32x32xbf16> to vector<32x32xbf16>
    %cst_17 = arith.constant dense<0.000000e+00> : vector<16x32xf32>
    %109 = tpu.matmul %106, %108, %cst_17 {dimension_numbers = #tpu.dot_dimension_numbers<[1], [0], [0], [1], [0, 0, 1, 1], [], []>} : vector<16x32xbf16>, vector<32x32xbf16>, vector<16x32xf32> -> vector<16x32xf32>
    %110 = vector.broadcast %4 : vector<1x32xf32> to vector<16x32xf32>
    %111 = arith.addf %109, %110 : vector<16x32xf32>
    %112 = arith.addf %0, %111 : vector<16x32xf32>
    %cst_18 = arith.constant dense<0.000000e+00> : vector<16xf32>
    %113 = vector.multi_reduction <add>, %112, %cst_18 [1] : vector<16x32xf32> to vector<16xf32>
    %114 = vector.shape_cast %113 : vector<16xf32> to vector<16x1xf32>
    %cst_19 = arith.constant 3.200000e+01 : f32
    %115 = vector.broadcast %cst_19 : f32 to vector<16x1xf32>
    %116 = arith.divf %114, %115 : vector<16x1xf32>
    %117 = vector.broadcast %116 : vector<16x1xf32> to vector<16x32xf32>
    %118 = arith.subf %112, %117 : vector<16x32xf32>
    %119 = arith.mulf %118, %118 : vector<16x32xf32>
    %cst_20 = arith.constant dense<0.000000e+00> : vector<16xf32>
    %120 = vector.multi_reduction <add>, %119, %cst_20 [1] : vector<16x32xf32> to vector<16xf32>
    %121 = vector.shape_cast %120 : vector<16xf32> to vector<16x1xf32>
    %cst_21 = arith.constant 3.200000e+01 : f32
    %122 = vector.broadcast %cst_21 : f32 to vector<16x1xf32>
    %123 = arith.divf %121, %122 : vector<16x1xf32>
    %124 = vector.broadcast %116 : vector<16x1xf32> to vector<16x32xf32>
    %125 = arith.subf %112, %124 : vector<16x32xf32>
    %cst_22 = arith.constant 9.99999974E-6 : f32
    %126 = vector.broadcast %cst_22 : f32 to vector<16x1xf32>
    %127 = arith.addf %123, %126 : vector<16x1xf32>
    %128 = math.rsqrt %127 : vector<16x1xf32>
    %129 = vector.broadcast %128 : vector<16x1xf32> to vector<16x32xf32>
    %130 = arith.mulf %125, %129 : vector<16x32xf32>
    %131 = vector.broadcast %5 : vector<1x32xf32> to vector<16x32xf32>
    %132 = arith.mulf %130, %131 : vector<16x32xf32>
    %133 = vector.broadcast %6 : vector<1x32xf32> to vector<16x32xf32>
    %134 = arith.addf %132, %133 : vector<16x32xf32>
    %135 = arith.truncf %134 : vector<16x32xf32> to vector<16x32xbf16>
    %c0_23 = arith.constant 0 : index
    %c0_24 = arith.constant 0 : index
    %c0_25 = arith.constant 0 : index
    %136 = vector.load %arg5[%c0_23, %c0_24, %c0_25] : memref<2x32x128xbf16, #tpu.memory_space<vmem>>, vector<1x32x128xbf16>
    %137 = vector.shape_cast %136 : vector<1x32x128xbf16> to vector<32x128xbf16>
    %cst_26 = arith.constant dense<0.000000e+00> : vector<16x128xf32>
    %138 = tpu.matmul %135, %137, %cst_26 {dimension_numbers = #tpu.dot_dimension_numbers<[1], [0], [0], [1], [0, 0, 1, 1], [], []>} : vector<16x32xbf16>, vector<32x128xbf16>, vector<16x128xf32> -> vector<16x128xf32>
    %139 = vector.broadcast %7 : vector<1x128xf32> to vector<16x128xf32>
    %140 = arith.addf %138, %139 : vector<16x128xf32>
    %cst_27 = arith.constant 0.000000e+00 : f32
    %141 = vector.broadcast %cst_27 : f32 to vector<16x128xf32>
    %142 = arith.maximumf %140, %141 : vector<16x128xf32>
    %143 = arith.truncf %142 : vector<16x128xf32> to vector<16x128xbf16>
    %c0_28 = arith.constant 0 : index
    %c0_29 = arith.constant 0 : index
    %c0_30 = arith.constant 0 : index
    %144 = vector.load %arg6[%c0_28, %c0_29, %c0_30] : memref<2x128x32xbf16, #tpu.memory_space<vmem>>, vector<1x128x32xbf16>
    %145 = vector.shape_cast %144 : vector<1x128x32xbf16> to vector<128x32xbf16>
    %cst_31 = arith.constant dense<0.000000e+00> : vector<16x32xf32>
    %146 = tpu.matmul %143, %145, %cst_31 {dimension_numbers = #tpu.dot_dimension_numbers<[1], [0], [0], [1], [0, 0, 1, 1], [], []>} : vector<16x128xbf16>, vector<128x32xbf16>, vector<16x32xf32> -> vector<16x32xf32>
    %147 = vector.broadcast %8 : vector<1x32xf32> to vector<16x32xf32>
    %148 = arith.addf %146, %147 : vector<16x32xf32>
    %149 = arith.addf %134, %148 : vector<16x32xf32>
    %cst_32 = arith.constant dense<0.000000e+00> : vector<16xf32>
    %150 = vector.multi_reduction <add>, %149, %cst_32 [1] : vector<16x32xf32> to vector<16xf32>
    %151 = vector.shape_cast %150 : vector<16xf32> to vector<16x1xf32>
    %cst_33 = arith.constant 3.200000e+01 : f32
    %152 = vector.broadcast %cst_33 : f32 to vector<16x1xf32>
    %153 = arith.divf %151, %152 : vector<16x1xf32>
    %154 = vector.broadcast %153 : vector<16x1xf32> to vector<16x32xf32>
    %155 = arith.subf %149, %154 : vector<16x32xf32>
    %156 = arith.mulf %155, %155 : vector<16x32xf32>
    %cst_34 = arith.constant dense<0.000000e+00> : vector<16xf32>
    %157 = vector.multi_reduction <add>, %156, %cst_34 [1] : vector<16x32xf32> to vector<16xf32>
    %158 = vector.shape_cast %157 : vector<16xf32> to vector<16x1xf32>
    %cst_35 = arith.constant 3.200000e+01 : f32
    %159 = vector.broadcast %cst_35 : f32 to vector<16x1xf32>
    %160 = arith.divf %158, %159 : vector<16x1xf32>
    %161 = vector.broadcast %153 : vector<16x1xf32> to vector<16x32xf32>
    %162 = arith.subf %149, %161 : vector<16x32xf32>
    %cst_36 = arith.constant 9.99999974E-6 : f32
    %163 = vector.broadcast %cst_36 : f32 to vector<16x1xf32>
    %164 = arith.addf %160, %163 : vector<16x1xf32>
    %165 = math.rsqrt %164 : vector<16x1xf32>
    %166 = vector.broadcast %165 : vector<16x1xf32> to vector<16x32xf32>
    %167 = arith.mulf %162, %166 : vector<16x32xf32>
    %168 = vector.broadcast %9 : vector<1x32xf32> to vector<16x32xf32>
    %169 = arith.mulf %167, %168 : vector<16x32xf32>
    %170 = vector.broadcast %10 : vector<1x32xf32> to vector<16x32xf32>
    %171 = arith.addf %169, %170 : vector<16x32xf32>
    %c1 = arith.constant 1 : index
    %c0_37 = arith.constant 0 : index
    %c0_38 = arith.constant 0 : index
    %172 = vector.load %arg7[%c1, %c0_37, %c0_38] : memref<2x8x128xf32, #tpu.memory_space<vmem>>, vector<1x8x128xf32>
    %173 = vector.shape_cast %172 : vector<1x8x128xf32> to vector<8x128xf32>
    %174 = vector.extract_strided_slice %173 {offsets = [0, 0], sizes = [1, 32], strides = [1, 1]} : vector<8x128xf32> to vector<1x32xf32>
    %175 = vector.extract_strided_slice %173 {offsets = [1, 0], sizes = [1, 32], strides = [1, 1]} : vector<8x128xf32> to vector<1x32xf32>
    %176 = vector.extract_strided_slice %173 {offsets = [2, 0], sizes = [1, 32], strides = [1, 1]} : vector<8x128xf32> to vector<1x32xf32>
    %177 = vector.extract_strided_slice %173 {offsets = [3, 0], sizes = [1, 128], strides = [1, 1]} : vector<8x128xf32> to vector<1x128xf32>
    %178 = vector.extract_strided_slice %173 {offsets = [4, 0], sizes = [1, 32], strides = [1, 1]} : vector<8x128xf32> to vector<1x32xf32>
    %179 = vector.extract_strided_slice %173 {offsets = [5, 0], sizes = [1, 32], strides = [1, 1]} : vector<8x128xf32> to vector<1x32xf32>
    %180 = vector.extract_strided_slice %173 {offsets = [6, 0], sizes = [1, 32], strides = [1, 1]} : vector<8x128xf32> to vector<1x32xf32>
    %181 = vector.extract_strided_slice %173 {offsets = [7, 0], sizes = [1, 96], strides = [1, 1]} : vector<8x128xf32> to vector<1x96xf32>
    %182 = arith.truncf %171 : vector<16x32xf32> to vector<16x32xbf16>
    %c1_39 = arith.constant 1 : index
    %c0_40 = arith.constant 0 : index
    %c0_41 = arith.constant 0 : index
    %183 = vector.load %arg3[%c1_39, %c0_40, %c0_41] : memref<2x32x96xbf16, #tpu.memory_space<vmem>>, vector<1x32x96xbf16>
    %184 = vector.shape_cast %183 : vector<1x32x96xbf16> to vector<32x96xbf16>
    %cst_42 = arith.constant dense<0.000000e+00> : vector<16x96xf32>
    %185 = tpu.matmul %182, %184, %cst_42 {dimension_numbers = #tpu.dot_dimension_numbers<[1], [0], [0], [1], [0, 0, 1, 1], [], []>} : vector<16x32xbf16>, vector<32x96xbf16>, vector<16x96xf32> -> vector<16x96xf32>
    %186 = vector.broadcast %181 : vector<1x96xf32> to vector<16x96xf32>
    %187 = arith.addf %185, %186 : vector<16x96xf32>
    %188 = vector.extract_strided_slice %187 {offsets = [0, 0], sizes = [8, 8], strides = [1, 1]} : vector<16x96xf32> to vector<8x8xf32>
    %189 = vector.extract_strided_slice %187 {offsets = [0, 8], sizes = [8, 8], strides = [1, 1]} : vector<16x96xf32> to vector<8x8xf32>
    %190 = vector.extract_strided_slice %187 {offsets = [0, 16], sizes = [8, 8], strides = [1, 1]} : vector<16x96xf32> to vector<8x8xf32>
    %191 = vector.extract_strided_slice %187 {offsets = [0, 24], sizes = [8, 8], strides = [1, 1]} : vector<16x96xf32> to vector<8x8xf32>
    %192 = vector.extract_strided_slice %187 {offsets = [8, 0], sizes = [8, 8], strides = [1, 1]} : vector<16x96xf32> to vector<8x8xf32>
    %193 = vector.extract_strided_slice %187 {offsets = [8, 8], sizes = [8, 8], strides = [1, 1]} : vector<16x96xf32> to vector<8x8xf32>
    %194 = vector.extract_strided_slice %187 {offsets = [8, 16], sizes = [8, 8], strides = [1, 1]} : vector<16x96xf32> to vector<8x8xf32>
    %195 = vector.extract_strided_slice %187 {offsets = [8, 24], sizes = [8, 8], strides = [1, 1]} : vector<16x96xf32> to vector<8x8xf32>
    %196 = vector.shape_cast %188 : vector<8x8xf32> to vector<1x8x8xf32>
    %197 = vector.shape_cast %189 : vector<8x8xf32> to vector<1x8x8xf32>
    %198 = vector.shape_cast %190 : vector<8x8xf32> to vector<1x8x8xf32>
    %199 = vector.shape_cast %191 : vector<8x8xf32> to vector<1x8x8xf32>
    %200 = vector.shape_cast %192 : vector<8x8xf32> to vector<1x8x8xf32>
    %201 = vector.shape_cast %193 : vector<8x8xf32> to vector<1x8x8xf32>
    %202 = vector.shape_cast %194 : vector<8x8xf32> to vector<1x8x8xf32>
    %203 = vector.shape_cast %195 : vector<8x8xf32> to vector<1x8x8xf32>
    %204 = tpu.concatenate %196, %197, %198, %199, %200, %201, %202, %203 in 0 : vector<1x8x8xf32>, vector<1x8x8xf32>, vector<1x8x8xf32>, vector<1x8x8xf32>, vector<1x8x8xf32>, vector<1x8x8xf32>, vector<1x8x8xf32>, vector<1x8x8xf32> -> vector<8x8x8xf32>
    %205 = arith.truncf %204 : vector<8x8x8xf32> to vector<8x8x8xbf16>
    %206 = vector.extract_strided_slice %187 {offsets = [0, 32], sizes = [8, 8], strides = [1, 1]} : vector<16x96xf32> to vector<8x8xf32>
    %207 = vector.extract_strided_slice %187 {offsets = [0, 40], sizes = [8, 8], strides = [1, 1]} : vector<16x96xf32> to vector<8x8xf32>
    %208 = vector.extract_strided_slice %187 {offsets = [0, 48], sizes = [8, 8], strides = [1, 1]} : vector<16x96xf32> to vector<8x8xf32>
    %209 = vector.extract_strided_slice %187 {offsets = [0, 56], sizes = [8, 8], strides = [1, 1]} : vector<16x96xf32> to vector<8x8xf32>
    %210 = vector.extract_strided_slice %187 {offsets = [8, 32], sizes = [8, 8], strides = [1, 1]} : vector<16x96xf32> to vector<8x8xf32>
    %211 = vector.extract_strided_slice %187 {offsets = [8, 40], sizes = [8, 8], strides = [1, 1]} : vector<16x96xf32> to vector<8x8xf32>
    %212 = vector.extract_strided_slice %187 {offsets = [8, 48], sizes = [8, 8], strides = [1, 1]} : vector<16x96xf32> to vector<8x8xf32>
    %213 = vector.extract_strided_slice %187 {offsets = [8, 56], sizes = [8, 8], strides = [1, 1]} : vector<16x96xf32> to vector<8x8xf32>
    %214 = vector.shape_cast %206 : vector<8x8xf32> to vector<1x8x8xf32>
    %215 = vector.shape_cast %207 : vector<8x8xf32> to vector<1x8x8xf32>
    %216 = vector.shape_cast %208 : vector<8x8xf32> to vector<1x8x8xf32>
    %217 = vector.shape_cast %209 : vector<8x8xf32> to vector<1x8x8xf32>
    %218 = vector.shape_cast %210 : vector<8x8xf32> to vector<1x8x8xf32>
    %219 = vector.shape_cast %211 : vector<8x8xf32> to vector<1x8x8xf32>
    %220 = vector.shape_cast %212 : vector<8x8xf32> to vector<1x8x8xf32>
    %221 = vector.shape_cast %213 : vector<8x8xf32> to vector<1x8x8xf32>
    %222 = tpu.concatenate %214, %215, %216, %217, %218, %219, %220, %221 in 0 : vector<1x8x8xf32>, vector<1x8x8xf32>, vector<1x8x8xf32>, vector<1x8x8xf32>, vector<1x8x8xf32>, vector<1x8x8xf32>, vector<1x8x8xf32>, vector<1x8x8xf32> -> vector<8x8x8xf32>
    %223 = arith.truncf %222 : vector<8x8x8xf32> to vector<8x8x8xbf16>
    %224 = vector.extract_strided_slice %187 {offsets = [0, 64], sizes = [8, 8], strides = [1, 1]} : vector<16x96xf32> to vector<8x8xf32>
    %225 = vector.extract_strided_slice %187 {offsets = [0, 72], sizes = [8, 8], strides = [1, 1]} : vector<16x96xf32> to vector<8x8xf32>
    %226 = vector.extract_strided_slice %187 {offsets = [0, 80], sizes = [8, 8], strides = [1, 1]} : vector<16x96xf32> to vector<8x8xf32>
    %227 = vector.extract_strided_slice %187 {offsets = [0, 88], sizes = [8, 8], strides = [1, 1]} : vector<16x96xf32> to vector<8x8xf32>
    %228 = vector.extract_strided_slice %187 {offsets = [8, 64], sizes = [8, 8], strides = [1, 1]} : vector<16x96xf32> to vector<8x8xf32>
    %229 = vector.extract_strided_slice %187 {offsets = [8, 72], sizes = [8, 8], strides = [1, 1]} : vector<16x96xf32> to vector<8x8xf32>
    %230 = vector.extract_strided_slice %187 {offsets = [8, 80], sizes = [8, 8], strides = [1, 1]} : vector<16x96xf32> to vector<8x8xf32>
    %231 = vector.extract_strided_slice %187 {offsets = [8, 88], sizes = [8, 8], strides = [1, 1]} : vector<16x96xf32> to vector<8x8xf32>
    %232 = vector.shape_cast %224 : vector<8x8xf32> to vector<1x8x8xf32>
    %233 = vector.shape_cast %225 : vector<8x8xf32> to vector<1x8x8xf32>
    %234 = vector.shape_cast %226 : vector<8x8xf32> to vector<1x8x8xf32>
    %235 = vector.shape_cast %227 : vector<8x8xf32> to vector<1x8x8xf32>
    %236 = vector.shape_cast %228 : vector<8x8xf32> to vector<1x8x8xf32>
    %237 = vector.shape_cast %229 : vector<8x8xf32> to vector<1x8x8xf32>
    %238 = vector.shape_cast %230 : vector<8x8xf32> to vector<1x8x8xf32>
    %239 = vector.shape_cast %231 : vector<8x8xf32> to vector<1x8x8xf32>
    %240 = tpu.concatenate %232, %233, %234, %235, %236, %237, %238, %239 in 0 : vector<1x8x8xf32>, vector<1x8x8xf32>, vector<1x8x8xf32>, vector<1x8x8xf32>, vector<1x8x8xf32>, vector<1x8x8xf32>, vector<1x8x8xf32>, vector<1x8x8xf32> -> vector<8x8x8xf32>
    %241 = arith.truncf %240 : vector<8x8x8xf32> to vector<8x8x8xbf16>
    "tpu.trace_start"() <{level = 10 : i32, message = "nqe,nke->nqk"}> : () -> ()
    %cst_43 = arith.constant dense<0.000000e+00> : vector<8x8x8xf32>
    %242 = tpu.matmul %205, %223, %cst_43 {dimension_numbers = #tpu.dot_dimension_numbers<[2], [2], [1], [1], [0, 0, 0, 1, 1, 1], [0], [0]>} : vector<8x8x8xbf16>, vector<8x8x8xbf16>, vector<8x8x8xf32> -> vector<8x8x8xf32>
    "tpu.trace_stop"() : () -> ()
    %243 = vector.broadcast %1 : vector<8x1x8xf32> to vector<8x8x8xf32>
    %244 = arith.addf %242, %243 : vector<8x8x8xf32>
    %cst_44 = arith.constant dense<0xFF800000> : vector<8x8xf32>
    %245 = vector.multi_reduction <maximumf>, %244, %cst_44 [2] : vector<8x8x8xf32> to vector<8x8xf32>
    %246 = vector.shape_cast %245 : vector<8x8xf32> to vector<8x8x1xf32>
    %247 = vector.broadcast %246 : vector<8x8x1xf32> to vector<8x8x8xf32>
    %248 = arith.subf %244, %247 : vector<8x8x8xf32>
    %249 = math.exp %248 : vector<8x8x8xf32>
    %cst_45 = arith.constant dense<0.000000e+00> : vector<8x8xf32>
    %250 = vector.multi_reduction <add>, %249, %cst_45 [2] : vector<8x8x8xf32> to vector<8x8xf32>
    %251 = vector.shape_cast %250 : vector<8x8xf32> to vector<8x8x1xf32>
    %252 = tpu.reciprocal %251 {approx = true} : vector<8x8x1xf32> -> vector<8x8x1xf32>
    %253 = vector.broadcast %252 : vector<8x8x1xf32> to vector<8x8x8xf32>
    %254 = arith.mulf %249, %253 : vector<8x8x8xf32>
    %255 = arith.truncf %254 : vector<8x8x8xf32> to vector<8x8x8xbf16>
    "tpu.trace_start"() <{level = 10 : i32, message = "nqk,nke->nqe"}> : () -> ()
    %cst_46 = arith.constant dense<0.000000e+00> : vector<8x8x8xf32>
    %256 = tpu.matmul %255, %241, %cst_46 {dimension_numbers = #tpu.dot_dimension_numbers<[2], [1], [1], [2], [0, 0, 0, 1, 1, 2], [0], [0]>} : vector<8x8x8xbf16>, vector<8x8x8xbf16>, vector<8x8x8xf32> -> vector<8x8x8xf32>
    "tpu.trace_stop"() : () -> ()
    %257 = vector.extract_strided_slice %256 {offsets = [0, 0, 0], sizes = [1, 8, 8], strides = [1, 1, 1]} : vector<8x8x8xf32> to vector<1x8x8xf32>
    %258 = vector.shape_cast %257 : vector<1x8x8xf32> to vector<8x8xf32>
    %259 = vector.extract_strided_slice %256 {offsets = [1, 0, 0], sizes = [1, 8, 8], strides = [1, 1, 1]} : vector<8x8x8xf32> to vector<1x8x8xf32>
    %260 = vector.shape_cast %259 : vector<1x8x8xf32> to vector<8x8xf32>
    %261 = vector.extract_strided_slice %256 {offsets = [2, 0, 0], sizes = [1, 8, 8], strides = [1, 1, 1]} : vector<8x8x8xf32> to vector<1x8x8xf32>
    %262 = vector.shape_cast %261 : vector<1x8x8xf32> to vector<8x8xf32>
    %263 = vector.extract_strided_slice %256 {offsets = [3, 0, 0], sizes = [1, 8, 8], strides = [1, 1, 1]} : vector<8x8x8xf32> to vector<1x8x8xf32>
    %264 = vector.shape_cast %263 : vector<1x8x8xf32> to vector<8x8xf32>
    %265 = tpu.concatenate %258, %260, %262, %264 in 1 : vector<8x8xf32>, vector<8x8xf32>, vector<8x8xf32>, vector<8x8xf32> -> vector<8x32xf32>
    %266 = vector.extract_strided_slice %256 {offsets = [4, 0, 0], sizes = [1, 8, 8], strides = [1, 1, 1]} : vector<8x8x8xf32> to vector<1x8x8xf32>
    %267 = vector.shape_cast %266 : vector<1x8x8xf32> to vector<8x8xf32>
    %268 = vector.extract_strided_slice %256 {offsets = [5, 0, 0], sizes = [1, 8, 8], strides = [1, 1, 1]} : vector<8x8x8xf32> to vector<1x8x8xf32>
    %269 = vector.shape_cast %268 : vector<1x8x8xf32> to vector<8x8xf32>
    %270 = vector.extract_strided_slice %256 {offsets = [6, 0, 0], sizes = [1, 8, 8], strides = [1, 1, 1]} : vector<8x8x8xf32> to vector<1x8x8xf32>
    %271 = vector.shape_cast %270 : vector<1x8x8xf32> to vector<8x8xf32>
    %272 = vector.extract_strided_slice %256 {offsets = [7, 0, 0], sizes = [1, 8, 8], strides = [1, 1, 1]} : vector<8x8x8xf32> to vector<1x8x8xf32>
    %273 = vector.shape_cast %272 : vector<1x8x8xf32> to vector<8x8xf32>
    %274 = tpu.concatenate %267, %269, %271, %273 in 1 : vector<8x8xf32>, vector<8x8xf32>, vector<8x8xf32>, vector<8x8xf32> -> vector<8x32xf32>
    %275 = tpu.concatenate %265, %274 in 0 : vector<8x32xf32>, vector<8x32xf32> -> vector<16x32xf32>
    %276 = arith.truncf %275 : vector<16x32xf32> to vector<16x32xbf16>
    %c1_47 = arith.constant 1 : index
    %c0_48 = arith.constant 0 : index
    %c0_49 = arith.constant 0 : index
    %277 = vector.load %arg4[%c1_47, %c0_48, %c0_49] : memref<2x32x32xbf16, #tpu.memory_space<vmem>>, vector<1x32x32xbf16>
    %278 = vector.shape_cast %277 : vector<1x32x32xbf16> to vector<32x32xbf16>
    %cst_50 = arith.constant dense<0.000000e+00> : vector<16x32xf32>
    %279 = tpu.matmul %276, %278, %cst_50 {dimension_numbers = #tpu.dot_dimension_numbers<[1], [0], [0], [1], [0, 0, 1, 1], [], []>} : vector<16x32xbf16>, vector<32x32xbf16>, vector<16x32xf32> -> vector<16x32xf32>
    %280 = vector.broadcast %174 : vector<1x32xf32> to vector<16x32xf32>
    %281 = arith.addf %279, %280 : vector<16x32xf32>
    %282 = arith.addf %171, %281 : vector<16x32xf32>
    %cst_51 = arith.constant dense<0.000000e+00> : vector<16xf32>
    %283 = vector.multi_reduction <add>, %282, %cst_51 [1] : vector<16x32xf32> to vector<16xf32>
    %284 = vector.shape_cast %283 : vector<16xf32> to vector<16x1xf32>
    %cst_52 = arith.constant 3.200000e+01 : f32
    %285 = vector.broadcast %cst_52 : f32 to vector<16x1xf32>
    %286 = arith.divf %284, %285 : vector<16x1xf32>
    %287 = vector.broadcast %286 : vector<16x1xf32> to vector<16x32xf32>
    %288 = arith.subf %282, %287 : vector<16x32xf32>
    %289 = arith.mulf %288, %288 : vector<16x32xf32>
    %cst_53 = arith.constant dense<0.000000e+00> : vector<16xf32>
    %290 = vector.multi_reduction <add>, %289, %cst_53 [1] : vector<16x32xf32> to vector<16xf32>
    %291 = vector.shape_cast %290 : vector<16xf32> to vector<16x1xf32>
    %cst_54 = arith.constant 3.200000e+01 : f32
    %292 = vector.broadcast %cst_54 : f32 to vector<16x1xf32>
    %293 = arith.divf %291, %292 : vector<16x1xf32>
    %294 = vector.broadcast %286 : vector<16x1xf32> to vector<16x32xf32>
    %295 = arith.subf %282, %294 : vector<16x32xf32>
    %cst_55 = arith.constant 9.99999974E-6 : f32
    %296 = vector.broadcast %cst_55 : f32 to vector<16x1xf32>
    %297 = arith.addf %293, %296 : vector<16x1xf32>
    %298 = math.rsqrt %297 : vector<16x1xf32>
    %299 = vector.broadcast %298 : vector<16x1xf32> to vector<16x32xf32>
    %300 = arith.mulf %295, %299 : vector<16x32xf32>
    %301 = vector.broadcast %175 : vector<1x32xf32> to vector<16x32xf32>
    %302 = arith.mulf %300, %301 : vector<16x32xf32>
    %303 = vector.broadcast %176 : vector<1x32xf32> to vector<16x32xf32>
    %304 = arith.addf %302, %303 : vector<16x32xf32>
    %305 = arith.truncf %304 : vector<16x32xf32> to vector<16x32xbf16>
    %c1_56 = arith.constant 1 : index
    %c0_57 = arith.constant 0 : index
    %c0_58 = arith.constant 0 : index
    %306 = vector.load %arg5[%c1_56, %c0_57, %c0_58] : memref<2x32x128xbf16, #tpu.memory_space<vmem>>, vector<1x32x128xbf16>
    %307 = vector.shape_cast %306 : vector<1x32x128xbf16> to vector<32x128xbf16>
    %cst_59 = arith.constant dense<0.000000e+00> : vector<16x128xf32>
    %308 = tpu.matmul %305, %307, %cst_59 {dimension_numbers = #tpu.dot_dimension_numbers<[1], [0], [0], [1], [0, 0, 1, 1], [], []>} : vector<16x32xbf16>, vector<32x128xbf16>, vector<16x128xf32> -> vector<16x128xf32>
    %309 = vector.broadcast %177 : vector<1x128xf32> to vector<16x128xf32>
    %310 = arith.addf %308, %309 : vector<16x128xf32>
    %cst_60 = arith.constant 0.000000e+00 : f32
    %311 = vector.broadcast %cst_60 : f32 to vector<16x128xf32>
    %312 = arith.maximumf %310, %311 : vector<16x128xf32>
    %313 = arith.truncf %312 : vector<16x128xf32> to vector<16x128xbf16>
    %c1_61 = arith.constant 1 : index
    %c0_62 = arith.constant 0 : index
    %c0_63 = arith.constant 0 : index
    %314 = vector.load %arg6[%c1_61, %c0_62, %c0_63] : memref<2x128x32xbf16, #tpu.memory_space<vmem>>, vector<1x128x32xbf16>
    %315 = vector.shape_cast %314 : vector<1x128x32xbf16> to vector<128x32xbf16>
    %cst_64 = arith.constant dense<0.000000e+00> : vector<16x32xf32>
    %316 = tpu.matmul %313, %315, %cst_64 {dimension_numbers = #tpu.dot_dimension_numbers<[1], [0], [0], [1], [0, 0, 1, 1], [], []>} : vector<16x128xbf16>, vector<128x32xbf16>, vector<16x32xf32> -> vector<16x32xf32>
    %317 = vector.broadcast %178 : vector<1x32xf32> to vector<16x32xf32>
    %318 = arith.addf %316, %317 : vector<16x32xf32>
    %319 = arith.addf %304, %318 : vector<16x32xf32>
    %cst_65 = arith.constant dense<0.000000e+00> : vector<16xf32>
    %320 = vector.multi_reduction <add>, %319, %cst_65 [1] : vector<16x32xf32> to vector<16xf32>
    %321 = vector.shape_cast %320 : vector<16xf32> to vector<16x1xf32>
    %cst_66 = arith.constant 3.200000e+01 : f32
    %322 = vector.broadcast %cst_66 : f32 to vector<16x1xf32>
    %323 = arith.divf %321, %322 : vector<16x1xf32>
    %324 = vector.broadcast %323 : vector<16x1xf32> to vector<16x32xf32>
    %325 = arith.subf %319, %324 : vector<16x32xf32>
    %326 = arith.mulf %325, %325 : vector<16x32xf32>
    %cst_67 = arith.constant dense<0.000000e+00> : vector<16xf32>
    %327 = vector.multi_reduction <add>, %326, %cst_67 [1] : vector<16x32xf32> to vector<16xf32>
    %328 = vector.shape_cast %327 : vector<16xf32> to vector<16x1xf32>
    %cst_68 = arith.constant 3.200000e+01 : f32
    %329 = vector.broadcast %cst_68 : f32 to vector<16x1xf32>
    %330 = arith.divf %328, %329 : vector<16x1xf32>
    %331 = vector.broadcast %323 : vector<16x1xf32> to vector<16x32xf32>
    %332 = arith.subf %319, %331 : vector<16x32xf32>
    %cst_69 = arith.constant 9.99999974E-6 : f32
    %333 = vector.broadcast %cst_69 : f32 to vector<16x1xf32>
    %334 = arith.addf %330, %333 : vector<16x1xf32>
    %335 = math.rsqrt %334 : vector<16x1xf32>
    %336 = vector.broadcast %335 : vector<16x1xf32> to vector<16x32xf32>
    %337 = arith.mulf %332, %336 : vector<16x32xf32>
    %338 = vector.broadcast %179 : vector<1x32xf32> to vector<16x32xf32>
    %339 = arith.mulf %337, %338 : vector<16x32xf32>
    %340 = vector.broadcast %180 : vector<1x32xf32> to vector<16x32xf32>
    %341 = arith.addf %339, %340 : vector<16x32xf32>
    %c0_70 = arith.constant 0 : index
    %c0_71 = arith.constant 0 : index
    %342 = vector.load %arg8[%c0_70, %c0_71] : memref<16x32xf32, #tpu.memory_space<vmem>>, vector<16x32xf32>
    tpu.vector_store %arg8[%c0_70, %c0_71], %341 {strides = array<i32>} : memref<16x32xf32, #tpu.memory_space<vmem>>, vector<16x32xf32>,
    return
  }
  func.func @transform_0(%arg0: i32) -> (i32, i32) {
    %c0_i32 = arith.constant 0 : i32
    %c0_i32_0 = arith.constant 0 : i32
    %c0_i32_1 = arith.constant 0 : i32
    return %c0_i32, %c0_i32_0 : i32, i32
  }
  func.func @transform_1(%arg0: i32) -> (i32, i32, i32) {
    %c0_i32 = arith.constant 0 : i32
    %c0_i32_0 = arith.constant 0 : i32
    %c0_i32_1 = arith.constant 0 : i32
    %c0_i32_2 = arith.constant 0 : i32
    return %c0_i32, %c0_i32_0, %c0_i32_1 : i32, i32, i32
  }
  func.func @transform_2(%arg0: i32) -> (i32, i32, i32) {
    %c0_i32 = arith.constant 0 : i32
    %c0_i32_0 = arith.constant 0 : i32
    %c0_i32_1 = arith.constant 0 : i32
    %c0_i32_2 = arith.constant 0 : i32
    return %c0_i32, %c0_i32_0, %c0_i32_1 : i32, i32, i32
  }
  func.func @transform_3(%arg0: i32) -> (i32, i32, i32) {
    %c0_i32 = arith.constant 0 : i32
    %c0_i32_0 = arith.constant 0 : i32
    %c0_i32_1 = arith.constant 0 : i32
    %c0_i32_2 = arith.constant 0 : i32
    return %c0_i32, %c0_i32_0, %c0_i32_1 : i32, i32, i32
  }
  func.func @transform_4(%arg0: i32) -> (i32, i32, i32) {
    %c0_i32 = arith.constant 0 : i32
    %c0_i32_0 = arith.constant 0 : i32
    %c0_i32_1 = arith.constant 0 : i32
    %c0_i32_2 = arith.constant 0 : i32
    return %c0_i32, %c0_i32_0, %c0_i32_1 : i32, i32, i32
  }
  func.func @transform_5(%arg0: i32) -> (i32, i32, i32) {
    %c0_i32 = arith.constant 0 : i32
    %c0_i32_0 = arith.constant 0 : i32
    %c0_i32_1 = arith.constant 0 : i32
    %c0_i32_2 = arith.constant 0 : i32
    return %c0_i32, %c0_i32_0, %c0_i32_1 : i32, i32, i32
  }
  func.func @transform_6(%arg0: i32) -> (i32, i32, i32) {
    %c0_i32 = arith.constant 0 : i32
    %c0_i32_0 = arith.constant 0 : i32
    %c0_i32_1 = arith.constant 0 : i32
    %c0_i32_2 = arith.constant 0 : i32
    return %c0_i32, %c0_i32_0, %c0_i32_1 : i32, i32, i32
  }
  func.func @transform_7(%arg0: i32) -> (i32, i32) {
    %c0_i32 = arith.constant 0 : i32
    %c0_i32_0 = arith.constant 0 : i32
    %c0_i32_1 = arith.constant 0 : i32
    return %c0_i32, %c0_i32_0 : i32, i32
  }
}

</mosaic_0001>

<llo_original>
// kernel: tpu_custom_call.1
$region0: #{tpu_custom_call.1}
  #allocation0 [shape = 'u32[]', space=smem, size = 0x4, offset = 0x4, fixed_abs, tag = 'smem constant byte address 0x4 - core index']
  #allocation1 [shape = 'u32[144,128]{1,0:T(1,128)}', space=vmem, size = 0x12000, scoped, tag = 'internal scratch']
  %s0 = inlined_call_operand.vmem [shape: f32[16,32], index: 0, kind: input, shape index: {}]
  %s1 = inlined_call_operand.vmem [shape: f32[8,1,8], index: 1, kind: input, shape index: {}]
  %s2 = inlined_call_operand.vmem [shape: bf16[2,32,96], index: 2, kind: input, shape index: {}]
  %s3 = inlined_call_operand.vmem [shape: bf16[2,32,32], index: 3, kind: input, shape index: {}]
  %s4 = inlined_call_operand.vmem [shape: bf16[2,32,128], index: 4, kind: input, shape index: {}]
  %s5 = inlined_call_operand.vmem [shape: bf16[2,128,32], index: 5, kind: input, shape index: {}]
  %s6 = inlined_call_operand.vmem [shape: f32[2,8,128], index: 6, kind: input, shape index: {}]
  %s7 = inlined_call_operand.hbm [shape: f32[16,32], index: 7, kind: output, shape index: {}]
  %s8 = sld [smem:[#allocation0]]
  $region38: #{tpu_custom_call.1} parent=0
    _
  %s10 = ssub.s32 1, %s8
  %s11 = scalar_select 0, %s10, %s8
  $region1: #{tpu_custom_call.1} parent=0
    #allocation2 [shape = 'u8[8192]{0}', space=vmem, size = 0x2000, scoped, tag = 'output window, operand 0, single buffered']
    #allocation3 [shape = 's32[1]{0}', space=sflag, size = 0x4, scoped, tag = 'scoped memory for tpu_custom_call.1']
    %12 = vsyncpa [#allocation3], 0
    // Predicated region
    $region2: #{tpu_custom_call.1} parent=1 // pred_check
      _
    $region3: #{tpu_custom_call.1} parent=1 // pred_check_branch
      %14 = sbr.rel (0) target = $region5
    $region4: #{tpu_custom_call.1} parent=1 // pred_region
      _
    $region5: #{tpu_custom_call.1} parent=1 // pred_fallthru
      _
    // Predicated region
    $region6: #{tpu_custom_call.1} parent=1 // pred_check
      _
    $region7: #{tpu_custom_call.1} parent=1 // pred_check_branch
      %16 = sbr.rel (0) target = $region9
    $region8: #{tpu_custom_call.1} parent=1 // pred_region
      _
    $region9: #{tpu_custom_call.1} parent=1 // pred_fallthru
      _
    // Predicated region
    $region10: #{tpu_custom_call.1} parent=1 // pred_check
      _
    $region11: #{tpu_custom_call.1} parent=1 // pred_check_branch
      %18 = sbr.rel (0) target = $region13
    $region12: #{tpu_custom_call.1} parent=1 // pred_region
      _
    $region13: #{tpu_custom_call.1} parent=1 // pred_fallthru
      _
    // Predicated region
    $region14: #{tpu_custom_call.1} parent=1 // pred_check
      _
    $region15: #{tpu_custom_call.1} parent=1 // pred_check_branch
      %20 = sbr.rel (0) target = $region17
    $region16: #{tpu_custom_call.1} parent=1 // pred_region
      _
    $region17: #{tpu_custom_call.1} parent=1 // pred_fallthru
      _
    // Predicated region
    $region18: #{tpu_custom_call.1} parent=1 // pred_check
      _
    $region19: #{tpu_custom_call.1} parent=1 // pred_check_branch
      %22 = sbr.rel (0) target = $region21
    $region20: #{tpu_custom_call.1} parent=1 // pred_region
      _
    $region21: #{tpu_custom_call.1} parent=1 // pred_fallthru
      _
    // Predicated region
    $region22: #{tpu_custom_call.1} parent=1 // pred_check
      _
    $region23: #{tpu_custom_call.1} parent=1 // pred_check_branch
      %24 = sbr.rel (0) target = $region25
    $region24: #{tpu_custom_call.1} parent=1 // pred_region
      _
    $region25: #{tpu_custom_call.1} parent=1 // pred_fallthru
      _
    // Predicated region
    $region26: #{tpu_custom_call.1} parent=1 // pred_check
      _
    $region27: #{tpu_custom_call.1} parent=1 // pred_check_branch
      %26 = sbr.rel (0) target = $region29
    $region28: #{tpu_custom_call.1} parent=1 // pred_region
      _
    $region29: #{tpu_custom_call.1} parent=1 // pred_fallthru
      _
    %v28 = vld [vmem:[%s0] sm:$0xff]
    %v29 = vld [vmem:[%s0 + $0x8] sm:$0xff]
    %v30 = vld [vmem:[%s1] sm:$0x1]
    %v31 = vld [vmem:[%s1 + $0x1] sm:$0x1]
    %v32 = vld [vmem:[%s1 + $0x2] sm:$0x1]
    %v33 = vld [vmem:[%s1 + $0x3] sm:$0x1]
    %v34 = vld [vmem:[%s1 + $0x4] sm:$0x1]
    %v35 = vld [vmem:[%s1 + $0x5] sm:$0x1]
    %v36 = vld [vmem:[%s1 + $0x6] sm:$0x1]
    %v37 = vld [vmem:[%s1 + $0x7] sm:$0x1]
    %v38 = vld [vmem:[%s6] sm:$0xff]
    %v39 = vpack.c.bf16 %v29, %v28
    %v40 = vld [vmem:[%s2] sm:$0xf]
    %v41 = vld [vmem:[%s2 + $0x4] sm:$0xf]
    %v42 = vld [vmem:[%s2 + $0x8] sm:$0xf]
    %v43 = vld [vmem:[%s2 + $0xc] sm:$0xf]
    %v44 = vlaneseq
    %v45 = vshrl.u32 %v44, 7
    %v46 = vsub.s32 7, %v45
    %v47 = vrot.slane %v38, %v46
    %v52 = vunpack.c.l.b16 %v40
    %v53 = vunpack.c.l.b16 %v41
    %v54 = vunpack.c.l.b16 %v42
    %v55 = vunpack.c.l.b16 %v43
    %v56 = vpack.c.b16 %v53, %v52
    %v57 = vpack.c.b16 %v55, %v54
    %vm60 = vcmask 261120
    %v62 = vsel %vm60, %v39, 0
    %64 = vmatprep.subr.bf16.mxu0 0
    %65 = vmatpush1.bf16.msra.mxu0 %v56
    %66 = vmatprep.subr.bf16.mxu0 0
    %67 = vmatpush1.bf16.msra.mxu0 %v57
    %68 = vmatprep.subr.bf16.mxu0 0
    %69 = vmatpush1.bf16.msra.mxu0 0
    %70 = vmatprep.subr.bf16.mxu0 0
    %71 = vmatpush1.bf16.msra.mxu0 0
    %72 = vmatprep.subr.bf16.mxu0 0
    %73 = vmatpush1.bf16.msra.mxu0 0
    %74 = vmatprep.subr.bf16.mxu0 0
    %75 = vmatpush1.bf16.msra.mxu0 0
    %76 = vmatprep.subr.bf16.mxu0 0
    %77 = vmatpush1.bf16.msra.mxu0 0
    %78 = vmatprep.subr.bf16.mxu0 0
    %79 = vmatpush1.bf16.msra.mxu0 0
    %80 = vmatprep.subr.bf16.mxu0 0
    %81 = vmatpush1.bf16.msra.mxu0 0
    %82 = vmatprep.subr.bf16.mxu0 0
    %83 = vmatpush1.bf16.msra.mxu0 0
    %84 = vmatprep.subr.bf16.mxu0 0
    %85 = vmatpush1.bf16.msra.mxu0 0
    %86 = vmatprep.subr.bf16.mxu0 0
    %87 = vmatpush1.bf16.msra.mxu0 0
    %88 = vmatprep.subr.bf16.mxu0 0
    %89 = vmatpush1.bf16.msra.mxu0 0
    %90 = vmatprep.subr.bf16.mxu0 0
    %91 = vmatpush1.bf16.msra.mxu0 0
    %92 = vmatprep.subr.bf16.mxu0 0
    %93 = vmatpush1.bf16.msra.mxu0 0
    %94 = vmatprep.subr.bf16.mxu0 0
    %95 = vmatpush1.bf16.msra.mxu0 0
    %96 = vmatprep.mubr.bf16.mxu0 0
    %97 = vmatmul.mubr.bf16.gmra.mrb[0].mxu0 %v62
    %v98 = vpop.f32.mrb[0].mxu0
    %v99 = vadd.f32 %v47, %v98
    %v100 = vpop.f32.mrb[0].mxu0
    %v101 = vpop.f32.mrb[0].mxu0
    %v102 = vadd.f32 %v47, %v101
    %v103 = vpop.f32.mrb[0].mxu0
    %104 = vdwg.mxu0
    %106 = vrot.lane.b32.xlu0 %v99, 120
    %v107 = vpop.permute.xlu0 %106
    %109 = vrot.lane.b32.xlu0 %v99, 112
    %v110 = vpop.permute.xlu0 %109
    %112 = vrot.lane.b32.xlu0 %v99, 104
    %v113 = vpop.permute.xlu0 %112
    %116 = vrot.lane.b32.xlu0 %v102, 120
    %v117 = vpop.permute.xlu0 %116
    %119 = vrot.lane.b32.xlu0 %v102, 112
    %v120 = vpop.permute.xlu0 %119
    %122 = vrot.lane.b32.xlu0 %v102, 104
    %v123 = vpop.permute.xlu0 %122
    %v125 = vpack.c.bf16 %v99, %v99
    %v126 = vpack.c.bf16 %v107, %v107
    %v127 = vpack.c.bf16 %v110, %v110
    %v128 = vpack.c.bf16 %v113, %v113
    %v129 = vpack.c.bf16 %v102, %v102
    %v130 = vpack.c.bf16 %v117, %v117
    %v131 = vpack.c.bf16 %v120, %v120
    %v132 = vpack.c.bf16 %v123, %v123
    %v141 = vlaneseq
    %v142 = vshrl.u32 %v141, 7
    %v143 = vsub.s32 0, %v142
    %v144 = vrot.slane %v30, %v143
    %v145 = vlaneseq
    %v146 = vshrl.u32 %v145, 7
    %v147 = vsub.s32 0, %v146
    %v148 = vrot.slane %v31, %v147
    %v149 = vlaneseq
    %v150 = vshrl.u32 %v149, 7
    %v151 = vsub.s32 0, %v150
    %v152 = vrot.slane %v32, %v151
    %v153 = vlaneseq
    %v154 = vshrl.u32 %v153, 7
    %v155 = vsub.s32 0, %v154
    %v156 = vrot.slane %v33, %v155
    %v157 = vlaneseq
    %v158 = vshrl.u32 %v157, 7
    %v159 = vsub.s32 0, %v158
    %v160 = vrot.slane %v34, %v159
    %v161 = vlaneseq
    %v162 = vshrl.u32 %v161, 7
    %v163 = vsub.s32 0, %v162
    %v164 = vrot.slane %v35, %v163
    %v165 = vlaneseq
    %v166 = vshrl.u32 %v165, 7
    %v167 = vsub.s32 0, %v166
    %v168 = vrot.slane %v36, %v167
    %v169 = vlaneseq
    %v170 = vshrl.u32 %v169, 7
    %v171 = vsub.s32 0, %v170
    %v172 = vrot.slane %v37, %v171
    %182 = vrot.lane.b32.xlu0 %v125, 96
    %v183 = vpop.permute.xlu0 %182
    %vm184 = vcmask 64512
    %v186 = vsel %vm184, %v125, 0
    %v189 = vsel %vm184, %v183, 0
    %191 = vmatprep.subr.bf16.mxu0 0
    %192 = vmatpush1.bf16.xpose.msra.mxu0 %v189
    %193 = vmatprep.subr.bf16.mxu0 0
    %194 = vmatpush1.bf16.xpose.msra.mxu0 0
    %195 = vmatprep.subr.bf16.mxu0 0
    %196 = vmatpush1.bf16.xpose.msra.mxu0 0
    %197 = vmatprep.subr.bf16.mxu0 0
    %198 = vmatpush1.bf16.xpose.msra.mxu0 0
    %199 = vmatprep.subr.bf16.mxu0 0
    %200 = vmatpush1.bf16.xpose.msra.mxu0 0
    %201 = vmatprep.subr.bf16.mxu0 0
    %202 = vmatpush1.bf16.xpose.msra.mxu0 0
    %203 = vmatprep.subr.bf16.mxu0 0
    %204 = vmatpush1.bf16.xpose.msra.mxu0 0
    %205 = vmatprep.subr.bf16.mxu0 0
    %206 = vmatpush1.bf16.xpose.msra.mxu0 0
    %207 = vmatprep.subr.bf16.mxu0 0
    %208 = vmatpush1.bf16.xpose.msra.mxu0 0
    %209 = vmatprep.subr.bf16.mxu0 0
    %210 = vmatpush1.bf16.xpose.msra.mxu0 0
    %211 = vmatprep.subr.bf16.mxu0 0
    %212 = vmatpush1.bf16.xpose.msra.mxu0 0
    %213 = vmatprep.subr.bf16.mxu0 0
    %214 = vmatpush1.bf16.xpose.msra.mxu0 0
    %215 = vmatprep.subr.bf16.mxu0 0
    %216 = vmatpush1.bf16.xpose.msra.mxu0 0
    %217 = vmatprep.subr.bf16.mxu0 0
    %218 = vmatpush1.bf16.xpose.msra.mxu0 0
    %219 = vmatprep.subr.bf16.mxu0 0
    %220 = vmatpush1.bf16.xpose.msra.mxu0 0
    %221 = vmatprep.subr.bf16.mxu0 0
    %222 = vmatpush1.bf16.xpose.msra.mxu0 0
    %223 = vmatprep.mubr.bf16.mxu0 0
    %224 = vmatmul.mubr.bf16.gmra.mrb[0].mxu0 %v186
    %v225 = vpop.f32.mrb[0].mxu0
    %v226 = vadd.f32 %v144, %v225
    %v227 = vpop.f32.mrb[0].mxu0
    %v228 = vpop.f32.mrb[0].mxu0
    %v229 = vpop.f32.mrb[0].mxu0
    %230 = vdwg.mxu0
    %232 = vrot.lane.b32.xlu0 %v126, 96
    %v233 = vpop.permute.xlu0 %232
    %v235 = vsel %vm184, %v126, 0
    %v238 = vsel %vm184, %v233, 0
    %240 = vmatprep.subr.bf16.mxu0 0
    %241 = vmatpush1.bf16.xpose.msra.mxu0 %v238
    %242 = vmatprep.subr.bf16.mxu0 0
    %243 = vmatpush1.bf16.xpose.msra.mxu0 0
    %244 = vmatprep.subr.bf16.mxu0 0
    %245 = vmatpush1.bf16.xpose.msra.mxu0 0
    %246 = vmatprep.subr.bf16.mxu0 0
    %247 = vmatpush1.bf16.xpose.msra.mxu0 0
    %248 = vmatprep.subr.bf16.mxu0 0
    %249 = vmatpush1.bf16.xpose.msra.mxu0 0
    %250 = vmatprep.subr.bf16.mxu0 0
    %251 = vmatpush1.bf16.xpose.msra.mxu0 0
    %252 = vmatprep.subr.bf16.mxu0 0
    %253 = vmatpush1.bf16.xpose.msra.mxu0 0
    %254 = vmatprep.subr.bf16.mxu0 0
    %255 = vmatpush1.bf16.xpose.msra.mxu0 0
    %256 = vmatprep.subr.bf16.mxu0 0
    %257 = vmatpush1.bf16.xpose.msra.mxu0 0
    %258 = vmatprep.subr.bf16.mxu0 0
    %259 = vmatpush1.bf16.xpose.msra.mxu0 0
    %260 = vmatprep.subr.bf16.mxu0 0
    %261 = vmatpush1.bf16.xpose.msra.mxu0 0
    %262 = vmatprep.subr.bf16.mxu0 0
    %263 = vmatpush1.bf16.xpose.msra.mxu0 0
    %264 = vmatprep.subr.bf16.mxu0 0
    %265 = vmatpush1.bf16.xpose.msra.mxu0 0
    %266 = vmatprep.subr.bf16.mxu0 0
    %267 = vmatpush1.bf16.xpose.msra.mxu0 0
    %268 = vmatprep.subr.bf16.mxu0 0
    %269 = vmatpush1.bf16.xpose.msra.mxu0 0
    %270 = vmatprep.subr.bf16.mxu0 0
    %271 = vmatpush1.bf16.xpose.msra.mxu0 0
    %272 = vmatprep.mubr.bf16.mxu0 0
    %273 = vmatmul.mubr.bf16.gmra.mrb[0].mxu0 %v235
    %v274 = vpop.f32.mrb[0].mxu0
    %v275 = vadd.f32 %v148, %v274
    %v276 = vpop.f32.mrb[0].mxu0
    %v277 = vpop.f32.mrb[0].mxu0
    %v278 = vpop.f32.mrb[0].mxu0
    %279 = vdwg.mxu0
    %281 = vrot.lane.b32.xlu0 %v127, 96
    %v282 = vpop.permute.xlu0 %281
    %v284 = vsel %vm184, %v127, 0
    %v287 = vsel %vm184, %v282, 0
    %289 = vmatprep.subr.bf16.mxu0 0
    %290 = vmatpush1.bf16.xpose.msra.mxu0 %v287
    %291 = vmatprep.subr.bf16.mxu0 0
    %292 = vmatpush1.bf16.xpose.msra.mxu0 0
    %293 = vmatprep.subr.bf16.mxu0 0
    %294 = vmatpush1.bf16.xpose.msra.mxu0 0
    %295 = vmatprep.subr.bf16.mxu0 0
    %296 = vmatpush1.bf16.xpose.msra.mxu0 0
    %297 = vmatprep.subr.bf16.mxu0 0
    %298 = vmatpush1.bf16.xpose.msra.mxu0 0
    %299 = vmatprep.subr.bf16.mxu0 0
    %300 = vmatpush1.bf16.xpose.msra.mxu0 0
    %301 = vmatprep.subr.bf16.mxu0 0
    %302 = vmatpush1.bf16.xpose.msra.mxu0 0
    %303 = vmatprep.subr.bf16.mxu0 0
    %304 = vmatpush1.bf16.xpose.msra.mxu0 0
    %305 = vmatprep.subr.bf16.mxu0 0
    %306 = vmatpush1.bf16.xpose.msra.mxu0 0
    %307 = vmatprep.subr.bf16.mxu0 0
    %308 = vmatpush1.bf16.xpose.msra.mxu0 0
    %309 = vmatprep.subr.bf16.mxu0 0
    %310 = vmatpush1.bf16.xpose.msra.mxu0 0
    %311 = vmatprep.subr.bf16.mxu0 0
    %312 = vmatpush1.bf16.xpose.msra.mxu0 0
    %313 = vmatprep.subr.bf16.mxu0 0
    %314 = vmatpush1.bf16.xpose.msra.mxu0 0
    %315 = vmatprep.subr.bf16.mxu0 0
    %316 = vmatpush1.bf16.xpose.msra.mxu0 0
    %317 = vmatprep.subr.bf16.mxu0 0
    %318 = vmatpush1.bf16.xpose.msra.mxu0 0
    %319 = vmatprep.subr.bf16.mxu0 0
    %320 = vmatpush1.bf16.xpose.msra.mxu0 0
    %321 = vmatprep.mubr.bf16.mxu0 0
    %322 = vmatmul.mubr.bf16.gmra.mrb[0].mxu0 %v284
    %v323 = vpop.f32.mrb[0].mxu0
    %v324 = vadd.f32 %v152, %v323
    %v325 = vpop.f32.mrb[0].mxu0
    %v326 = vpop.f32.mrb[0].mxu0
    %v327 = vpop.f32.mrb[0].mxu0
    %328 = vdwg.mxu0
    %330 = vrot.lane.b32.xlu0 %v128, 96
    %v331 = vpop.permute.xlu0 %330
    %v333 = vsel %vm184, %v128, 0
    %v336 = vsel %vm184, %v331, 0
    %338 = vmatprep.subr.bf16.mxu0 0
    %339 = vmatpush1.bf16.xpose.msra.mxu0 %v336
    %340 = vmatprep.subr.bf16.mxu0 0
    %341 = vmatpush1.bf16.xpose.msra.mxu0 0
    %342 = vmatprep.subr.bf16.mxu0 0
    %343 = vmatpush1.bf16.xpose.msra.mxu0 0
    %344 = vmatprep.subr.bf16.mxu0 0
    %345 = vmatpush1.bf16.xpose.msra.mxu0 0
    %346 = vmatprep.subr.bf16.mxu0 0
    %347 = vmatpush1.bf16.xpose.msra.mxu0 0
    %348 = vmatprep.subr.bf16.mxu0 0
    %349 = vmatpush1.bf16.xpose.msra.mxu0 0
    %350 = vmatprep.subr.bf16.mxu0 0
    %351 = vmatpush1.bf16.xpose.msra.mxu0 0
    %352 = vmatprep.subr.bf16.mxu0 0
    %353 = vmatpush1.bf16.xpose.msra.mxu0 0
    %354 = vmatprep.subr.bf16.mxu0 0
    %355 = vmatpush1.bf16.xpose.msra.mxu0 0
    %356 = vmatprep.subr.bf16.mxu0 0
    %357 = vmatpush1.bf16.xpose.msra.mxu0 0
    %358 = vmatprep.subr.bf16.mxu0 0
    %359 = vmatpush1.bf16.xpose.msra.mxu0 0
    %360 = vmatprep.subr.bf16.mxu0 0
    %361 = vmatpush1.bf16.xpose.msra.mxu0 0
    %362 = vmatprep.subr.bf16.mxu0 0
    %363 = vmatpush1.bf16.xpose.msra.mxu0 0
    %364 = vmatprep.subr.bf16.mxu0 0
    %365 = vmatpush1.bf16.xpose.msra.mxu0 0
    %366 = vmatprep.subr.bf16.mxu0 0
    %367 = vmatpush1.bf16.xpose.msra.mxu0 0
    %368 = vmatprep.subr.bf16.mxu0 0
    %369 = vmatpush1.bf16.xpose.msra.mxu0 0
    %370 = vmatprep.mubr.bf16.mxu0 0
    %371 = vmatmul.mubr.bf16.gmra.mrb[0].mxu0 %v333
    %v372 = vpop.f32.mrb[0].mxu0
    %v373 = vadd.f32 %v156, %v372
    %v374 = vpop.f32.mrb[0].mxu0
    %v375 = vpop.f32.mrb[0].mxu0
    %v376 = vpop.f32.mrb[0].mxu0
    %377 = vdwg.mxu0
    %379 = vrot.lane.b32.xlu0 %v129, 96
    %v380 = vpop.permute.xlu0 %379
    %v382 = vsel %vm184, %v129, 0
    %v385 = vsel %vm184, %v380, 0
    %387 = vmatprep.subr.bf16.mxu0 0
    %388 = vmatpush1.bf16.xpose.msra.mxu0 %v385
    %389 = vmatprep.subr.bf16.mxu0 0
    %390 = vmatpush1.bf16.xpose.msra.mxu0 0
    %391 = vmatprep.subr.bf16.mxu0 0
    %392 = vmatpush1.bf16.xpose.msra.mxu0 0
    %393 = vmatprep.subr.bf16.mxu0 0
    %394 = vmatpush1.bf16.xpose.msra.mxu0 0
    %395 = vmatprep.subr.bf16.mxu0 0
    %396 = vmatpush1.bf16.xpose.msra.mxu0 0
    %397 = vmatprep.subr.bf16.mxu0 0
    %398 = vmatpush1.bf16.xpose.msra.mxu0 0
    %399 = vmatprep.subr.bf16.mxu0 0
    %400 = vmatpush1.bf16.xpose.msra.mxu0 0
    %401 = vmatprep.subr.bf16.mxu0 0
    %402 = vmatpush1.bf16.xpose.msra.mxu0 0
    %403 = vmatprep.subr.bf16.mxu0 0
    %404 = vmatpush1.bf16.xpose.msra.mxu0 0
    %405 = vmatprep.subr.bf16.mxu0 0
    %406 = vmatpush1.bf16.xpose.msra.mxu0 0
    %407 = vmatprep.subr.bf16.mxu0 0
    %408 = vmatpush1.bf16.xpose.msra.mxu0 0
    %409 = vmatprep.subr.bf16.mxu0 0
    %410 = vmatpush1.bf16.xpose.msra.mxu0 0
    %411 = vmatprep.subr.bf16.mxu0 0
    %412 = vmatpush1.bf16.xpose.msra.mxu0 0
    %413 = vmatprep.subr.bf16.mxu0 0
    %414 = vmatpush1.bf16.xpose.msra.mxu0 0
    %415 = vmatprep.subr.bf16.mxu0 0
    %416 = vmatpush1.bf16.xpose.msra.mxu0 0
    %417 = vmatprep.subr.bf16.mxu0 0
    %418 = vmatpush1.bf16.xpose.msra.mxu0 0
    %419 = vmatprep.mubr.bf16.mxu0 0
    %420 = vmatmul.mubr.bf16.gmra.mrb[0].mxu0 %v382
    %v421 = vpop.f32.mrb[0].mxu0
    %v422 = vadd.f32 %v160, %v421
    %v423 = vpop.f32.mrb[0].mxu0
    %v424 = vpop.f32.mrb[0].mxu0
    %v425 = vpop.f32.mrb[0].mxu0
    %426 = vdwg.mxu0
    %428 = vrot.lane.b32.xlu0 %v130, 96
    %v429 = vpop.permute.xlu0 %428
    %v431 = vsel %vm184, %v130, 0
    %v434 = vsel %vm184, %v429, 0
    %436 = vmatprep.subr.bf16.mxu0 0
    %437 = vmatpush1.bf16.xpose.msra.mxu0 %v434
    %438 = vmatprep.subr.bf16.mxu0 0
    %439 = vmatpush1.bf16.xpose.msra.mxu0 0
    %440 = vmatprep.subr.bf16.mxu0 0
    %441 = vmatpush1.bf16.xpose.msra.mxu0 0
    %442 = vmatprep.subr.bf16.mxu0 0
    %443 = vmatpush1.bf16.xpose.msra.mxu0 0
    %444 = vmatprep.subr.bf16.mxu0 0
    %445 = vmatpush1.bf16.xpose.msra.mxu0 0
    %446 = vmatprep.subr.bf16.mxu0 0
    %447 = vmatpush1.bf16.xpose.msra.mxu0 0
    %448 = vmatprep.subr.bf16.mxu0 0
    %449 = vmatpush1.bf16.xpose.msra.mxu0 0
    %450 = vmatprep.subr.bf16.mxu0 0
    %451 = vmatpush1.bf16.xpose.msra.mxu0 0
    %452 = vmatprep.subr.bf16.mxu0 0
    %453 = vmatpush1.bf16.xpose.msra.mxu0 0
    %454 = vmatprep.subr.bf16.mxu0 0
    %455 = vmatpush1.bf16.xpose.msra.mxu0 0
    %456 = vmatprep.subr.bf16.mxu0 0
    %457 = vmatpush1.bf16.xpose.msra.mxu0 0
    %458 = vmatprep.subr.bf16.mxu0 0
    %459 = vmatpush1.bf16.xpose.msra.mxu0 0
    %460 = vmatprep.subr.bf16.mxu0 0
    %461 = vmatpush1.bf16.xpose.msra.mxu0 0
    %462 = vmatprep.subr.bf16.mxu0 0
    %463 = vmatpush1.bf16.xpose.msra.mxu0 0
    %464 = vmatprep.subr.bf16.mxu0 0
    %465 = vmatpush1.bf16.xpose.msra.mxu0 0
    %466 = vmatprep.subr.bf16.mxu0 0
    %467 = vmatpush1.bf16.xpose.msra.mxu0 0
    %468 = vmatprep.mubr.bf16.mxu0 0
    %469 = vmatmul.mubr.bf16.gmra.mrb[0].mxu0 %v431
    %v470 = vpop.f32.mrb[0].mxu0
    %v471 = vadd.f32 %v164, %v470
    %v472 = vpop.f32.mrb[0].mxu0
    %v473 = vpop.f32.mrb[0].mxu0
    %v474 = vpop.f32.mrb[0].mxu0
    %475 = vdwg.mxu0
    %477 = vrot.lane.b32.xlu0 %v131, 96
    %v478 = vpop.permute.xlu0 %477
    %v480 = vsel %vm184, %v131, 0
    %v483 = vsel %vm184, %v478, 0
    %485 = vmatprep.subr.bf16.mxu0 0
    %486 = vmatpush1.bf16.xpose.msra.mxu0 %v483
    %487 = vmatprep.subr.bf16.mxu0 0
    %488 = vmatpush1.bf16.xpose.msra.mxu0 0
    %489 = vmatprep.subr.bf16.mxu0 0
    %490 = vmatpush1.bf16.xpose.msra.mxu0 0
    %491 = vmatprep.subr.bf16.mxu0 0
    %492 = vmatpush1.bf16.xpose.msra.mxu0 0
    %493 = vmatprep.subr.bf16.mxu0 0
    %494 = vmatpush1.bf16.xpose.msra.mxu0 0
    %495 = vmatprep.subr.bf16.mxu0 0
    %496 = vmatpush1.bf16.xpose.msra.mxu0 0
    %497 = vmatprep.subr.bf16.mxu0 0
    %498 = vmatpush1.bf16.xpose.msra.mxu0 0
    %499 = vmatprep.subr.bf16.mxu0 0
    %500 = vmatpush1.bf16.xpose.msra.mxu0 0
    %501 = vmatprep.subr.bf16.mxu0 0
    %502 = vmatpush1.bf16.xpose.msra.mxu0 0
    %503 = vmatprep.subr.bf16.mxu0 0
    %504 = vmatpush1.bf16.xpose.msra.mxu0 0
    %505 = vmatprep.subr.bf16.mxu0 0
    %506 = vmatpush1.bf16.xpose.msra.mxu0 0
    %507 = vmatprep.subr.bf16.mxu0 0
    %508 = vmatpush1.bf16.xpose.msra.mxu0 0
    %509 = vmatprep.subr.bf16.mxu0 0
    %510 = vmatpush1.bf16.xpose.msra.mxu0 0
    %511 = vmatprep.subr.bf16.mxu0 0
    %512 = vmatpush1.bf16.xpose.msra.mxu0 0
    %513 = vmatprep.subr.bf16.mxu0 0
    %514 = vmatpush1.bf16.xpose.msra.mxu0 0
    %515 = vmatprep.subr.bf16.mxu0 0
    %516 = vmatpush1.bf16.xpose.msra.mxu0 0
    %517 = vmatprep.mubr.bf16.mxu0 0
    %518 = vmatmul.mubr.bf16.gmra.mrb[0].mxu0 %v480
    %v519 = vpop.f32.mrb[0].mxu0
    %v520 = vadd.f32 %v168, %v519
    %v521 = vpop.f32.mrb[0].mxu0
    %v522 = vpop.f32.mrb[0].mxu0
    %v523 = vpop.f32.mrb[0].mxu0
    %524 = vdwg.mxu0
    %526 = vrot.lane.b32.xlu0 %v132, 96
    %v527 = vpop.permute.xlu0 %526
    %v529 = vsel %vm184, %v132, 0
    %v532 = vsel %vm184, %v527, 0
    %534 = vmatprep.subr.bf16.mxu0 0
    %535 = vmatpush1.bf16.xpose.msra.mxu0 %v532
    %536 = vmatprep.subr.bf16.mxu0 0
    %537 = vmatpush1.bf16.xpose.msra.mxu0 0
    %538 = vmatprep.subr.bf16.mxu0 0
    %539 = vmatpush1.bf16.xpose.msra.mxu0 0
    %540 = vmatprep.subr.bf16.mxu0 0
    %541 = vmatpush1.bf16.xpose.msra.mxu0 0
    %542 = vmatprep.subr.bf16.mxu0 0
    %543 = vmatpush1.bf16.xpose.msra.mxu0 0
    %544 = vmatprep.subr.bf16.mxu0 0
    %545 = vmatpush1.bf16.xpose.msra.mxu0 0
    %546 = vmatprep.subr.bf16.mxu0 0
    %547 = vmatpush1.bf16.xpose.msra.mxu0 0
    %548 = vmatprep.subr.bf16.mxu0 0
    %549 = vmatpush1.bf16.xpose.msra.mxu0 0
    %550 = vmatprep.subr.bf16.mxu0 0
    %551 = vmatpush1.bf16.xpose.msra.mxu0 0
    %552 = vmatprep.subr.bf16.mxu0 0
    %553 = vmatpush1.bf16.xpose.msra.mxu0 0
    %554 = vmatprep.subr.bf16.mxu0 0
    %555 = vmatpush1.bf16.xpose.msra.mxu0 0
    %556 = vmatprep.subr.bf16.mxu0 0
    %557 = vmatpush1.bf16.xpose.msra.mxu0 0
    %558 = vmatprep.subr.bf16.mxu0 0
    %559 = vmatpush1.bf16.xpose.msra.mxu0 0
    %560 = vmatprep.subr.bf16.mxu0 0
    %561 = vmatpush1.bf16.xpose.msra.mxu0 0
    %562 = vmatprep.subr.bf16.mxu0 0
    %563 = vmatpush1.bf16.xpose.msra.mxu0 0
    %564 = vmatprep.subr.bf16.mxu0 0
    %565 = vmatpush1.bf16.xpose.msra.mxu0 0
    %566 = vmatprep.mubr.bf16.mxu0 0
    %567 = vmatmul.mubr.bf16.gmra.mrb[0].mxu0 %v529
    %v568 = vpop.f32.mrb[0].mxu0
    %v569 = vadd.f32 %v172, %v568
    %v570 = vpop.f32.mrb[0].mxu0
    %v571 = vpop.f32.mrb[0].mxu0
    %v572 = vpop.f32.mrb[0].mxu0
    %573 = vdwg.mxu0
    %v574 = vsel %vm184, %v226, -inf
    %575 = vmax.xlane.f32.xlu0 %v574
    %v576 = vpop.xlane.xlu0 %575
    %v577 = vsel %vm184, %v275, -inf
    %578 = vmax.xlane.f32.xlu0 %v577
    %v579 = vpop.xlane.xlu0 %578
    %v580 = vsel %vm184, %v324, -inf
    %581 = vmax.xlane.f32.xlu0 %v580
    %v582 = vpop.xlane.xlu0 %581
    %v583 = vsel %vm184, %v373, -inf
    %584 = vmax.xlane.f32.xlu0 %v583
    %v585 = vpop.xlane.xlu0 %584
    %v586 = vsel %vm184, %v422, -inf
    %587 = vmax.xlane.f32.xlu0 %v586
    %v588 = vpop.xlane.xlu0 %587
    %v589 = vsel %vm184, %v471, -inf
    %590 = vmax.xlane.f32.xlu0 %v589
    %v591 = vpop.xlane.xlu0 %590
    %v592 = vsel %vm184, %v520, -inf
    %593 = vmax.xlane.f32.xlu0 %v592
    %v594 = vpop.xlane.xlu0 %593
    %v595 = vsel %vm184, %v569, -inf
    %596 = vmax.xlane.f32.xlu0 %v595
    %v597 = vpop.xlane.xlu0 %596
    %v598 = vsub.f32 %v226, %v576
    %v599 = vsub.f32 %v275, %v579
    %v600 = vsub.f32 %v324, %v582
    %v601 = vsub.f32 %v373, %v585
    %v602 = vsub.f32 %v422, %v588
    %v603 = vsub.f32 %v471, %v591
    %v604 = vsub.f32 %v520, %v594
    %v605 = vsub.f32 %v569, %v597
    %v606 = vmul.f32 %v598, 1.442695
    %v607 = vpow.pop %v606
    %v608 = vmul.f32 %v599, 1.442695
    %v609 = vpow.pop %v608
    %v610 = vmul.f32 %v600, 1.442695
    %v611 = vpow.pop %v610
    %v612 = vmul.f32 %v601, 1.442695
    %v613 = vpow.pop %v612
    %v614 = vmul.f32 %v602, 1.442695
    %v615 = vpow.pop %v614
    %v616 = vmul.f32 %v603, 1.442695
    %v617 = vpow.pop %v616
    %v618 = vmul.f32 %v604, 1.442695
    %v619 = vpow.pop %v618
    %v620 = vmul.f32 %v605, 1.442695
    %v621 = vpow.pop %v620
    %v622 = vsel %vm184, %v607, 0.0
    %623 = vadd.xlane.f32.xlu0 %v622
    %v624 = vpop.xlane.xlu0 %623
    %v625 = vsel %vm184, %v609, 0.0
    %626 = vadd.xlane.f32.xlu0 %v625
    %v627 = vpop.xlane.xlu0 %626
    %v628 = vsel %vm184, %v611, 0.0
    %629 = vadd.xlane.f32.xlu0 %v628
    %v630 = vpop.xlane.xlu0 %629
    %v631 = vsel %vm184, %v613, 0.0
    %632 = vadd.xlane.f32.xlu0 %v631
    %v633 = vpop.xlane.xlu0 %632
    %v634 = vsel %vm184, %v615, 0.0
    %635 = vadd.xlane.f32.xlu0 %v634
    %v636 = vpop.xlane.xlu0 %635
    %v637 = vsel %vm184, %v617, 0.0
    %638 = vadd.xlane.f32.xlu0 %v637
    %v639 = vpop.xlane.xlu0 %638
    %v640 = vsel %vm184, %v619, 0.0
    %641 = vadd.xlane.f32.xlu0 %v640
    %v642 = vpop.xlane.xlu0 %641
    %v643 = vsel %vm184, %v621, 0.0
    %644 = vadd.xlane.f32.xlu0 %v643
    %v645 = vpop.xlane.xlu0 %644
    %v646 = vrcp.pop %v624
    %v647 = vrcp.pop %v627
    %v648 = vrcp.pop %v630
    %v649 = vrcp.pop %v633
    %v650 = vrcp.pop %v636
    %v651 = vrcp.pop %v639
    %v652 = vrcp.pop %v642
    %v653 = vrcp.pop %v645
    %v654 = vmul.f32 %v607, %v646
    %v655 = vmul.f32 %v609, %v647
    %v656 = vmul.f32 %v611, %v648
    %v657 = vmul.f32 %v613, %v649
    %v658 = vmul.f32 %v615, %v650
    %v659 = vmul.f32 %v617, %v651
    %v660 = vmul.f32 %v619, %v652
    %v661 = vmul.f32 %v621, %v653
    %v662 = vpack.c.bf16 %v654, %v654
    %v663 = vpack.c.bf16 %v655, %v655
    %v664 = vpack.c.bf16 %v656, %v656
    %v665 = vpack.c.bf16 %v657, %v657
    %v666 = vpack.c.bf16 %v658, %v658
    %v667 = vpack.c.bf16 %v659, %v659
    %v668 = vpack.c.bf16 %v660, %v660
    %v669 = vpack.c.bf16 %v661, %v661
    %670 = vrot.lane.b32.xlu0 %v125, 64
    %v671 = vpop.permute.xlu0 %670
    %v673 = vsel %vm184, %v662, 0
    %vm675 = vcmask 1043456
    %v677 = vsel %vm675, %v671, 0
    %679 = vmatprep.subr.bf16.mxu0 0
    %680 = vmatpush1.bf16.msra.mxu0 %v677
    %681 = vmatprep.subr.bf16.mxu0 0
    %682 = vmatpush1.bf16.msra.mxu0 0
    %683 = vmatprep.subr.bf16.mxu0 0
    %684 = vmatpush1.bf16.msra.mxu0 0
    %685 = vmatprep.subr.bf16.mxu0 0
    %686 = vmatpush1.bf16.msra.mxu0 0
    %687 = vmatprep.subr.bf16.mxu0 0
    %688 = vmatpush1.bf16.msra.mxu0 0
    %689 = vmatprep.subr.bf16.mxu0 0
    %690 = vmatpush1.bf16.msra.mxu0 0
    %691 = vmatprep.subr.bf16.mxu0 0
    %692 = vmatpush1.bf16.msra.mxu0 0
    %693 = vmatprep.subr.bf16.mxu0 0
    %694 = vmatpush1.bf16.msra.mxu0 0
    %695 = vmatprep.subr.bf16.mxu0 0
    %696 = vmatpush1.bf16.msra.mxu0 0
    %697 = vmatprep.subr.bf16.mxu0 0
    %698 = vmatpush1.bf16.msra.mxu0 0
    %699 = vmatprep.subr.bf16.mxu0 0
    %700 = vmatpush1.bf16.msra.mxu0 0
    %701 = vmatprep.subr.bf16.mxu0 0
    %702 = vmatpush1.bf16.msra.mxu0 0
    %703 = vmatprep.subr.bf16.mxu0 0
    %704 = vmatpush1.bf16.msra.mxu0 0
    %705 = vmatprep.subr.bf16.mxu0 0
    %706 = vmatpush1.bf16.msra.mxu0 0
    %707 = vmatprep.subr.bf16.mxu0 0
    %708 = vmatpush1.bf16.msra.mxu0 0
    %709 = vmatprep.subr.bf16.mxu0 0
    %710 = vmatpush1.bf16.msra.mxu0 0
    %711 = vmatprep.mubr.bf16.mxu0 0
    %712 = vmatmul.mubr.bf16.gmra.mrb[0].mxu0 %v673
    %v713 = vpop.f32.mrb[0].mxu0
    %v714 = vadd.f32 0.0, %v713
    %v715 = vpop.f32.mrb[0].mxu0
    %v716 = vpop.f32.mrb[0].mxu0
    %v717 = vpop.f32.mrb[0].mxu0
    %718 = vdwg.mxu0
    %719 = vrot.lane.b32.xlu0 %v126, 64
    %v720 = vpop.permute.xlu0 %719
    %v722 = vsel %vm184, %v663, 0
    %v725 = vsel %vm675, %v720, 0
    %727 = vmatprep.subr.bf16.mxu0 0
    %728 = vmatpush1.bf16.msra.mxu0 %v725
    %729 = vmatprep.subr.bf16.mxu0 0
    %730 = vmatpush1.bf16.msra.mxu0 0
    %731 = vmatprep.subr.bf16.mxu0 0
    %732 = vmatpush1.bf16.msra.mxu0 0
    %733 = vmatprep.subr.bf16.mxu0 0
    %734 = vmatpush1.bf16.msra.mxu0 0
    %735 = vmatprep.subr.bf16.mxu0 0
    %736 = vmatpush1.bf16.msra.mxu0 0
    %737 = vmatprep.subr.bf16.mxu0 0
    %738 = vmatpush1.bf16.msra.mxu0 0
    %739 = vmatprep.subr.bf16.mxu0 0
    %740 = vmatpush1.bf16.msra.mxu0 0
    %741 = vmatprep.subr.bf16.mxu0 0
    %742 = vmatpush1.bf16.msra.mxu0 0
    %743 = vmatprep.subr.bf16.mxu0 0
    %744 = vmatpush1.bf16.msra.mxu0 0
    %745 = vmatprep.subr.bf16.mxu0 0
    %746 = vmatpush1.bf16.msra.mxu0 0
    %747 = vmatprep.subr.bf16.mxu0 0
    %748 = vmatpush1.bf16.msra.mxu0 0
    %749 = vmatprep.subr.bf16.mxu0 0
    %750 = vmatpush1.bf16.msra.mxu0 0
    %751 = vmatprep.subr.bf16.mxu0 0
    %752 = vmatpush1.bf16.msra.mxu0 0
    %753 = vmatprep.subr.bf16.mxu0 0
    %754 = vmatpush1.bf16.msra.mxu0 0
    %755 = vmatprep.subr.bf16.mxu0 0
    %756 = vmatpush1.bf16.msra.mxu0 0
    %757 = vmatprep.subr.bf16.mxu0 0
    %758 = vmatpush1.bf16.msra.mxu0 0
    %759 = vmatprep.mubr.bf16.mxu0 0
    %760 = vmatmul.mubr.bf16.gmra.mrb[0].mxu0 %v722
    %v761 = vpop.f32.mrb[0].mxu0
    %v762 = vadd.f32 0.0, %v761
    %v763 = vpop.f32.mrb[0].mxu0
    %v764 = vpop.f32.mrb[0].mxu0
    %v765 = vpop.f32.mrb[0].mxu0
    %766 = vdwg.mxu0
    %767 = vrot.lane.b32.xlu0 %v127, 64
    %v768 = vpop.permute.xlu0 %767
    %v770 = vsel %vm184, %v664, 0
    %v773 = vsel %vm675, %v768, 0
    %775 = vmatprep.subr.bf16.mxu0 0
    %776 = vmatpush1.bf16.msra.mxu0 %v773
    %777 = vmatprep.subr.bf16.mxu0 0
    %778 = vmatpush1.bf16.msra.mxu0 0
    %779 = vmatprep.subr.bf16.mxu0 0
    %780 = vmatpush1.bf16.msra.mxu0 0
    %781 = vmatprep.subr.bf16.mxu0 0
    %782 = vmatpush1.bf16.msra.mxu0 0
    %783 = vmatprep.subr.bf16.mxu0 0
    %784 = vmatpush1.bf16.msra.mxu0 0
    %785 = vmatprep.subr.bf16.mxu0 0
    %786 = vmatpush1.bf16.msra.mxu0 0
    %787 = vmatprep.subr.bf16.mxu0 0
    %788 = vmatpush1.bf16.msra.mxu0 0
    %789 = vmatprep.subr.bf16.mxu0 0
    %790 = vmatpush1.bf16.msra.mxu0 0
    %791 = vmatprep.subr.bf16.mxu0 0
    %792 = vmatpush1.bf16.msra.mxu0 0
    %793 = vmatprep.subr.bf16.mxu0 0
    %794 = vmatpush1.bf16.msra.mxu0 0
    %795 = vmatprep.subr.bf16.mxu0 0
    %796 = vmatpush1.bf16.msra.mxu0 0
    %797 = vmatprep.subr.bf16.mxu0 0
    %798 = vmatpush1.bf16.msra.mxu0 0
    %799 = vmatprep.subr.bf16.mxu0 0
    %800 = vmatpush1.bf16.msra.mxu0 0
    %801 = vmatprep.subr.bf16.mxu0 0
    %802 = vmatpush1.bf16.msra.mxu0 0
    %803 = vmatprep.subr.bf16.mxu0 0
    %804 = vmatpush1.bf16.msra.mxu0 0
    %805 = vmatprep.subr.bf16.mxu0 0
    %806 = vmatpush1.bf16.msra.mxu0 0
    %807 = vmatprep.mubr.bf16.mxu0 0
    %808 = vmatmul.mubr.bf16.gmra.mrb[0].mxu0 %v770
    %v809 = vpop.f32.mrb[0].mxu0
    %v810 = vadd.f32 0.0, %v809
    %v811 = vpop.f32.mrb[0].mxu0
    %v812 = vpop.f32.mrb[0].mxu0
    %v813 = vpop.f32.mrb[0].mxu0
    %814 = vdwg.mxu0
    %815 = vrot.lane.b32.xlu0 %v128, 64
    %v816 = vpop.permute.xlu0 %815
    %v818 = vsel %vm184, %v665, 0
    %v821 = vsel %vm675, %v816, 0
    %823 = vmatprep.subr.bf16.mxu0 0
    %824 = vmatpush1.bf16.msra.mxu0 %v821
    %825 = vmatprep.subr.bf16.mxu0 0
    %826 = vmatpush1.bf16.msra.mxu0 0
    %827 = vmatprep.subr.bf16.mxu0 0
    %828 = vmatpush1.bf16.msra.mxu0 0
    %829 = vmatprep.subr.bf16.mxu0 0
    %830 = vmatpush1.bf16.msra.mxu0 0
    %831 = vmatprep.subr.bf16.mxu0 0
    %832 = vmatpush1.bf16.msra.mxu0 0
    %833 = vmatprep.subr.bf16.mxu0 0
    %834 = vmatpush1.bf16.msra.mxu0 0
    %835 = vmatprep.subr.bf16.mxu0 0
    %836 = vmatpush1.bf16.msra.mxu0 0
    %837 = vmatprep.subr.bf16.mxu0 0
    %838 = vmatpush1.bf16.msra.mxu0 0
    %839 = vmatprep.subr.bf16.mxu0 0
    %840 = vmatpush1.bf16.msra.mxu0 0
    %841 = vmatprep.subr.bf16.mxu0 0
    %842 = vmatpush1.bf16.msra.mxu0 0
    %843 = vmatprep.subr.bf16.mxu0 0
    %844 = vmatpush1.bf16.msra.mxu0 0
    %845 = vmatprep.subr.bf16.mxu0 0
    %846 = vmatpush1.bf16.msra.mxu0 0
    %847 = vmatprep.subr.bf16.mxu0 0
    %848 = vmatpush1.bf16.msra.mxu0 0
    %849 = vmatprep.subr.bf16.mxu0 0
    %850 = vmatpush1.bf16.msra.mxu0 0
    %851 = vmatprep.subr.bf16.mxu0 0
    %852 = vmatpush1.bf16.msra.mxu0 0
    %853 = vmatprep.subr.bf16.mxu0 0
    %854 = vmatpush1.bf16.msra.mxu0 0
    %855 = vmatprep.mubr.bf16.mxu0 0
    %856 = vmatmul.mubr.bf16.gmra.mrb[0].mxu0 %v818
    %v857 = vpop.f32.mrb[0].mxu0
    %v858 = vadd.f32 0.0, %v857
    %v859 = vpop.f32.mrb[0].mxu0
    %v860 = vpop.f32.mrb[0].mxu0
    %v861 = vpop.f32.mrb[0].mxu0
    %862 = vdwg.mxu0
    %863 = vrot.lane.b32.xlu0 %v129, 64
    %v864 = vpop.permute.xlu0 %863
    %v866 = vsel %vm184, %v666, 0
    %v869 = vsel %vm675, %v864, 0
    %871 = vmatprep.subr.bf16.mxu0 0
    %872 = vmatpush1.bf16.msra.mxu0 %v869
    %873 = vmatprep.subr.bf16.mxu0 0
    %874 = vmatpush1.bf16.msra.mxu0 0
    %875 = vmatprep.subr.bf16.mxu0 0
    %876 = vmatpush1.bf16.msra.mxu0 0
    %877 = vmatprep.subr.bf16.mxu0 0
    %878 = vmatpush1.bf16.msra.mxu0 0
    %879 = vmatprep.subr.bf16.mxu0 0
    %880 = vmatpush1.bf16.msra.mxu0 0
    %881 = vmatprep.subr.bf16.mxu0 0
    %882 = vmatpush1.bf16.msra.mxu0 0
    %883 = vmatprep.subr.bf16.mxu0 0
    %884 = vmatpush1.bf16.msra.mxu0 0
    %885 = vmatprep.subr.bf16.mxu0 0
    %886 = vmatpush1.bf16.msra.mxu0 0
    %887 = vmatprep.subr.bf16.mxu0 0
    %888 = vmatpush1.bf16.msra.mxu0 0
    %889 = vmatprep.subr.bf16.mxu0 0
    %890 = vmatpush1.bf16.msra.mxu0 0
    %891 = vmatprep.subr.bf16.mxu0 0
    %892 = vmatpush1.bf16.msra.mxu0 0
    %893 = vmatprep.subr.bf16.mxu0 0
    %894 = vmatpush1.bf16.msra.mxu0 0
    %895 = vmatprep.subr.bf16.mxu0 0
    %896 = vmatpush1.bf16.msra.mxu0 0
    %897 = vmatprep.subr.bf16.mxu0 0
    %898 = vmatpush1.bf16.msra.mxu0 0
    %899 = vmatprep.subr.bf16.mxu0 0
    %900 = vmatpush1.bf16.msra.mxu0 0
    %901 = vmatprep.subr.bf16.mxu0 0
    %902 = vmatpush1.bf16.msra.mxu0 0
    %903 = vmatprep.mubr.bf16.mxu0 0
    %904 = vmatmul.mubr.bf16.gmra.mrb[0].mxu0 %v866
    %v905 = vpop.f32.mrb[0].mxu0
    %v906 = vadd.f32 0.0, %v905
    %v907 = vpop.f32.mrb[0].mxu0
    %v908 = vpop.f32.mrb[0].mxu0
    %v909 = vpop.f32.mrb[0].mxu0
    %910 = vdwg.mxu0
    %911 = vrot.lane.b32.xlu0 %v130, 64
    %v912 = vpop.permute.xlu0 %911
    %v914 = vsel %vm184, %v667, 0
    %v917 = vsel %vm675, %v912, 0
    %919 = vmatprep.subr.bf16.mxu0 0
    %920 = vmatpush1.bf16.msra.mxu0 %v917
    %921 = vmatprep.subr.bf16.mxu0 0
    %922 = vmatpush1.bf16.msra.mxu0 0
    %923 = vmatprep.subr.bf16.mxu0 0
    %924 = vmatpush1.bf16.msra.mxu0 0
    %925 = vmatprep.subr.bf16.mxu0 0
    %926 = vmatpush1.bf16.msra.mxu0 0
    %927 = vmatprep.subr.bf16.mxu0 0
    %928 = vmatpush1.bf16.msra.mxu0 0
    %929 = vmatprep.subr.bf16.mxu0 0
    %930 = vmatpush1.bf16.msra.mxu0 0
    %931 = vmatprep.subr.bf16.mxu0 0
    %932 = vmatpush1.bf16.msra.mxu0 0
    %933 = vmatprep.subr.bf16.mxu0 0
    %934 = vmatpush1.bf16.msra.mxu0 0
    %935 = vmatprep.subr.bf16.mxu0 0
    %936 = vmatpush1.bf16.msra.mxu0 0
    %937 = vmatprep.subr.bf16.mxu0 0
    %938 = vmatpush1.bf16.msra.mxu0 0
    %939 = vmatprep.subr.bf16.mxu0 0
    %940 = vmatpush1.bf16.msra.mxu0 0
    %941 = vmatprep.subr.bf16.mxu0 0
    %942 = vmatpush1.bf16.msra.mxu0 0
    %943 = vmatprep.subr.bf16.mxu0 0
    %944 = vmatpush1.bf16.msra.mxu0 0
    %945 = vmatprep.subr.bf16.mxu0 0
    %946 = vmatpush1.bf16.msra.mxu0 0
    %947 = vmatprep.subr.bf16.mxu0 0
    %948 = vmatpush1.bf16.msra.mxu0 0
    %949 = vmatprep.subr.bf16.mxu0 0
    %950 = vmatpush1.bf16.msra.mxu0 0
    %951 = vmatprep.mubr.bf16.mxu0 0
    %952 = vmatmul.mubr.bf16.gmra.mrb[0].mxu0 %v914
    %v953 = vpop.f32.mrb[0].mxu0
    %v954 = vadd.f32 0.0, %v953
    %v955 = vpop.f32.mrb[0].mxu0
    %v956 = vpop.f32.mrb[0].mxu0
    %v957 = vpop.f32.mrb[0].mxu0
    %958 = vdwg.mxu0
    %959 = vrot.lane.b32.xlu0 %v131, 64
    %v960 = vpop.permute.xlu0 %959
    %v962 = vsel %vm184, %v668, 0
    %v965 = vsel %vm675, %v960, 0
    %967 = vmatprep.subr.bf16.mxu0 0
    %968 = vmatpush1.bf16.msra.mxu0 %v965
    %969 = vmatprep.subr.bf16.mxu0 0
    %970 = vmatpush1.bf16.msra.mxu0 0
    %971 = vmatprep.subr.bf16.mxu0 0
    %972 = vmatpush1.bf16.msra.mxu0 0
    %973 = vmatprep.subr.bf16.mxu0 0
    %974 = vmatpush1.bf16.msra.mxu0 0
    %975 = vmatprep.subr.bf16.mxu0 0
    %976 = vmatpush1.bf16.msra.mxu0 0
    %977 = vmatprep.subr.bf16.mxu0 0
    %978 = vmatpush1.bf16.msra.mxu0 0
    %979 = vmatprep.subr.bf16.mxu0 0
    %980 = vmatpush1.bf16.msra.mxu0 0
    %981 = vmatprep.subr.bf16.mxu0 0
    %982 = vmatpush1.bf16.msra.mxu0 0
    %983 = vmatprep.subr.bf16.mxu0 0
    %984 = vmatpush1.bf16.msra.mxu0 0
    %985 = vmatprep.subr.bf16.mxu0 0
    %986 = vmatpush1.bf16.msra.mxu0 0
    %987 = vmatprep.subr.bf16.mxu0 0
    %988 = vmatpush1.bf16.msra.mxu0 0
    %989 = vmatprep.subr.bf16.mxu0 0
    %990 = vmatpush1.bf16.msra.mxu0 0
    %991 = vmatprep.subr.bf16.mxu0 0
    %992 = vmatpush1.bf16.msra.mxu0 0
    %993 = vmatprep.subr.bf16.mxu0 0
    %994 = vmatpush1.bf16.msra.mxu0 0
    %995 = vmatprep.subr.bf16.mxu0 0
    %996 = vmatpush1.bf16.msra.mxu0 0
    %997 = vmatprep.subr.bf16.mxu0 0
    %998 = vmatpush1.bf16.msra.mxu0 0
    %999 = vmatprep.mubr.bf16.mxu0 0
    %1000 = vmatmul.mubr.bf16.gmra.mrb[0].mxu0 %v962
    %v1001 = vpop.f32.mrb[0].mxu0
    %v1002 = vadd.f32 0.0, %v1001
    %v1003 = vpop.f32.mrb[0].mxu0
    %v1004 = vpop.f32.mrb[0].mxu0
    %v1005 = vpop.f32.mrb[0].mxu0
    %1006 = vdwg.mxu0
    %1007 = vrot.lane.b32.xlu0 %v132, 64
    %v1008 = vpop.permute.xlu0 %1007
    %v1010 = vsel %vm184, %v669, 0
    %v1013 = vsel %vm675, %v1008, 0
    %1015 = vmatprep.subr.bf16.mxu0 0
    %1016 = vmatpush1.bf16.msra.mxu0 %v1013
    %1017 = vmatprep.subr.bf16.mxu0 0
    %1018 = vmatpush1.bf16.msra.mxu0 0
    %1019 = vmatprep.subr.bf16.mxu0 0
    %1020 = vmatpush1.bf16.msra.mxu0 0
    %1021 = vmatprep.subr.bf16.mxu0 0
    %1022 = vmatpush1.bf16.msra.mxu0 0
    %1023 = vmatprep.subr.bf16.mxu0 0
    %1024 = vmatpush1.bf16.msra.mxu0 0
    %1025 = vmatprep.subr.bf16.mxu0 0
    %1026 = vmatpush1.bf16.msra.mxu0 0
    %1027 = vmatprep.subr.bf16.mxu0 0
    %1028 = vmatpush1.bf16.msra.mxu0 0
    %1029 = vmatprep.subr.bf16.mxu0 0
    %1030 = vmatpush1.bf16.msra.mxu0 0
    %1031 = vmatprep.subr.bf16.mxu0 0
    %1032 = vmatpush1.bf16.msra.mxu0 0
    %1033 = vmatprep.subr.bf16.mxu0 0
    %1034 = vmatpush1.bf16.msra.mxu0 0
    %1035 = vmatprep.subr.bf16.mxu0 0
    %1036 = vmatpush1.bf16.msra.mxu0 0
    %1037 = vmatprep.subr.bf16.mxu0 0
    %1038 = vmatpush1.bf16.msra.mxu0 0
    %1039 = vmatprep.subr.bf16.mxu0 0
    %1040 = vmatpush1.bf16.msra.mxu0 0
    %1041 = vmatprep.subr.bf16.mxu0 0
    %1042 = vmatpush1.bf16.msra.mxu0 0
    %1043 = vmatprep.subr.bf16.mxu0 0
    %1044 = vmatpush1.bf16.msra.mxu0 0
    %1045 = vmatprep.subr.bf16.mxu0 0
    %1046 = vmatpush1.bf16.msra.mxu0 0
    %1047 = vmatprep.mubr.bf16.mxu0 0
    %1048 = vmatmul.mubr.bf16.gmra.mrb[0].mxu0 %v1010
    %v1049 = vpop.f32.mrb[0].mxu0
    %v1050 = vadd.f32 0.0, %v1049
    %v1051 = vpop.f32.mrb[0].mxu0
    %v1052 = vpop.f32.mrb[0].mxu0
    %v1053 = vpop.f32.mrb[0].mxu0
    %1054 = vdwg.mxu0
    %1056 = vrot.lane.b32.xlu0 %v762, 8
    %v1057 = vpop.permute.xlu0 %1056
    %1060 = vrot.lane.b32.xlu0 %v810, 16
    %v1061 = vpop.permute.xlu0 %1060
    %1064 = vrot.lane.b32.xlu0 %v858, 24
    %v1065 = vpop.permute.xlu0 %1064
    %v1067 = vsel %vm184, %v714, %v1057
    %vm1068 = vcmask 130048
    %v1069 = vsel %vm1068, %v1067, %v1061
    %vm1070 = vcmask 195584
    %v1071 = vsel %vm1070, %v1069, %v1065
    %1073 = vrot.lane.b32.xlu0 %v954, 8
    %v1074 = vpop.permute.xlu0 %1073
    %1077 = vrot.lane.b32.xlu0 %v1002, 16
    %v1078 = vpop.permute.xlu0 %1077
    %1081 = vrot.lane.b32.xlu0 %v1050, 24
    %v1082 = vpop.permute.xlu0 %1081
    %v1084 = vsel %vm184, %v906, %v1074
    %v1085 = vsel %vm1068, %v1084, %v1078
    %v1086 = vsel %vm1070, %v1085, %v1082
    %v1087 = vpack.c.bf16 %v1086, %v1071
    %v1088 = vld [vmem:[%s3] sm:$0xf]
    %v1089 = vld [vmem:[%s3 + $0x4] sm:$0xf]
    %v1090 = vld [vmem:[%s3 + $0x8] sm:$0xf]
    %v1091 = vld [vmem:[%s3 + $0xc] sm:$0xf]
    %v1092 = vlaneseq
    %v1093 = vshrl.u32 %v1092, 7
    %v1094 = vsub.s32 0, %v1093
    %v1095 = vrot.slane %v38, %v1094
    %v1100 = vunpack.c.l.b16 %v1088
    %v1101 = vunpack.c.l.b16 %v1089
    %v1102 = vunpack.c.l.b16 %v1090
    %v1103 = vunpack.c.l.b16 %v1091
    %v1104 = vpack.c.b16 %v1101, %v1100
    %v1105 = vpack.c.b16 %v1103, %v1102
    %v1109 = vsel %vm60, %v1087, 0
    %1111 = vmatprep.subr.bf16.mxu0 0
    %1112 = vmatpush1.bf16.msra.mxu0 %v1104
    %1113 = vmatprep.subr.bf16.mxu0 0
    %1114 = vmatpush1.bf16.msra.mxu0 %v1105
    %1115 = vmatprep.subr.bf16.mxu0 0
    %1116 = vmatpush1.bf16.msra.mxu0 0
    %1117 = vmatprep.subr.bf16.mxu0 0
    %1118 = vmatpush1.bf16.msra.mxu0 0
    %1119 = vmatprep.subr.bf16.mxu0 0
    %1120 = vmatpush1.bf16.msra.mxu0 0
    %1121 = vmatprep.subr.bf16.mxu0 0
    %1122 = vmatpush1.bf16.msra.mxu0 0
    %1123 = vmatprep.subr.bf16.mxu0 0
    %1124 = vmatpush1.bf16.msra.mxu0 0
    %1125 = vmatprep.subr.bf16.mxu0 0
    %1126 = vmatpush1.bf16.msra.mxu0 0
    %1127 = vmatprep.subr.bf16.mxu0 0
    %1128 = vmatpush1.bf16.msra.mxu0 0
    %1129 = vmatprep.subr.bf16.mxu0 0
    %1130 = vmatpush1.bf16.msra.mxu0 0
    %1131 = vmatprep.subr.bf16.mxu0 0
    %1132 = vmatpush1.bf16.msra.mxu0 0
    %1133 = vmatprep.subr.bf16.mxu0 0
    %1134 = vmatpush1.bf16.msra.mxu0 0
    %1135 = vmatprep.subr.bf16.mxu0 0
    %1136 = vmatpush1.bf16.msra.mxu0 0
    %1137 = vmatprep.subr.bf16.mxu0 0
    %1138 = vmatpush1.bf16.msra.mxu0 0
    %1139 = vmatprep.subr.bf16.mxu0 0
    %1140 = vmatpush1.bf16.msra.mxu0 0
    %1141 = vmatprep.subr.bf16.mxu0 0
    %1142 = vmatpush1.bf16.msra.mxu0 0
    %1143 = vmatprep.mubr.bf16.mxu0 0
    %1144 = vmatmul.mubr.bf16.gmra.mrb[0].mxu0 %v1109
    %v1145 = vpop.f32.mrb[0].mxu0
    %v1146 = vadd.f32 %v1095, %v1145
    %v1147 = vpop.f32.mrb[0].mxu0
    %v1148 = vpop.f32.mrb[0].mxu0
    %v1149 = vadd.f32 %v1095, %v1148
    %v1150 = vpop.f32.mrb[0].mxu0
    %1151 = vdwg.mxu0
    %v1152 = vadd.f32 %v28, %v1146
    %v1153 = vadd.f32 %v29, %v1149
    %v1154 = vsel %vm60, %v1152, 0.0
    %1155 = vadd.xlane.f32.xlu0 %v1154
    %v1156 = vpop.xlane.xlu0 %1155
    %v1157 = vsel %vm60, %v1153, 0.0
    %1158 = vadd.xlane.f32.xlu0 %v1157
    %v1159 = vpop.xlane.xlu0 %1158
    %v1160 = vrcp.pop 32.0
    %v1161 = vmul.f32 %v1156, %v1160
    %v1162 = vmul.f32 %v1159, %v1160
    %v1163 = vsub.f32 %v1152, %v1161
    %v1164 = vsub.f32 %v1153, %v1162
    %v1165 = vmul.f32 %v1163, %v1163
    %v1166 = vmul.f32 %v1164, %v1164
    %v1167 = vsel %vm60, %v1165, 0.0
    %1168 = vadd.xlane.f32.xlu0 %v1167
    %v1169 = vpop.xlane.xlu0 %1168
    %v1170 = vsel %vm60, %v1166, 0.0
    %1171 = vadd.xlane.f32.xlu0 %v1170
    %v1172 = vpop.xlane.xlu0 %1171
    %v1173 = vmul.f32 %v1169, %v1160
    %v1174 = vmul.f32 %v1172, %v1160
    %v1175 = vadd.f32 %v1173, 1e-05
    %v1176 = vadd.f32 %v1174, 1e-05
    %v1177 = vrsqrt.pop %v1175
    %v1178 = vrsqrt.pop %v1176
    %v1179 = vmul.f32 %v1163, %v1177
    %v1180 = vmul.f32 %v1164, %v1178
    %v1181 = vlaneseq
    %v1182 = vshrl.u32 %v1181, 7
    %v1183 = vsub.s32 1, %v1182
    %v1184 = vrot.slane %v38, %v1183
    %v1185 = vmul.f32 %v1179, %v1184
    %v1186 = vmul.f32 %v1180, %v1184
    %v1187 = vlaneseq
    %v1188 = vshrl.u32 %v1187, 7
    %v1189 = vsub.s32 2, %v1188
    %v1190 = vrot.slane %v38, %v1189
    %v1191 = vadd.f32 %v1185, %v1190
    %v1192 = vadd.f32 %v1186, %v1190
    %v1193 = vpack.c.bf16 %v1192, %v1191
    %v1194 = vld [vmem:[%s4] sm:$0xf]
    %v1195 = vld [vmem:[%s4 + $0x4] sm:$0xf]
    %v1196 = vld [vmem:[%s4 + $0x8] sm:$0xf]
    %v1197 = vld [vmem:[%s4 + $0xc] sm:$0xf]
    %v1198 = vlaneseq
    %v1199 = vshrl.u32 %v1198, 7
    %v1200 = vsub.s32 3, %v1199
    %v1201 = vrot.slane %v38, %v1200
    %v1206 = vunpack.c.l.b16 %v1194
    %v1207 = vunpack.c.l.b16 %v1195
    %v1208 = vunpack.c.l.b16 %v1196
    %v1209 = vunpack.c.l.b16 %v1197
    %v1210 = vpack.c.b16 %v1207, %v1206
    %v1211 = vpack.c.b16 %v1209, %v1208
    %v1215 = vsel %vm60, %v1193, 0
    %1217 = vmatprep.subr.bf16.mxu0 0
    %1218 = vmatpush1.bf16.msra.mxu0 %v1210
    %1219 = vmatprep.subr.bf16.mxu0 0
    %1220 = vmatpush1.bf16.msra.mxu0 %v1211
    %1221 = vmatprep.subr.bf16.mxu0 0
    %1222 = vmatpush1.bf16.msra.mxu0 0
    %1223 = vmatprep.subr.bf16.mxu0 0
    %1224 = vmatpush1.bf16.msra.mxu0 0
    %1225 = vmatprep.subr.bf16.mxu0 0
    %1226 = vmatpush1.bf16.msra.mxu0 0
    %1227 = vmatprep.subr.bf16.mxu0 0
    %1228 = vmatpush1.bf16.msra.mxu0 0
    %1229 = vmatprep.subr.bf16.mxu0 0
    %1230 = vmatpush1.bf16.msra.mxu0 0
    %1231 = vmatprep.subr.bf16.mxu0 0
    %1232 = vmatpush1.bf16.msra.mxu0 0
    %1233 = vmatprep.subr.bf16.mxu0 0
    %1234 = vmatpush1.bf16.msra.mxu0 0
    %1235 = vmatprep.subr.bf16.mxu0 0
    %1236 = vmatpush1.bf16.msra.mxu0 0
    %1237 = vmatprep.subr.bf16.mxu0 0
    %1238 = vmatpush1.bf16.msra.mxu0 0
    %1239 = vmatprep.subr.bf16.mxu0 0
    %1240 = vmatpush1.bf16.msra.mxu0 0
    %1241 = vmatprep.subr.bf16.mxu0 0
    %1242 = vmatpush1.bf16.msra.mxu0 0
    %1243 = vmatprep.subr.bf16.mxu0 0
    %1244 = vmatpush1.bf16.msra.mxu0 0
    %1245 = vmatprep.subr.bf16.mxu0 0
    %1246 = vmatpush1.bf16.msra.mxu0 0
    %1247 = vmatprep.subr.bf16.mxu0 0
    %1248 = vmatpush1.bf16.msra.mxu0 0
    %1249 = vmatprep.mubr.bf16.mxu0 0
    %1250 = vmatmul.mubr.bf16.gmra.mrb[0].mxu0 %v1215
    %v1251 = vpop.f32.mrb[0].mxu0
    %v1252 = vadd.f32 %v1201, %v1251
    %v1253 = vpop.f32.mrb[0].mxu0
    %v1254 = vpop.f32.mrb[0].mxu0
    %v1255 = vadd.f32 %v1201, %v1254
    %v1256 = vpop.f32.mrb[0].mxu0
    %1257 = vdwg.mxu0
    %v1258 = vmax.f32 %v1252, 0.0
    %v1259 = vmax.f32 %v1255, 0.0
    %v1260 = vpack.c.bf16 %v1259, %v1258
    %v1261 = vld [vmem:[%s5] sm:$0xf]
    %v1262 = vld [vmem:[%s5 + $0x4] sm:$0xf]
    %v1263 = vld [vmem:[%s5 + $0x8] sm:$0xf]
    %v1264 = vld [vmem:[%s5 + $0xc] sm:$0xf]
    %v1265 = vld [vmem:[%s5 + $0x10] sm:$0xf]
    %v1266 = vld [vmem:[%s5 + $0x14] sm:$0xf]
    %v1267 = vld [vmem:[%s5 + $0x18] sm:$0xf]
    %v1268 = vld [vmem:[%s5 + $0x1c] sm:$0xf]
    %v1269 = vld [vmem:[%s5 + $0x20] sm:$0xf]
    %v1270 = vld [vmem:[%s5 + $0x24] sm:$0xf]
    %v1271 = vld [vmem:[%s5 + $0x28] sm:$0xf]
    %v1272 = vld [vmem:[%s5 + $0x2c] sm:$0xf]
    %v1273 = vld [vmem:[%s5 + $0x30] sm:$0xf]
    %v1274 = vld [vmem:[%s5 + $0x34] sm:$0xf]
    %v1275 = vld [vmem:[%s5 + $0x38] sm:$0xf]
    %v1276 = vld [vmem:[%s5 + $0x3c] sm:$0xf]
    %v1277 = vlaneseq
    %v1278 = vshrl.u32 %v1277, 7
    %v1279 = vsub.s32 4, %v1278
    %v1280 = vrot.slane %v38, %v1279
    %v1297 = vunpack.c.l.b16 %v1261
    %v1298 = vunpack.c.l.b16 %v1262
    %v1299 = vunpack.c.l.b16 %v1263
    %v1300 = vunpack.c.l.b16 %v1264
    %v1301 = vunpack.c.l.b16 %v1265
    %v1302 = vunpack.c.l.b16 %v1266
    %v1303 = vunpack.c.l.b16 %v1267
    %v1304 = vunpack.c.l.b16 %v1268
    %v1305 = vunpack.c.l.b16 %v1269
    %v1306 = vunpack.c.l.b16 %v1270
    %v1307 = vunpack.c.l.b16 %v1271
    %v1308 = vunpack.c.l.b16 %v1272
    %v1309 = vunpack.c.l.b16 %v1273
    %v1310 = vunpack.c.l.b16 %v1274
    %v1311 = vunpack.c.l.b16 %v1275
    %v1312 = vunpack.c.l.b16 %v1276
    %v1313 = vpack.c.b16 %v1298, %v1297
    %v1314 = vpack.c.b16 %v1300, %v1299
    %v1315 = vpack.c.b16 %v1302, %v1301
    %v1316 = vpack.c.b16 %v1304, %v1303
    %v1317 = vpack.c.b16 %v1306, %v1305
    %v1318 = vpack.c.b16 %v1308, %v1307
    %v1319 = vpack.c.b16 %v1310, %v1309
    %v1320 = vpack.c.b16 %v1312, %v1311
    %1329 = vmatprep.subr.bf16.mxu0 0
    %1330 = vmatpush1.bf16.msra.mxu0 %v1313
    %1331 = vmatprep.subr.bf16.mxu0 0
    %1332 = vmatpush1.bf16.msra.mxu0 %v1314
    %1333 = vmatprep.subr.bf16.mxu0 0
    %1334 = vmatpush1.bf16.msra.mxu0 %v1315
    %1335 = vmatprep.subr.bf16.mxu0 0
    %1336 = vmatpush1.bf16.msra.mxu0 %v1316
    %1337 = vmatprep.subr.bf16.mxu0 0
    %1338 = vmatpush1.bf16.msra.mxu0 %v1317
    %1339 = vmatprep.subr.bf16.mxu0 0
    %1340 = vmatpush1.bf16.msra.mxu0 %v1318
    %1341 = vmatprep.subr.bf16.mxu0 0
    %1342 = vmatpush1.bf16.msra.mxu0 %v1319
    %1343 = vmatprep.subr.bf16.mxu0 0
    %1344 = vmatpush1.bf16.msra.mxu0 %v1320
    %1345 = vmatprep.subr.bf16.mxu0 0
    %1346 = vmatpush1.bf16.msra.mxu0 0
    %1347 = vmatprep.subr.bf16.mxu0 0
    %1348 = vmatpush1.bf16.msra.mxu0 0
    %1349 = vmatprep.subr.bf16.mxu0 0
    %1350 = vmatpush1.bf16.msra.mxu0 0
    %1351 = vmatprep.subr.bf16.mxu0 0
    %1352 = vmatpush1.bf16.msra.mxu0 0
    %1353 = vmatprep.subr.bf16.mxu0 0
    %1354 = vmatpush1.bf16.msra.mxu0 0
    %1355 = vmatprep.subr.bf16.mxu0 0
    %1356 = vmatpush1.bf16.msra.mxu0 0
    %1357 = vmatprep.subr.bf16.mxu0 0
    %1358 = vmatpush1.bf16.msra.mxu0 0
    %1359 = vmatprep.subr.bf16.mxu0 0
    %1360 = vmatpush1.bf16.msra.mxu0 0
    %1361 = vmatprep.mubr.bf16.mxu0 0
    %1362 = vmatmul.mubr.bf16.gmra.mrb[0].mxu0 %v1260
    %v1363 = vpop.f32.mrb[0].mxu0
    %v1364 = vadd.f32 %v1280, %v1363
    %v1365 = vpop.f32.mrb[0].mxu0
    %v1366 = vpop.f32.mrb[0].mxu0
    %v1367 = vadd.f32 %v1280, %v1366
    %v1368 = vpop.f32.mrb[0].mxu0
    %1369 = vdwg.mxu0
    %v1370 = vadd.f32 %v1191, %v1364
    %v1371 = vadd.f32 %v1192, %v1367
    %v1372 = vsel %vm60, %v1370, 0.0
    %1373 = vadd.xlane.f32.xlu0 %v1372
    %v1374 = vpop.xlane.xlu0 %1373
    %v1375 = vsel %vm60, %v1371, 0.0
    %1376 = vadd.xlane.f32.xlu0 %v1375
    %v1377 = vpop.xlane.xlu0 %1376
    %v1378 = vmul.f32 %v1374, %v1160
    %v1379 = vmul.f32 %v1377, %v1160
    %v1380 = vsub.f32 %v1370, %v1378
    %v1381 = vsub.f32 %v1371, %v1379
    %v1382 = vmul.f32 %v1380, %v1380
    %v1383 = vmul.f32 %v1381, %v1381
    %v1384 = vsel %vm60, %v1382, 0.0
    %1385 = vadd.xlane.f32.xlu0 %v1384
    %v1386 = vpop.xlane.xlu0 %1385
    %v1387 = vsel %vm60, %v1383, 0.0
    %1388 = vadd.xlane.f32.xlu0 %v1387
    %v1389 = vpop.xlane.xlu0 %1388
    %v1390 = vmul.f32 %v1386, %v1160
    %v1391 = vmul.f32 %v1389, %v1160
    %v1392 = vadd.f32 %v1390, 1e-05
    %v1393 = vadd.f32 %v1391, 1e-05
    %v1394 = vrsqrt.pop %v1392
    %v1395 = vrsqrt.pop %v1393
    %v1396 = vmul.f32 %v1380, %v1394
    %v1397 = vmul.f32 %v1381, %v1395
    %v1398 = vlaneseq
    %v1399 = vshrl.u32 %v1398, 7
    %v1400 = vsub.s32 5, %v1399
    %v1401 = vrot.slane %v38, %v1400
    %v1402 = vmul.f32 %v1396, %v1401
    %v1403 = vmul.f32 %v1397, %v1401
    %v1404 = vlaneseq
    %v1405 = vshrl.u32 %v1404, 7
    %v1406 = vsub.s32 6, %v1405
    %v1407 = vrot.slane %v38, %v1406
    %v1408 = vadd.f32 %v1402, %v1407
    %v1409 = vadd.f32 %v1403, %v1407
    %s1410 = scalar_lea.vmem %s6, 8
    %v1411 = vld [vmem:[%s1410] sm:$0xff]
    %v1412 = vpack.c.bf16 %v1409, %v1408
    %s1413 = scalar_lea.vmem %s2, 16
    %v1414 = vld [vmem:[%s1413] sm:$0xf]
    %v1415 = vld [vmem:[%s1413 + $0x4] sm:$0xf]
    %v1416 = vld [vmem:[%s1413 + $0x8] sm:$0xf]
    %v1417 = vld [vmem:[%s1413 + $0xc] sm:$0xf]
    %v1418 = vlaneseq
    %v1419 = vshrl.u32 %v1418, 7
    %v1420 = vsub.s32 7, %v1419
    %v1421 = vrot.slane %v1411, %v1420
    %v1426 = vunpack.c.l.b16 %v1414
    %v1427 = vunpack.c.l.b16 %v1415
    %v1428 = vunpack.c.l.b16 %v1416
    %v1429 = vunpack.c.l.b16 %v1417
    %v1430 = vpack.c.b16 %v1427, %v1426
    %v1431 = vpack.c.b16 %v1429, %v1428
    %v1435 = vsel %vm60, %v1412, 0
    %1437 = vmatprep.subr.bf16.mxu0 0
    %1438 = vmatpush1.bf16.msra.mxu0 %v1430
    %1439 = vmatprep.subr.bf16.mxu0 0
    %1440 = vmatpush1.bf16.msra.mxu0 %v1431
    %1441 = vmatprep.subr.bf16.mxu0 0
    %1442 = vmatpush1.bf16.msra.mxu0 0
    %1443 = vmatprep.subr.bf16.mxu0 0
    %1444 = vmatpush1.bf16.msra.mxu0 0
    %1445 = vmatprep.subr.bf16.mxu0 0
    %1446 = vmatpush1.bf16.msra.mxu0 0
    %1447 = vmatprep.subr.bf16.mxu0 0
    %1448 = vmatpush1.bf16.msra.mxu0 0
    %1449 = vmatprep.subr.bf16.mxu0 0
    %1450 = vmatpush1.bf16.msra.mxu0 0
    %1451 = vmatprep.subr.bf16.mxu0 0
    %1452 = vmatpush1.bf16.msra.mxu0 0
    %1453 = vmatprep.subr.bf16.mxu0 0
    %1454 = vmatpush1.bf16.msra.mxu0 0
    %1455 = vmatprep.subr.bf16.mxu0 0
    %1456 = vmatpush1.bf16.msra.mxu0 0
    %1457 = vmatprep.subr.bf16.mxu0 0
    %1458 = vmatpush1.bf16.msra.mxu0 0
    %1459 = vmatprep.subr.bf16.mxu0 0
    %1460 = vmatpush1.bf16.msra.mxu0 0
    %1461 = vmatprep.subr.bf16.mxu0 0
    %1462 = vmatpush1.bf16.msra.mxu0 0
    %1463 = vmatprep.subr.bf16.mxu0 0
    %1464 = vmatpush1.bf16.msra.mxu0 0
    %1465 = vmatprep.subr.bf16.mxu0 0
    %1466 = vmatpush1.bf16.msra.mxu0 0
    %1467 = vmatprep.subr.bf16.mxu0 0
    %1468 = vmatpush1.bf16.msra.mxu0 0
    %1469 = vmatprep.mubr.bf16.mxu0 0
    %1470 = vmatmul.mubr.bf16.gmra.mrb[0].mxu0 %v1435
    %v1471 = vpop.f32.mrb[0].mxu0
    %v1472 = vadd.f32 %v1421, %v1471
    %v1473 = vpop.f32.mrb[0].mxu0
    %v1474 = vpop.f32.mrb[0].mxu0
    %v1475 = vadd.f32 %v1421, %v1474
    %v1476 = vpop.f32.mrb[0].mxu0
    %1477 = vdwg.mxu0
    %1479 = vrot.lane.b32.xlu0 %v1472, 120
    %v1480 = vpop.permute.xlu0 %1479
    %1482 = vrot.lane.b32.xlu0 %v1472, 112
    %v1483 = vpop.permute.xlu0 %1482
    %1485 = vrot.lane.b32.xlu0 %v1472, 104
    %v1486 = vpop.permute.xlu0 %1485
    %1489 = vrot.lane.b32.xlu0 %v1475, 120
    %v1490 = vpop.permute.xlu0 %1489
    %1492 = vrot.lane.b32.xlu0 %v1475, 112
    %v1493 = vpop.permute.xlu0 %1492
    %1495 = vrot.lane.b32.xlu0 %v1475, 104
    %v1496 = vpop.permute.xlu0 %1495
    %v1498 = vpack.c.bf16 %v1472, %v1472
    %v1499 = vpack.c.bf16 %v1480, %v1480
    %v1500 = vpack.c.bf16 %v1483, %v1483
    %v1501 = vpack.c.bf16 %v1486, %v1486
    %v1502 = vpack.c.bf16 %v1475, %v1475
    %v1503 = vpack.c.bf16 %v1490, %v1490
    %v1504 = vpack.c.bf16 %v1493, %v1493
    %v1505 = vpack.c.bf16 %v1496, %v1496
    %1507 = vrot.lane.b32.xlu0 %v1498, 96
    %v1508 = vpop.permute.xlu0 %1507
    %v1510 = vsel %vm184, %v1498, 0
    %v1513 = vsel %vm184, %v1508, 0
    %1515 = vmatprep.subr.bf16.mxu0 0
    %1516 = vmatpush1.bf16.xpose.msra.mxu0 %v1513
    %1517 = vmatprep.subr.bf16.mxu0 0
    %1518 = vmatpush1.bf16.xpose.msra.mxu0 0
    %1519 = vmatprep.subr.bf16.mxu0 0
    %1520 = vmatpush1.bf16.xpose.msra.mxu0 0
    %1521 = vmatprep.subr.bf16.mxu0 0
    %1522 = vmatpush1.bf16.xpose.msra.mxu0 0
    %1523 = vmatprep.subr.bf16.mxu0 0
    %1524 = vmatpush1.bf16.xpose.msra.mxu0 0
    %1525 = vmatprep.subr.bf16.mxu0 0
    %1526 = vmatpush1.bf16.xpose.msra.mxu0 0
    %1527 = vmatprep.subr.bf16.mxu0 0
    %1528 = vmatpush1.bf16.xpose.msra.mxu0 0
    %1529 = vmatprep.subr.bf16.mxu0 0
    %1530 = vmatpush1.bf16.xpose.msra.mxu0 0
    %1531 = vmatprep.subr.bf16.mxu0 0
    %1532 = vmatpush1.bf16.xpose.msra.mxu0 0
    %1533 = vmatprep.subr.bf16.mxu0 0
    %1534 = vmatpush1.bf16.xpose.msra.mxu0 0
    %1535 = vmatprep.subr.bf16.mxu0 0
    %1536 = vmatpush1.bf16.xpose.msra.mxu0 0
    %1537 = vmatprep.subr.bf16.mxu0 0
    %1538 = vmatpush1.bf16.xpose.msra.mxu0 0
    %1539 = vmatprep.subr.bf16.mxu0 0
    %1540 = vmatpush1.bf16.xpose.msra.mxu0 0
    %1541 = vmatprep.subr.bf16.mxu0 0
    %1542 = vmatpush1.bf16.xpose.msra.mxu0 0
    %1543 = vmatprep.subr.bf16.mxu0 0
    %1544 = vmatpush1.bf16.xpose.msra.mxu0 0
    %1545 = vmatprep.subr.bf16.mxu0 0
    %1546 = vmatpush1.bf16.xpose.msra.mxu0 0
    %1547 = vmatprep.mubr.bf16.mxu0 0
    %1548 = vmatmul.mubr.bf16.gmra.mrb[0].mxu0 %v1510
    %v1549 = vpop.f32.mrb[0].mxu0
    %v1550 = vadd.f32 %v144, %v1549
    %v1551 = vpop.f32.mrb[0].mxu0
    %v1552 = vpop.f32.mrb[0].mxu0
    %v1553 = vpop.f32.mrb[0].mxu0
    %1554 = vdwg.mxu0
    %1556 = vrot.lane.b32.xlu0 %v1499, 96
    %v1557 = vpop.permute.xlu0 %1556
    %v1559 = vsel %vm184, %v1499, 0
    %v1562 = vsel %vm184, %v1557, 0
    %1564 = vmatprep.subr.bf16.mxu0 0
    %1565 = vmatpush1.bf16.xpose.msra.mxu0 %v1562
    %1566 = vmatprep.subr.bf16.mxu0 0
    %1567 = vmatpush1.bf16.xpose.msra.mxu0 0
    %1568 = vmatprep.subr.bf16.mxu0 0
    %1569 = vmatpush1.bf16.xpose.msra.mxu0 0
    %1570 = vmatprep.subr.bf16.mxu0 0
    %1571 = vmatpush1.bf16.xpose.msra.mxu0 0
    %1572 = vmatprep.subr.bf16.mxu0 0
    %1573 = vmatpush1.bf16.xpose.msra.mxu0 0
    %1574 = vmatprep.subr.bf16.mxu0 0
    %1575 = vmatpush1.bf16.xpose.msra.mxu0 0
    %1576 = vmatprep.subr.bf16.mxu0 0
    %1577 = vmatpush1.bf16.xpose.msra.mxu0 0
    %1578 = vmatprep.subr.bf16.mxu0 0
    %1579 = vmatpush1.bf16.xpose.msra.mxu0 0
    %1580 = vmatprep.subr.bf16.mxu0 0
    %1581 = vmatpush1.bf16.xpose.msra.mxu0 0
    %1582 = vmatprep.subr.bf16.mxu0 0
    %1583 = vmatpush1.bf16.xpose.msra.mxu0 0
    %1584 = vmatprep.subr.bf16.mxu0 0
    %1585 = vmatpush1.bf16.xpose.msra.mxu0 0
    %1586 = vmatprep.subr.bf16.mxu0 0
    %1587 = vmatpush1.bf16.xpose.msra.mxu0 0
    %1588 = vmatprep.subr.bf16.mxu0 0
    %1589 = vmatpush1.bf16.xpose.msra.mxu0 0
    %1590 = vmatprep.subr.bf16.mxu0 0
    %1591 = vmatpush1.bf16.xpose.msra.mxu0 0
    %1592 = vmatprep.subr.bf16.mxu0 0
    %1593 = vmatpush1.bf16.xpose.msra.mxu0 0
    %1594 = vmatprep.subr.bf16.mxu0 0
    %1595 = vmatpush1.bf16.xpose.msra.mxu0 0
    %1596 = vmatprep.mubr.bf16.mxu0 0
    %1597 = vmatmul.mubr.bf16.gmra.mrb[0].mxu0 %v1559
    %v1598 = vpop.f32.mrb[0].mxu0
    %v1599 = vadd.f32 %v148, %v1598
    %v1600 = vpop.f32.mrb[0].mxu0
    %v1601 = vpop.f32.mrb[0].mxu0
    %v1602 = vpop.f32.mrb[0].mxu0
    %1603 = vdwg.mxu0
    %1605 = vrot.lane.b32.xlu0 %v1500, 96
    %v1606 = vpop.permute.xlu0 %1605
    %v1608 = vsel %vm184, %v1500, 0
    %v1611 = vsel %vm184, %v1606, 0
    %1613 = vmatprep.subr.bf16.mxu0 0
    %1614 = vmatpush1.bf16.xpose.msra.mxu0 %v1611
    %1615 = vmatprep.subr.bf16.mxu0 0
    %1616 = vmatpush1.bf16.xpose.msra.mxu0 0
    %1617 = vmatprep.subr.bf16.mxu0 0
    %1618 = vmatpush1.bf16.xpose.msra.mxu0 0
    %1619 = vmatprep.subr.bf16.mxu0 0
    %1620 = vmatpush1.bf16.xpose.msra.mxu0 0
    %1621 = vmatprep.subr.bf16.mxu0 0
    %1622 = vmatpush1.bf16.xpose.msra.mxu0 0
    %1623 = vmatprep.subr.bf16.mxu0 0
    %1624 = vmatpush1.bf16.xpose.msra.mxu0 0
    %1625 = vmatprep.subr.bf16.mxu0 0
    %1626 = vmatpush1.bf16.xpose.msra.mxu0 0
    %1627 = vmatprep.subr.bf16.mxu0 0
    %1628 = vmatpush1.bf16.xpose.msra.mxu0 0
    %1629 = vmatprep.subr.bf16.mxu0 0
    %1630 = vmatpush1.bf16.xpose.msra.mxu0 0
    %1631 = vmatprep.subr.bf16.mxu0 0
    %1632 = vmatpush1.bf16.xpose.msra.mxu0 0
    %1633 = vmatprep.subr.bf16.mxu0 0
    %1634 = vmatpush1.bf16.xpose.msra.mxu0 0
    %1635 = vmatprep.subr.bf16.mxu0 0
    %1636 = vmatpush1.bf16.xpose.msra.mxu0 0
    %1637 = vmatprep.subr.bf16.mxu0 0
    %1638 = vmatpush1.bf16.xpose.msra.mxu0 0
    %1639 = vmatprep.subr.bf16.mxu0 0
    %1640 = vmatpush1.bf16.xpose.msra.mxu0 0
    %1641 = vmatprep.subr.bf16.mxu0 0
    %1642 = vmatpush1.bf16.xpose.msra.mxu0 0
    %1643 = vmatprep.subr.bf16.mxu0 0
    %1644 = vmatpush1.bf16.xpose.msra.mxu0 0
    %1645 = vmatprep.mubr.bf16.mxu0 0
    %1646 = vmatmul.mubr.bf16.gmra.mrb[0].mxu0 %v1608
    %v1647 = vpop.f32.mrb[0].mxu0
    %v1648 = vadd.f32 %v152, %v1647
    %v1649 = vpop.f32.mrb[0].mxu0
    %v1650 = vpop.f32.mrb[0].mxu0
    %v1651 = vpop.f32.mrb[0].mxu0
    %1652 = vdwg.mxu0
    %1654 = vrot.lane.b32.xlu0 %v1501, 96
    %v1655 = vpop.permute.xlu0 %1654
    %v1657 = vsel %vm184, %v1501, 0
    %v1660 = vsel %vm184, %v1655, 0
    %1662 = vmatprep.subr.bf16.mxu0 0
    %1663 = vmatpush1.bf16.xpose.msra.mxu0 %v1660
    %1664 = vmatprep.subr.bf16.mxu0 0
    %1665 = vmatpush1.bf16.xpose.msra.mxu0 0
    %1666 = vmatprep.subr.bf16.mxu0 0
    %1667 = vmatpush1.bf16.xpose.msra.mxu0 0
    %1668 = vmatprep.subr.bf16.mxu0 0
    %1669 = vmatpush1.bf16.xpose.msra.mxu0 0
    %1670 = vmatprep.subr.bf16.mxu0 0
    %1671 = vmatpush1.bf16.xpose.msra.mxu0 0
    %1672 = vmatprep.subr.bf16.mxu0 0
    %1673 = vmatpush1.bf16.xpose.msra.mxu0 0
    %1674 = vmatprep.subr.bf16.mxu0 0
    %1675 = vmatpush1.bf16.xpose.msra.mxu0 0
    %1676 = vmatprep.subr.bf16.mxu0 0
    %1677 = vmatpush1.bf16.xpose.msra.mxu0 0
    %1678 = vmatprep.subr.bf16.mxu0 0
    %1679 = vmatpush1.bf16.xpose.msra.mxu0 0
    %1680 = vmatprep.subr.bf16.mxu0 0
    %1681 = vmatpush1.bf16.xpose.msra.mxu0 0
    %1682 = vmatprep.subr.bf16.mxu0 0
    %1683 = vmatpush1.bf16.xpose.msra.mxu0 0
    %1684 = vmatprep.subr.bf16.mxu0 0
    %1685 = vmatpush1.bf16.xpose.msra.mxu0 0
    %1686 = vmatprep.subr.bf16.mxu0 0
    %1687 = vmatpush1.bf16.xpose.msra.mxu0 0
    %1688 = vmatprep.subr.bf16.mxu0 0
    %1689 = vmatpush1.bf16.xpose.msra.mxu0 0
    %1690 = vmatprep.subr.bf16.mxu0 0
    %1691 = vmatpush1.bf16.xpose.msra.mxu0 0
    %1692 = vmatprep.subr.bf16.mxu0 0
    %1693 = vmatpush1.bf16.xpose.msra.mxu0 0
    %1694 = vmatprep.mubr.bf16.mxu0 0
    %1695 = vmatmul.mubr.bf16.gmra.mrb[0].mxu0 %v1657
    %v1696 = vpop.f32.mrb[0].mxu0
    %v1697 = vadd.f32 %v156, %v1696
    %v1698 = vpop.f32.mrb[0].mxu0
    %v1699 = vpop.f32.mrb[0].mxu0
    %v1700 = vpop.f32.mrb[0].mxu0
    %1701 = vdwg.mxu0
    %1703 = vrot.lane.b32.xlu0 %v1502, 96
    %v1704 = vpop.permute.xlu0 %1703
    %v1706 = vsel %vm184, %v1502, 0
    %v1709 = vsel %vm184, %v1704, 0
    %1711 = vmatprep.subr.bf16.mxu0 0
    %1712 = vmatpush1.bf16.xpose.msra.mxu0 %v1709
    %1713 = vmatprep.subr.bf16.mxu0 0
    %1714 = vmatpush1.bf16.xpose.msra.mxu0 0
    %1715 = vmatprep.subr.bf16.mxu0 0
    %1716 = vmatpush1.bf16.xpose.msra.mxu0 0
    %1717 = vmatprep.subr.bf16.mxu0 0
    %1718 = vmatpush1.bf16.xpose.msra.mxu0 0
    %1719 = vmatprep.subr.bf16.mxu0 0
    %1720 = vmatpush1.bf16.xpose.msra.mxu0 0
    %1721 = vmatprep.subr.bf16.mxu0 0
    %1722 = vmatpush1.bf16.xpose.msra.mxu0 0
    %1723 = vmatprep.subr.bf16.mxu0 0
    %1724 = vmatpush1.bf16.xpose.msra.mxu0 0
    %1725 = vmatprep.subr.bf16.mxu0 0
    %1726 = vmatpush1.bf16.xpose.msra.mxu0 0
    %1727 = vmatprep.subr.bf16.mxu0 0
    %1728 = vmatpush1.bf16.xpose.msra.mxu0 0
    %1729 = vmatprep.subr.bf16.mxu0 0
    %1730 = vmatpush1.bf16.xpose.msra.mxu0 0
    %1731 = vmatprep.subr.bf16.mxu0 0
    %1732 = vmatpush1.bf16.xpose.msra.mxu0 0
    %1733 = vmatprep.subr.bf16.mxu0 0
    %1734 = vmatpush1.bf16.xpose.msra.mxu0 0
    %1735 = vmatprep.subr.bf16.mxu0 0
    %1736 = vmatpush1.bf16.xpose.msra.mxu0 0
    %1737 = vmatprep.subr.bf16.mxu0 0
    %1738 = vmatpush1.bf16.xpose.msra.mxu0 0
    %1739 = vmatprep.subr.bf16.mxu0 0
    %1740 = vmatpush1.bf16.xpose.msra.mxu0 0
    %1741 = vmatprep.subr.bf16.mxu0 0
    %1742 = vmatpush1.bf16.xpose.msra.mxu0 0
    %1743 = vmatprep.mubr.bf16.mxu0 0
    %1744 = vmatmul.mubr.bf16.gmra.mrb[0].mxu0 %v1706
    %v1745 = vpop.f32.mrb[0].mxu0
    %v1746 = vadd.f32 %v160, %v1745
    %v1747 = vpop.f32.mrb[0].mxu0
    %v1748 = vpop.f32.mrb[0].mxu0
    %v1749 = vpop.f32.mrb[0].mxu0
    %1750 = vdwg.mxu0
    %1752 = vrot.lane.b32.xlu0 %v1503, 96
    %v1753 = vpop.permute.xlu0 %1752
    %v1755 = vsel %vm184, %v1503, 0
    %v1758 = vsel %vm184, %v1753, 0
    %1760 = vmatprep.subr.bf16.mxu0 0
    %1761 = vmatpush1.bf16.xpose.msra.mxu0 %v1758
    %1762 = vmatprep.subr.bf16.mxu0 0
    %1763 = vmatpush1.bf16.xpose.msra.mxu0 0
    %1764 = vmatprep.subr.bf16.mxu0 0
    %1765 = vmatpush1.bf16.xpose.msra.mxu0 0
    %1766 = vmatprep.subr.bf16.mxu0 0
    %1767 = vmatpush1.bf16.xpose.msra.mxu0 0
    %1768 = vmatprep.subr.bf16.mxu0 0
    %1769 = vmatpush1.bf16.xpose.msra.mxu0 0
    %1770 = vmatprep.subr.bf16.mxu0 0
    %1771 = vmatpush1.bf16.xpose.msra.mxu0 0
    %1772 = vmatprep.subr.bf16.mxu0 0
    %1773 = vmatpush1.bf16.xpose.msra.mxu0 0
    %1774 = vmatprep.subr.bf16.mxu0 0
    %1775 = vmatpush1.bf16.xpose.msra.mxu0 0
    %1776 = vmatprep.subr.bf16.mxu0 0
    %1777 = vmatpush1.bf16.xpose.msra.mxu0 0
    %1778 = vmatprep.subr.bf16.mxu0 0
    %1779 = vmatpush1.bf16.xpose.msra.mxu0 0
    %1780 = vmatprep.subr.bf16.mxu0 0
    %1781 = vmatpush1.bf16.xpose.msra.mxu0 0
    %1782 = vmatprep.subr.bf16.mxu0 0
    %1783 = vmatpush1.bf16.xpose.msra.mxu0 0
    %1784 = vmatprep.subr.bf16.mxu0 0
    %1785 = vmatpush1.bf16.xpose.msra.mxu0 0
    %1786 = vmatprep.subr.bf16.mxu0 0
    %1787 = vmatpush1.bf16.xpose.msra.mxu0 0
    %1788 = vmatprep.subr.bf16.mxu0 0
    %1789 = vmatpush1.bf16.xpose.msra.mxu0 0
    %1790 = vmatprep.subr.bf16.mxu0 0
    %1791 = vmatpush1.bf16.xpose.msra.mxu0 0
    %1792 = vmatprep.mubr.bf16.mxu0 0
    %1793 = vmatmul.mubr.bf16.gmra.mrb[0].mxu0 %v1755
    %v1794 = vpop.f32.mrb[0].mxu0
    %v1795 = vadd.f32 %v164, %v1794
    %v1796 = vpop.f32.mrb[0].mxu0
    %v1797 = vpop.f32.mrb[0].mxu0
    %v1798 = vpop.f32.mrb[0].mxu0
    %1799 = vdwg.mxu0
    %1801 = vrot.lane.b32.xlu0 %v1504, 96
    %v1802 = vpop.permute.xlu0 %1801
    %v1804 = vsel %vm184, %v1504, 0
    %v1807 = vsel %vm184, %v1802, 0
    %1809 = vmatprep.subr.bf16.mxu0 0
    %1810 = vmatpush1.bf16.xpose.msra.mxu0 %v1807
    %1811 = vmatprep.subr.bf16.mxu0 0
    %1812 = vmatpush1.bf16.xpose.msra.mxu0 0
    %1813 = vmatprep.subr.bf16.mxu0 0
    %1814 = vmatpush1.bf16.xpose.msra.mxu0 0
    %1815 = vmatprep.subr.bf16.mxu0 0
    %1816 = vmatpush1.bf16.xpose.msra.mxu0 0
    %1817 = vmatprep.subr.bf16.mxu0 0
    %1818 = vmatpush1.bf16.xpose.msra.mxu0 0
    %1819 = vmatprep.subr.bf16.mxu0 0
    %1820 = vmatpush1.bf16.xpose.msra.mxu0 0
    %1821 = vmatprep.subr.bf16.mxu0 0
    %1822 = vmatpush1.bf16.xpose.msra.mxu0 0
    %1823 = vmatprep.subr.bf16.mxu0 0
    %1824 = vmatpush1.bf16.xpose.msra.mxu0 0
    %1825 = vmatprep.subr.bf16.mxu0 0
    %1826 = vmatpush1.bf16.xpose.msra.mxu0 0
    %1827 = vmatprep.subr.bf16.mxu0 0
    %1828 = vmatpush1.bf16.xpose.msra.mxu0 0
    %1829 = vmatprep.subr.bf16.mxu0 0
    %1830 = vmatpush1.bf16.xpose.msra.mxu0 0
    %1831 = vmatprep.subr.bf16.mxu0 0
    %1832 = vmatpush1.bf16.xpose.msra.mxu0 0
    %1833 = vmatprep.subr.bf16.mxu0 0
    %1834 = vmatpush1.bf16.xpose.msra.mxu0 0
    %1835 = vmatprep.subr.bf16.mxu0 0
    %1836 = vmatpush1.bf16.xpose.msra.mxu0 0
    %1837 = vmatprep.subr.bf16.mxu0 0
    %1838 = vmatpush1.bf16.xpose.msra.mxu0 0
    %1839 = vmatprep.subr.bf16.mxu0 0
    %1840 = vmatpush1.bf16.xpose.msra.mxu0 0
    %1841 = vmatprep.mubr.bf16.mxu0 0
    %1842 = vmatmul.mubr.bf16.gmra.mrb[0].mxu0 %v1804
    %v1843 = vpop.f32.mrb[0].mxu0
    %v1844 = vadd.f32 %v168, %v1843
    %v1845 = vpop.f32.mrb[0].mxu0
    %v1846 = vpop.f32.mrb[0].mxu0
    %v1847 = vpop.f32.mrb[0].mxu0
    %1848 = vdwg.mxu0
    %1850 = vrot.lane.b32.xlu0 %v1505, 96
    %v1851 = vpop.permute.xlu0 %1850
    %v1853 = vsel %vm184, %v1505, 0
    %v1856 = vsel %vm184, %v1851, 0
    %1858 = vmatprep.subr.bf16.mxu0 0
    %1859 = vmatpush1.bf16.xpose.msra.mxu0 %v1856
    %1860 = vmatprep.subr.bf16.mxu0 0
    %1861 = vmatpush1.bf16.xpose.msra.mxu0 0
    %1862 = vmatprep.subr.bf16.mxu0 0
    %1863 = vmatpush1.bf16.xpose.msra.mxu0 0
    %1864 = vmatprep.subr.bf16.mxu0 0
    %1865 = vmatpush1.bf16.xpose.msra.mxu0 0
    %1866 = vmatprep.subr.bf16.mxu0 0
    %1867 = vmatpush1.bf16.xpose.msra.mxu0 0
    %1868 = vmatprep.subr.bf16.mxu0 0
    %1869 = vmatpush1.bf16.xpose.msra.mxu0 0
    %1870 = vmatprep.subr.bf16.mxu0 0
    %1871 = vmatpush1.bf16.xpose.msra.mxu0 0
    %1872 = vmatprep.subr.bf16.mxu0 0
    %1873 = vmatpush1.bf16.xpose.msra.mxu0 0
    %1874 = vmatprep.subr.bf16.mxu0 0
    %1875 = vmatpush1.bf16.xpose.msra.mxu0 0
    %1876 = vmatprep.subr.bf16.mxu0 0
    %1877 = vmatpush1.bf16.xpose.msra.mxu0 0
    %1878 = vmatprep.subr.bf16.mxu0 0
    %1879 = vmatpush1.bf16.xpose.msra.mxu0 0
    %1880 = vmatprep.subr.bf16.mxu0 0
    %1881 = vmatpush1.bf16.xpose.msra.mxu0 0
    %1882 = vmatprep.subr.bf16.mxu0 0
    %1883 = vmatpush1.bf16.xpose.msra.mxu0 0
    %1884 = vmatprep.subr.bf16.mxu0 0
    %1885 = vmatpush1.bf16.xpose.msra.mxu0 0
    %1886 = vmatprep.subr.bf16.mxu0 0
    %1887 = vmatpush1.bf16.xpose.msra.mxu0 0
    %1888 = vmatprep.subr.bf16.mxu0 0
    %1889 = vmatpush1.bf16.xpose.msra.mxu0 0
    %1890 = vmatprep.mubr.bf16.mxu0 0
    %1891 = vmatmul.mubr.bf16.gmra.mrb[0].mxu0 %v1853
    %v1892 = vpop.f32.mrb[0].mxu0
    %v1893 = vadd.f32 %v172, %v1892
    %v1894 = vpop.f32.mrb[0].mxu0
    %v1895 = vpop.f32.mrb[0].mxu0
    %v1896 = vpop.f32.mrb[0].mxu0
    %1897 = vdwg.mxu0
    %v1898 = vsel %vm184, %v1550, -inf
    %1899 = vmax.xlane.f32.xlu0 %v1898
    %v1900 = vpop.xlane.xlu0 %1899
    %v1901 = vsel %vm184, %v1599, -inf
    %1902 = vmax.xlane.f32.xlu0 %v1901
    %v1903 = vpop.xlane.xlu0 %1902
    %v1904 = vsel %vm184, %v1648, -inf
    %1905 = vmax.xlane.f32.xlu0 %v1904
    %v1906 = vpop.xlane.xlu0 %1905
    %v1907 = vsel %vm184, %v1697, -inf
    %1908 = vmax.xlane.f32.xlu0 %v1907
    %v1909 = vpop.xlane.xlu0 %1908
    %v1910 = vsel %vm184, %v1746, -inf
    %1911 = vmax.xlane.f32.xlu0 %v1910
    %v1912 = vpop.xlane.xlu0 %1911
    %v1913 = vsel %vm184, %v1795, -inf
    %1914 = vmax.xlane.f32.xlu0 %v1913
    %v1915 = vpop.xlane.xlu0 %1914
    %v1916 = vsel %vm184, %v1844, -inf
    %1917 = vmax.xlane.f32.xlu0 %v1916
    %v1918 = vpop.xlane.xlu0 %1917
    %v1919 = vsel %vm184, %v1893, -inf
    %1920 = vmax.xlane.f32.xlu0 %v1919
    %v1921 = vpop.xlane.xlu0 %1920
    %v1922 = vsub.f32 %v1550, %v1900
    %v1923 = vsub.f32 %v1599, %v1903
    %v1924 = vsub.f32 %v1648, %v1906
    %v1925 = vsub.f32 %v1697, %v1909
    %v1926 = vsub.f32 %v1746, %v1912
    %v1927 = vsub.f32 %v1795, %v1915
    %v1928 = vsub.f32 %v1844, %v1918
    %v1929 = vsub.f32 %v1893, %v1921
    %v1930 = vmul.f32 %v1922, 1.442695
    %v1931 = vpow.pop %v1930
    %v1932 = vmul.f32 %v1923, 1.442695
    %v1933 = vpow.pop %v1932
    %v1934 = vmul.f32 %v1924, 1.442695
    %v1935 = vpow.pop %v1934
    %v1936 = vmul.f32 %v1925, 1.442695
    %v1937 = vpow.pop %v1936
    %v1938 = vmul.f32 %v1926, 1.442695
    %v1939 = vpow.pop %v1938
    %v1940 = vmul.f32 %v1927, 1.442695
    %v1941 = vpow.pop %v1940
    %v1942 = vmul.f32 %v1928, 1.442695
    %v1943 = vpow.pop %v1942
    %v1944 = vmul.f32 %v1929, 1.442695
    %v1945 = vpow.pop %v1944
    %v1946 = vsel %vm184, %v1931, 0.0
    %1947 = vadd.xlane.f32.xlu0 %v1946
    %v1948 = vpop.xlane.xlu0 %1947
    %v1949 = vsel %vm184, %v1933, 0.0
    %1950 = vadd.xlane.f32.xlu0 %v1949
    %v1951 = vpop.xlane.xlu0 %1950
    %v1952 = vsel %vm184, %v1935, 0.0
    %1953 = vadd.xlane.f32.xlu0 %v1952
    %v1954 = vpop.xlane.xlu0 %1953
    %v1955 = vsel %vm184, %v1937, 0.0
    %1956 = vadd.xlane.f32.xlu0 %v1955
    %v1957 = vpop.xlane.xlu0 %1956
    %v1958 = vsel %vm184, %v1939, 0.0
    %1959 = vadd.xlane.f32.xlu0 %v1958
    %v1960 = vpop.xlane.xlu0 %1959
    %v1961 = vsel %vm184, %v1941, 0.0
    %1962 = vadd.xlane.f32.xlu0 %v1961
    %v1963 = vpop.xlane.xlu0 %1962
    %v1964 = vsel %vm184, %v1943, 0.0
    %1965 = vadd.xlane.f32.xlu0 %v1964
    %v1966 = vpop.xlane.xlu0 %1965
    %v1967 = vsel %vm184, %v1945, 0.0
    %1968 = vadd.xlane.f32.xlu0 %v1967
    %v1969 = vpop.xlane.xlu0 %1968
    %v1970 = vrcp.pop %v1948
    %v1971 = vrcp.pop %v1951
    %v1972 = vrcp.pop %v1954
    %v1973 = vrcp.pop %v1957
    %v1974 = vrcp.pop %v1960
    %v1975 = vrcp.pop %v1963
    %v1976 = vrcp.pop %v1966
    %v1977 = vrcp.pop %v1969
    %v1978 = vmul.f32 %v1931, %v1970
    %v1979 = vmul.f32 %v1933, %v1971
    %v1980 = vmul.f32 %v1935, %v1972
    %v1981 = vmul.f32 %v1937, %v1973
    %v1982 = vmul.f32 %v1939, %v1974
    %v1983 = vmul.f32 %v1941, %v1975
    %v1984 = vmul.f32 %v1943, %v1976
    %v1985 = vmul.f32 %v1945, %v1977
    %v1986 = vpack.c.bf16 %v1978, %v1978
    %v1987 = vpack.c.bf16 %v1979, %v1979
    %v1988 = vpack.c.bf16 %v1980, %v1980
    %v1989 = vpack.c.bf16 %v1981, %v1981
    %v1990 = vpack.c.bf16 %v1982, %v1982
    %v1991 = vpack.c.bf16 %v1983, %v1983
    %v1992 = vpack.c.bf16 %v1984, %v1984
    %v1993 = vpack.c.bf16 %v1985, %v1985
    %1994 = vrot.lane.b32.xlu0 %v1498, 64
    %v1995 = vpop.permute.xlu0 %1994
    %v1997 = vsel %vm184, %v1986, 0
    %v2000 = vsel %vm675, %v1995, 0
    %2002 = vmatprep.subr.bf16.mxu0 0
    %2003 = vmatpush1.bf16.msra.mxu0 %v2000
    %2004 = vmatprep.subr.bf16.mxu0 0
    %2005 = vmatpush1.bf16.msra.mxu0 0
    %2006 = vmatprep.subr.bf16.mxu0 0
    %2007 = vmatpush1.bf16.msra.mxu0 0
    %2008 = vmatprep.subr.bf16.mxu0 0
    %2009 = vmatpush1.bf16.msra.mxu0 0
    %2010 = vmatprep.subr.bf16.mxu0 0
    %2011 = vmatpush1.bf16.msra.mxu0 0
    %2012 = vmatprep.subr.bf16.mxu0 0
    %2013 = vmatpush1.bf16.msra.mxu0 0
    %2014 = vmatprep.subr.bf16.mxu0 0
    %2015 = vmatpush1.bf16.msra.mxu0 0
    %2016 = vmatprep.subr.bf16.mxu0 0
    %2017 = vmatpush1.bf16.msra.mxu0 0
    %2018 = vmatprep.subr.bf16.mxu0 0
    %2019 = vmatpush1.bf16.msra.mxu0 0
    %2020 = vmatprep.subr.bf16.mxu0 0
    %2021 = vmatpush1.bf16.msra.mxu0 0
    %2022 = vmatprep.subr.bf16.mxu0 0
    %2023 = vmatpush1.bf16.msra.mxu0 0
    %2024 = vmatprep.subr.bf16.mxu0 0
    %2025 = vmatpush1.bf16.msra.mxu0 0
    %2026 = vmatprep.subr.bf16.mxu0 0
    %2027 = vmatpush1.bf16.msra.mxu0 0
    %2028 = vmatprep.subr.bf16.mxu0 0
    %2029 = vmatpush1.bf16.msra.mxu0 0
    %2030 = vmatprep.subr.bf16.mxu0 0
    %2031 = vmatpush1.bf16.msra.mxu0 0
    %2032 = vmatprep.subr.bf16.mxu0 0
    %2033 = vmatpush1.bf16.msra.mxu0 0
    %2034 = vmatprep.mubr.bf16.mxu0 0
    %2035 = vmatmul.mubr.bf16.gmra.mrb[0].mxu0 %v1997
    %v2036 = vpop.f32.mrb[0].mxu0
    %v2037 = vadd.f32 0.0, %v2036
    %v2038 = vpop.f32.mrb[0].mxu0
    %v2039 = vpop.f32.mrb[0].mxu0
    %v2040 = vpop.f32.mrb[0].mxu0
    %2041 = vdwg.mxu0
    %2042 = vrot.lane.b32.xlu0 %v1499, 64
    %v2043 = vpop.permute.xlu0 %2042
    %v2045 = vsel %vm184, %v1987, 0
    %v2048 = vsel %vm675, %v2043, 0
    %2050 = vmatprep.subr.bf16.mxu0 0
    %2051 = vmatpush1.bf16.msra.mxu0 %v2048
    %2052 = vmatprep.subr.bf16.mxu0 0
    %2053 = vmatpush1.bf16.msra.mxu0 0
    %2054 = vmatprep.subr.bf16.mxu0 0
    %2055 = vmatpush1.bf16.msra.mxu0 0
    %2056 = vmatprep.subr.bf16.mxu0 0
    %2057 = vmatpush1.bf16.msra.mxu0 0
    %2058 = vmatprep.subr.bf16.mxu0 0
    %2059 = vmatpush1.bf16.msra.mxu0 0
    %2060 = vmatprep.subr.bf16.mxu0 0
    %2061 = vmatpush1.bf16.msra.mxu0 0
    %2062 = vmatprep.subr.bf16.mxu0 0
    %2063 = vmatpush1.bf16.msra.mxu0 0
    %2064 = vmatprep.subr.bf16.mxu0 0
    %2065 = vmatpush1.bf16.msra.mxu0 0
    %2066 = vmatprep.subr.bf16.mxu0 0
    %2067 = vmatpush1.bf16.msra.mxu0 0
    %2068 = vmatprep.subr.bf16.mxu0 0
    %2069 = vmatpush1.bf16.msra.mxu0 0
    %2070 = vmatprep.subr.bf16.mxu0 0
    %2071 = vmatpush1.bf16.msra.mxu0 0
    %2072 = vmatprep.subr.bf16.mxu0 0
    %2073 = vmatpush1.bf16.msra.mxu0 0
    %2074 = vmatprep.subr.bf16.mxu0 0
    %2075 = vmatpush1.bf16.msra.mxu0 0
    %2076 = vmatprep.subr.bf16.mxu0 0
    %2077 = vmatpush1.bf16.msra.mxu0 0
    %2078 = vmatprep.subr.bf16.mxu0 0
    %2079 = vmatpush1.bf16.msra.mxu0 0
    %2080 = vmatprep.subr.bf16.mxu0 0
    %2081 = vmatpush1.bf16.msra.mxu0 0
    %2082 = vmatprep.mubr.bf16.mxu0 0
    %2083 = vmatmul.mubr.bf16.gmra.mrb[0].mxu0 %v2045
    %v2084 = vpop.f32.mrb[0].mxu0
    %v2085 = vadd.f32 0.0, %v2084
    %v2086 = vpop.f32.mrb[0].mxu0
    %v2087 = vpop.f32.mrb[0].mxu0
    %v2088 = vpop.f32.mrb[0].mxu0
    %2089 = vdwg.mxu0
    %2090 = vrot.lane.b32.xlu0 %v1500, 64
    %v2091 = vpop.permute.xlu0 %2090
    %v2093 = vsel %vm184, %v1988, 0
    %v2096 = vsel %vm675, %v2091, 0
    %2098 = vmatprep.subr.bf16.mxu0 0
    %2099 = vmatpush1.bf16.msra.mxu0 %v2096
    %2100 = vmatprep.subr.bf16.mxu0 0
    %2101 = vmatpush1.bf16.msra.mxu0 0
    %2102 = vmatprep.subr.bf16.mxu0 0
    %2103 = vmatpush1.bf16.msra.mxu0 0
    %2104 = vmatprep.subr.bf16.mxu0 0
    %2105 = vmatpush1.bf16.msra.mxu0 0
    %2106 = vmatprep.subr.bf16.mxu0 0
    %2107 = vmatpush1.bf16.msra.mxu0 0
    %2108 = vmatprep.subr.bf16.mxu0 0
    %2109 = vmatpush1.bf16.msra.mxu0 0
    %2110 = vmatprep.subr.bf16.mxu0 0
    %2111 = vmatpush1.bf16.msra.mxu0 0
    %2112 = vmatprep.subr.bf16.mxu0 0
    %2113 = vmatpush1.bf16.msra.mxu0 0
    %2114 = vmatprep.subr.bf16.mxu0 0
    %2115 = vmatpush1.bf16.msra.mxu0 0
    %2116 = vmatprep.subr.bf16.mxu0 0
    %2117 = vmatpush1.bf16.msra.mxu0 0
    %2118 = vmatprep.subr.bf16.mxu0 0
    %2119 = vmatpush1.bf16.msra.mxu0 0
    %2120 = vmatprep.subr.bf16.mxu0 0
    %2121 = vmatpush1.bf16.msra.mxu0 0
    %2122 = vmatprep.subr.bf16.mxu0 0
    %2123 = vmatpush1.bf16.msra.mxu0 0
    %2124 = vmatprep.subr.bf16.mxu0 0
    %2125 = vmatpush1.bf16.msra.mxu0 0
    %2126 = vmatprep.subr.bf16.mxu0 0
    %2127 = vmatpush1.bf16.msra.mxu0 0
    %2128 = vmatprep.subr.bf16.mxu0 0
    %2129 = vmatpush1.bf16.msra.mxu0 0
    %2130 = vmatprep.mubr.bf16.mxu0 0
    %2131 = vmatmul.mubr.bf16.gmra.mrb[0].mxu0 %v2093
    %v2132 = vpop.f32.mrb[0].mxu0
    %v2133 = vadd.f32 0.0, %v2132
    %v2134 = vpop.f32.mrb[0].mxu0
    %v2135 = vpop.f32.mrb[0].mxu0
    %v2136 = vpop.f32.mrb[0].mxu0
    %2137 = vdwg.mxu0
    %2138 = vrot.lane.b32.xlu0 %v1501, 64
    %v2139 = vpop.permute.xlu0 %2138
    %v2141 = vsel %vm184, %v1989, 0
    %v2144 = vsel %vm675, %v2139, 0
    %2146 = vmatprep.subr.bf16.mxu0 0
    %2147 = vmatpush1.bf16.msra.mxu0 %v2144
    %2148 = vmatprep.subr.bf16.mxu0 0
    %2149 = vmatpush1.bf16.msra.mxu0 0
    %2150 = vmatprep.subr.bf16.mxu0 0
    %2151 = vmatpush1.bf16.msra.mxu0 0
    %2152 = vmatprep.subr.bf16.mxu0 0
    %2153 = vmatpush1.bf16.msra.mxu0 0
    %2154 = vmatprep.subr.bf16.mxu0 0
    %2155 = vmatpush1.bf16.msra.mxu0 0
    %2156 = vmatprep.subr.bf16.mxu0 0
    %2157 = vmatpush1.bf16.msra.mxu0 0
    %2158 = vmatprep.subr.bf16.mxu0 0
    %2159 = vmatpush1.bf16.msra.mxu0 0
    %2160 = vmatprep.subr.bf16.mxu0 0
    %2161 = vmatpush1.bf16.msra.mxu0 0
    %2162 = vmatprep.subr.bf16.mxu0 0
    %2163 = vmatpush1.bf16.msra.mxu0 0
    %2164 = vmatprep.subr.bf16.mxu0 0
    %2165 = vmatpush1.bf16.msra.mxu0 0
    %2166 = vmatprep.subr.bf16.mxu0 0
    %2167 = vmatpush1.bf16.msra.mxu0 0
    %2168 = vmatprep.subr.bf16.mxu0 0
    %2169 = vmatpush1.bf16.msra.mxu0 0
    %2170 = vmatprep.subr.bf16.mxu0 0
    %2171 = vmatpush1.bf16.msra.mxu0 0
    %2172 = vmatprep.subr.bf16.mxu0 0
    %2173 = vmatpush1.bf16.msra.mxu0 0
    %2174 = vmatprep.subr.bf16.mxu0 0
    %2175 = vmatpush1.bf16.msra.mxu0 0
    %2176 = vmatprep.subr.bf16.mxu0 0
    %2177 = vmatpush1.bf16.msra.mxu0 0
    %2178 = vmatprep.mubr.bf16.mxu0 0
    %2179 = vmatmul.mubr.bf16.gmra.mrb[0].mxu0 %v2141
    %v2180 = vpop.f32.mrb[0].mxu0
    %v2181 = vadd.f32 0.0, %v2180
    %v2182 = vpop.f32.mrb[0].mxu0
    %v2183 = vpop.f32.mrb[0].mxu0
    %v2184 = vpop.f32.mrb[0].mxu0
    %2185 = vdwg.mxu0
    %2186 = vrot.lane.b32.xlu0 %v1502, 64
    %v2187 = vpop.permute.xlu0 %2186
    %v2189 = vsel %vm184, %v1990, 0
    %v2192 = vsel %vm675, %v2187, 0
    %2194 = vmatprep.subr.bf16.mxu0 0
    %2195 = vmatpush1.bf16.msra.mxu0 %v2192
    %2196 = vmatprep.subr.bf16.mxu0 0
    %2197 = vmatpush1.bf16.msra.mxu0 0
    %2198 = vmatprep.subr.bf16.mxu0 0
    %2199 = vmatpush1.bf16.msra.mxu0 0
    %2200 = vmatprep.subr.bf16.mxu0 0
    %2201 = vmatpush1.bf16.msra.mxu0 0
    %2202 = vmatprep.subr.bf16.mxu0 0
    %2203 = vmatpush1.bf16.msra.mxu0 0
    %2204 = vmatprep.subr.bf16.mxu0 0
    %2205 = vmatpush1.bf16.msra.mxu0 0
    %2206 = vmatprep.subr.bf16.mxu0 0
    %2207 = vmatpush1.bf16.msra.mxu0 0
    %2208 = vmatprep.subr.bf16.mxu0 0
    %2209 = vmatpush1.bf16.msra.mxu0 0
    %2210 = vmatprep.subr.bf16.mxu0 0
    %2211 = vmatpush1.bf16.msra.mxu0 0
    %2212 = vmatprep.subr.bf16.mxu0 0
    %2213 = vmatpush1.bf16.msra.mxu0 0
    %2214 = vmatprep.subr.bf16.mxu0 0
    %2215 = vmatpush1.bf16.msra.mxu0 0
    %2216 = vmatprep.subr.bf16.mxu0 0
    %2217 = vmatpush1.bf16.msra.mxu0 0
    %2218 = vmatprep.subr.bf16.mxu0 0
    %2219 = vmatpush1.bf16.msra.mxu0 0
    %2220 = vmatprep.subr.bf16.mxu0 0
    %2221 = vmatpush1.bf16.msra.mxu0 0
    %2222 = vmatprep.subr.bf16.mxu0 0
    %2223 = vmatpush1.bf16.msra.mxu0 0
    %2224 = vmatprep.subr.bf16.mxu0 0
    %2225 = vmatpush1.bf16.msra.mxu0 0
    %2226 = vmatprep.mubr.bf16.mxu0 0
    %2227 = vmatmul.mubr.bf16.gmra.mrb[0].mxu0 %v2189
    %v2228 = vpop.f32.mrb[0].mxu0
    %v2229 = vadd.f32 0.0, %v2228
    %v2230 = vpop.f32.mrb[0].mxu0
    %v2231 = vpop.f32.mrb[0].mxu0
    %v2232 = vpop.f32.mrb[0].mxu0
    %2233 = vdwg.mxu0
    %2234 = vrot.lane.b32.xlu0 %v1503, 64
    %v2235 = vpop.permute.xlu0 %2234
    %v2237 = vsel %vm184, %v1991, 0
    %v2240 = vsel %vm675, %v2235, 0
    %2242 = vmatprep.subr.bf16.mxu0 0
    %2243 = vmatpush1.bf16.msra.mxu0 %v2240
    %2244 = vmatprep.subr.bf16.mxu0 0
    %2245 = vmatpush1.bf16.msra.mxu0 0
    %2246 = vmatprep.subr.bf16.mxu0 0
    %2247 = vmatpush1.bf16.msra.mxu0 0
    %2248 = vmatprep.subr.bf16.mxu0 0
    %2249 = vmatpush1.bf16.msra.mxu0 0
    %2250 = vmatprep.subr.bf16.mxu0 0
    %2251 = vmatpush1.bf16.msra.mxu0 0
    %2252 = vmatprep.subr.bf16.mxu0 0
    %2253 = vmatpush1.bf16.msra.mxu0 0
    %2254 = vmatprep.subr.bf16.mxu0 0
    %2255 = vmatpush1.bf16.msra.mxu0 0
    %2256 = vmatprep.subr.bf16.mxu0 0
    %2257 = vmatpush1.bf16.msra.mxu0 0
    %2258 = vmatprep.subr.bf16.mxu0 0
    %2259 = vmatpush1.bf16.msra.mxu0 0
    %2260 = vmatprep.subr.bf16.mxu0 0
    %2261 = vmatpush1.bf16.msra.mxu0 0
    %2262 = vmatprep.subr.bf16.mxu0 0
    %2263 = vmatpush1.bf16.msra.mxu0 0
    %2264 = vmatprep.subr.bf16.mxu0 0
    %2265 = vmatpush1.bf16.msra.mxu0 0
    %2266 = vmatprep.subr.bf16.mxu0 0
    %2267 = vmatpush1.bf16.msra.mxu0 0
    %2268 = vmatprep.subr.bf16.mxu0 0
    %2269 = vmatpush1.bf16.msra.mxu0 0
    %2270 = vmatprep.subr.bf16.mxu0 0
    %2271 = vmatpush1.bf16.msra.mxu0 0
    %2272 = vmatprep.subr.bf16.mxu0 0
    %2273 = vmatpush1.bf16.msra.mxu0 0
    %2274 = vmatprep.mubr.bf16.mxu0 0
    %2275 = vmatmul.mubr.bf16.gmra.mrb[0].mxu0 %v2237
    %v2276 = vpop.f32.mrb[0].mxu0
    %v2277 = vadd.f32 0.0, %v2276
    %v2278 = vpop.f32.mrb[0].mxu0
    %v2279 = vpop.f32.mrb[0].mxu0
    %v2280 = vpop.f32.mrb[0].mxu0
    %2281 = vdwg.mxu0
    %2282 = vrot.lane.b32.xlu0 %v1504, 64
    %v2283 = vpop.permute.xlu0 %2282
    %v2285 = vsel %vm184, %v1992, 0
    %v2288 = vsel %vm675, %v2283, 0
    %2290 = vmatprep.subr.bf16.mxu0 0
    %2291 = vmatpush1.bf16.msra.mxu0 %v2288
    %2292 = vmatprep.subr.bf16.mxu0 0
    %2293 = vmatpush1.bf16.msra.mxu0 0
    %2294 = vmatprep.subr.bf16.mxu0 0
    %2295 = vmatpush1.bf16.msra.mxu0 0
    %2296 = vmatprep.subr.bf16.mxu0 0
    %2297 = vmatpush1.bf16.msra.mxu0 0
    %2298 = vmatprep.subr.bf16.mxu0 0
    %2299 = vmatpush1.bf16.msra.mxu0 0
    %2300 = vmatprep.subr.bf16.mxu0 0
    %2301 = vmatpush1.bf16.msra.mxu0 0
    %2302 = vmatprep.subr.bf16.mxu0 0
    %2303 = vmatpush1.bf16.msra.mxu0 0
    %2304 = vmatprep.subr.bf16.mxu0 0
    %2305 = vmatpush1.bf16.msra.mxu0 0
    %2306 = vmatprep.subr.bf16.mxu0 0
    %2307 = vmatpush1.bf16.msra.mxu0 0
    %2308 = vmatprep.subr.bf16.mxu0 0
    %2309 = vmatpush1.bf16.msra.mxu0 0
    %2310 = vmatprep.subr.bf16.mxu0 0
    %2311 = vmatpush1.bf16.msra.mxu0 0
    %2312 = vmatprep.subr.bf16.mxu0 0
    %2313 = vmatpush1.bf16.msra.mxu0 0
    %2314 = vmatprep.subr.bf16.mxu0 0
    %2315 = vmatpush1.bf16.msra.mxu0 0
    %2316 = vmatprep.subr.bf16.mxu0 0
    %2317 = vmatpush1.bf16.msra.mxu0 0
    %2318 = vmatprep.subr.bf16.mxu0 0
    %2319 = vmatpush1.bf16.msra.mxu0 0
    %2320 = vmatprep.subr.bf16.mxu0 0
    %2321 = vmatpush1.bf16.msra.mxu0 0
    %2322 = vmatprep.mubr.bf16.mxu0 0
    %2323 = vmatmul.mubr.bf16.gmra.mrb[0].mxu0 %v2285
    %v2324 = vpop.f32.mrb[0].mxu0
    %v2325 = vadd.f32 0.0, %v2324
    %v2326 = vpop.f32.mrb[0].mxu0
    %v2327 = vpop.f32.mrb[0].mxu0
    %v2328 = vpop.f32.mrb[0].mxu0
    %2329 = vdwg.mxu0
    %2330 = vrot.lane.b32.xlu0 %v1505, 64
    %v2331 = vpop.permute.xlu0 %2330
    %v2333 = vsel %vm184, %v1993, 0
    %v2336 = vsel %vm675, %v2331, 0
    %2338 = vmatprep.subr.bf16.mxu0 0
    %2339 = vmatpush1.bf16.msra.mxu0 %v2336
    %2340 = vmatprep.subr.bf16.mxu0 0
    %2341 = vmatpush1.bf16.msra.mxu0 0
    %2342 = vmatprep.subr.bf16.mxu0 0
    %2343 = vmatpush1.bf16.msra.mxu0 0
    %2344 = vmatprep.subr.bf16.mxu0 0
    %2345 = vmatpush1.bf16.msra.mxu0 0
    %2346 = vmatprep.subr.bf16.mxu0 0
    %2347 = vmatpush1.bf16.msra.mxu0 0
    %2348 = vmatprep.subr.bf16.mxu0 0
    %2349 = vmatpush1.bf16.msra.mxu0 0
    %2350 = vmatprep.subr.bf16.mxu0 0
    %2351 = vmatpush1.bf16.msra.mxu0 0
    %2352 = vmatprep.subr.bf16.mxu0 0
    %2353 = vmatpush1.bf16.msra.mxu0 0
    %2354 = vmatprep.subr.bf16.mxu0 0
    %2355 = vmatpush1.bf16.msra.mxu0 0
    %2356 = vmatprep.subr.bf16.mxu0 0
    %2357 = vmatpush1.bf16.msra.mxu0 0
    %2358 = vmatprep.subr.bf16.mxu0 0
    %2359 = vmatpush1.bf16.msra.mxu0 0
    %2360 = vmatprep.subr.bf16.mxu0 0
    %2361 = vmatpush1.bf16.msra.mxu0 0
    %2362 = vmatprep.subr.bf16.mxu0 0
    %2363 = vmatpush1.bf16.msra.mxu0 0
    %2364 = vmatprep.subr.bf16.mxu0 0
    %2365 = vmatpush1.bf16.msra.mxu0 0
    %2366 = vmatprep.subr.bf16.mxu0 0
    %2367 = vmatpush1.bf16.msra.mxu0 0
    %2368 = vmatprep.subr.bf16.mxu0 0
    %2369 = vmatpush1.bf16.msra.mxu0 0
    %2370 = vmatprep.mubr.bf16.mxu0 0
    %2371 = vmatmul.mubr.bf16.gmra.mrb[0].mxu0 %v2333
    %v2372 = vpop.f32.mrb[0].mxu0
    %v2373 = vadd.f32 0.0, %v2372
    %v2374 = vpop.f32.mrb[0].mxu0
    %v2375 = vpop.f32.mrb[0].mxu0
    %v2376 = vpop.f32.mrb[0].mxu0
    %2377 = vdwg.mxu0
    %2379 = vrot.lane.b32.xlu0 %v2085, 8
    %v2380 = vpop.permute.xlu0 %2379
    %2383 = vrot.lane.b32.xlu0 %v2133, 16
    %v2384 = vpop.permute.xlu0 %2383
    %2387 = vrot.lane.b32.xlu0 %v2181, 24
    %v2388 = vpop.permute.xlu0 %2387
    %v2390 = vsel %vm184, %v2037, %v2380
    %v2391 = vsel %vm1068, %v2390, %v2384
    %v2392 = vsel %vm1070, %v2391, %v2388
    %2394 = vrot.lane.b32.xlu0 %v2277, 8
    %v2395 = vpop.permute.xlu0 %2394
    %2398 = vrot.lane.b32.xlu0 %v2325, 16
    %v2399 = vpop.permute.xlu0 %2398
    %2402 = vrot.lane.b32.xlu0 %v2373, 24
    %v2403 = vpop.permute.xlu0 %2402
    %v2405 = vsel %vm184, %v2229, %v2395
    %v2406 = vsel %vm1068, %v2405, %v2399
    %v2407 = vsel %vm1070, %v2406, %v2403
    %v2408 = vpack.c.bf16 %v2407, %v2392
    %s2409 = scalar_lea.vmem %s3, 16
    %v2410 = vld [vmem:[%s2409] sm:$0xf]
    %v2411 = vld [vmem:[%s2409 + $0x4] sm:$0xf]
    %v2412 = vld [vmem:[%s2409 + $0x8] sm:$0xf]
    %v2413 = vld [vmem:[%s2409 + $0xc] sm:$0xf]
    %v2414 = vlaneseq
    %v2415 = vshrl.u32 %v2414, 7
    %v2416 = vsub.s32 0, %v2415
    %v2417 = vrot.slane %v1411, %v2416
    %v2422 = vunpack.c.l.b16 %v2410
    %v2423 = vunpack.c.l.b16 %v2411
    %v2424 = vunpack.c.l.b16 %v2412
    %v2425 = vunpack.c.l.b16 %v2413
    %v2426 = vpack.c.b16 %v2423, %v2422
    %v2427 = vpack.c.b16 %v2425, %v2424
    %v2431 = vsel %vm60, %v2408, 0
    %2433 = vmatprep.subr.bf16.mxu0 0
    %2434 = vmatpush1.bf16.msra.mxu0 %v2426
    %2435 = vmatprep.subr.bf16.mxu0 0
    %2436 = vmatpush1.bf16.msra.mxu0 %v2427
    %2437 = vmatprep.subr.bf16.mxu0 0
    %2438 = vmatpush1.bf16.msra.mxu0 0
    %2439 = vmatprep.subr.bf16.mxu0 0
    %2440 = vmatpush1.bf16.msra.mxu0 0
    %2441 = vmatprep.subr.bf16.mxu0 0
    %2442 = vmatpush1.bf16.msra.mxu0 0
    %2443 = vmatprep.subr.bf16.mxu0 0
    %2444 = vmatpush1.bf16.msra.mxu0 0
    %2445 = vmatprep.subr.bf16.mxu0 0
    %2446 = vmatpush1.bf16.msra.mxu0 0
    %2447 = vmatprep.subr.bf16.mxu0 0
    %2448 = vmatpush1.bf16.msra.mxu0 0
    %2449 = vmatprep.subr.bf16.mxu0 0
    %2450 = vmatpush1.bf16.msra.mxu0 0
    %2451 = vmatprep.subr.bf16.mxu0 0
    %2452 = vmatpush1.bf16.msra.mxu0 0
    %2453 = vmatprep.subr.bf16.mxu0 0
    %2454 = vmatpush1.bf16.msra.mxu0 0
    %2455 = vmatprep.subr.bf16.mxu0 0
    %2456 = vmatpush1.bf16.msra.mxu0 0
    %2457 = vmatprep.subr.bf16.mxu0 0
    %2458 = vmatpush1.bf16.msra.mxu0 0
    %2459 = vmatprep.subr.bf16.mxu0 0
    %2460 = vmatpush1.bf16.msra.mxu0 0
    %2461 = vmatprep.subr.bf16.mxu0 0
    %2462 = vmatpush1.bf16.msra.mxu0 0
    %2463 = vmatprep.subr.bf16.mxu0 0
    %2464 = vmatpush1.bf16.msra.mxu0 0
    %2465 = vmatprep.mubr.bf16.mxu0 0
    %2466 = vmatmul.mubr.bf16.gmra.mrb[0].mxu0 %v2431
    %v2467 = vpop.f32.mrb[0].mxu0
    %v2468 = vadd.f32 %v2417, %v2467
    %v2469 = vpop.f32.mrb[0].mxu0
    %v2470 = vpop.f32.mrb[0].mxu0
    %v2471 = vadd.f32 %v2417, %v2470
    %v2472 = vpop.f32.mrb[0].mxu0
    %2473 = vdwg.mxu0
    %v2474 = vadd.f32 %v1408, %v2468
    %v2475 = vadd.f32 %v1409, %v2471
    %v2476 = vsel %vm60, %v2474, 0.0
    %2477 = vadd.xlane.f32.xlu0 %v2476
    %v2478 = vpop.xlane.xlu0 %2477
    %v2479 = vsel %vm60, %v2475, 0.0
    %2480 = vadd.xlane.f32.xlu0 %v2479
    %v2481 = vpop.xlane.xlu0 %2480
    %v2482 = vmul.f32 %v2478, %v1160
    %v2483 = vmul.f32 %v2481, %v1160
    %v2484 = vsub.f32 %v2474, %v2482
    %v2485 = vsub.f32 %v2475, %v2483
    %v2486 = vmul.f32 %v2484, %v2484
    %v2487 = vmul.f32 %v2485, %v2485
    %v2488 = vsel %vm60, %v2486, 0.0
    %2489 = vadd.xlane.f32.xlu0 %v2488
    %v2490 = vpop.xlane.xlu0 %2489
    %v2491 = vsel %vm60, %v2487, 0.0
    %2492 = vadd.xlane.f32.xlu0 %v2491
    %v2493 = vpop.xlane.xlu0 %2492
    %v2494 = vmul.f32 %v2490, %v1160
    %v2495 = vmul.f32 %v2493, %v1160
    %v2496 = vadd.f32 %v2494, 1e-05
    %v2497 = vadd.f32 %v2495, 1e-05
    %v2498 = vrsqrt.pop %v2496
    %v2499 = vrsqrt.pop %v2497
    %v2500 = vmul.f32 %v2484, %v2498
    %v2501 = vmul.f32 %v2485, %v2499
    %v2502 = vlaneseq
    %v2503 = vshrl.u32 %v2502, 7
    %v2504 = vsub.s32 1, %v2503
    %v2505 = vrot.slane %v1411, %v2504
    %v2506 = vmul.f32 %v2500, %v2505
    %v2507 = vmul.f32 %v2501, %v2505
    %v2508 = vlaneseq
    %v2509 = vshrl.u32 %v2508, 7
    %v2510 = vsub.s32 2, %v2509
    %v2511 = vrot.slane %v1411, %v2510
    %v2512 = vadd.f32 %v2506, %v2511
    %v2513 = vadd.f32 %v2507, %v2511
    %v2514 = vpack.c.bf16 %v2513, %v2512
    %s2515 = scalar_lea.vmem %s4, 16
    %v2516 = vld [vmem:[%s2515] sm:$0xf]
    %v2517 = vld [vmem:[%s2515 + $0x4] sm:$0xf]
    %v2518 = vld [vmem:[%s2515 + $0x8] sm:$0xf]
    %v2519 = vld [vmem:[%s2515 + $0xc] sm:$0xf]
    %v2520 = vlaneseq
    %v2521 = vshrl.u32 %v2520, 7
    %v2522 = vsub.s32 3, %v2521
    %v2523 = vrot.slane %v1411, %v2522
    %v2528 = vunpack.c.l.b16 %v2516
    %v2529 = vunpack.c.l.b16 %v2517
    %v2530 = vunpack.c.l.b16 %v2518
    %v2531 = vunpack.c.l.b16 %v2519
    %v2532 = vpack.c.b16 %v2529, %v2528
    %v2533 = vpack.c.b16 %v2531, %v2530
    %v2537 = vsel %vm60, %v2514, 0
    %2539 = vmatprep.subr.bf16.mxu0 0
    %2540 = vmatpush1.bf16.msra.mxu0 %v2532
    %2541 = vmatprep.subr.bf16.mxu0 0
    %2542 = vmatpush1.bf16.msra.mxu0 %v2533
    %2543 = vmatprep.subr.bf16.mxu0 0
    %2544 = vmatpush1.bf16.msra.mxu0 0
    %2545 = vmatprep.subr.bf16.mxu0 0
    %2546 = vmatpush1.bf16.msra.mxu0 0
    %2547 = vmatprep.subr.bf16.mxu0 0
    %2548 = vmatpush1.bf16.msra.mxu0 0
    %2549 = vmatprep.subr.bf16.mxu0 0
    %2550 = vmatpush1.bf16.msra.mxu0 0
    %2551 = vmatprep.subr.bf16.mxu0 0
    %2552 = vmatpush1.bf16.msra.mxu0 0
    %2553 = vmatprep.subr.bf16.mxu0 0
    %2554 = vmatpush1.bf16.msra.mxu0 0
    %2555 = vmatprep.subr.bf16.mxu0 0
    %2556 = vmatpush1.bf16.msra.mxu0 0
    %2557 = vmatprep.subr.bf16.mxu0 0
    %2558 = vmatpush1.bf16.msra.mxu0 0
    %2559 = vmatprep.subr.bf16.mxu0 0
    %2560 = vmatpush1.bf16.msra.mxu0 0
    %2561 = vmatprep.subr.bf16.mxu0 0
    %2562 = vmatpush1.bf16.msra.mxu0 0
    %2563 = vmatprep.subr.bf16.mxu0 0
    %2564 = vmatpush1.bf16.msra.mxu0 0
    %2565 = vmatprep.subr.bf16.mxu0 0
    %2566 = vmatpush1.bf16.msra.mxu0 0
    %2567 = vmatprep.subr.bf16.mxu0 0
    %2568 = vmatpush1.bf16.msra.mxu0 0
    %2569 = vmatprep.subr.bf16.mxu0 0
    %2570 = vmatpush1.bf16.msra.mxu0 0
    %2571 = vmatprep.mubr.bf16.mxu0 0
    %2572 = vmatmul.mubr.bf16.gmra.mrb[0].mxu0 %v2537
    %v2573 = vpop.f32.mrb[0].mxu0
    %v2574 = vadd.f32 %v2523, %v2573
    %v2575 = vpop.f32.mrb[0].mxu0
    %v2576 = vpop.f32.mrb[0].mxu0
    %v2577 = vadd.f32 %v2523, %v2576
    %v2578 = vpop.f32.mrb[0].mxu0
    %2579 = vdwg.mxu0
    %v2580 = vmax.f32 %v2574, 0.0
    %v2581 = vmax.f32 %v2577, 0.0
    %v2582 = vpack.c.bf16 %v2581, %v2580
    %s2583 = scalar_lea.vmem %s5, 64
    %v2584 = vld [vmem:[%s2583] sm:$0xf]
    %v2585 = vld [vmem:[%s2583 + $0x4] sm:$0xf]
    %v2586 = vld [vmem:[%s2583 + $0x8] sm:$0xf]
    %v2587 = vld [vmem:[%s2583 + $0xc] sm:$0xf]
    %v2588 = vld [vmem:[%s2583 + $0x10] sm:$0xf]
    %v2589 = vld [vmem:[%s2583 + $0x14] sm:$0xf]
    %v2590 = vld [vmem:[%s2583 + $0x18] sm:$0xf]
    %v2591 = vld [vmem:[%s2583 + $0x1c] sm:$0xf]
    %v2592 = vld [vmem:[%s2583 + $0x20] sm:$0xf]
    %v2593 = vld [vmem:[%s2583 + $0x24] sm:$0xf]
    %v2594 = vld [vmem:[%s2583 + $0x28] sm:$0xf]
    %v2595 = vld [vmem:[%s2583 + $0x2c] sm:$0xf]
    %v2596 = vld [vmem:[%s2583 + $0x30] sm:$0xf]
    %v2597 = vld [vmem:[%s2583 + $0x34] sm:$0xf]
    %v2598 = vld [vmem:[%s2583 + $0x38] sm:$0xf]
    %v2599 = vld [vmem:[%s2583 + $0x3c] sm:$0xf]
    %v2600 = vlaneseq
    %v2601 = vshrl.u32 %v2600, 7
    %v2602 = vsub.s32 4, %v2601
    %v2603 = vrot.slane %v1411, %v2602
    %v2620 = vunpack.c.l.b16 %v2584
    %v2621 = vunpack.c.l.b16 %v2585
    %v2622 = vunpack.c.l.b16 %v2586
    %v2623 = vunpack.c.l.b16 %v2587
    %v2624 = vunpack.c.l.b16 %v2588
    %v2625 = vunpack.c.l.b16 %v2589
    %v2626 = vunpack.c.l.b16 %v2590
    %v2627 = vunpack.c.l.b16 %v2591
    %v2628 = vunpack.c.l.b16 %v2592
    %v2629 = vunpack.c.l.b16 %v2593
    %v2630 = vunpack.c.l.b16 %v2594
    %v2631 = vunpack.c.l.b16 %v2595
    %v2632 = vunpack.c.l.b16 %v2596
    %v2633 = vunpack.c.l.b16 %v2597
    %v2634 = vunpack.c.l.b16 %v2598
    %v2635 = vunpack.c.l.b16 %v2599
    %v2636 = vpack.c.b16 %v2621, %v2620
    %v2637 = vpack.c.b16 %v2623, %v2622
    %v2638 = vpack.c.b16 %v2625, %v2624
    %v2639 = vpack.c.b16 %v2627, %v2626
    %v2640 = vpack.c.b16 %v2629, %v2628
    %v2641 = vpack.c.b16 %v2631, %v2630
    %v2642 = vpack.c.b16 %v2633, %v2632
    %v2643 = vpack.c.b16 %v2635, %v2634
    %2652 = vmatprep.subr.bf16.mxu0 0
    %2653 = vmatpush1.bf16.msra.mxu0 %v2636
    %2654 = vmatprep.subr.bf16.mxu0 0
    %2655 = vmatpush1.bf16.msra.mxu0 %v2637
    %2656 = vmatprep.subr.bf16.mxu0 0
    %2657 = vmatpush1.bf16.msra.mxu0 %v2638
    %2658 = vmatprep.subr.bf16.mxu0 0
    %2659 = vmatpush1.bf16.msra.mxu0 %v2639
    %2660 = vmatprep.subr.bf16.mxu0 0
    %2661 = vmatpush1.bf16.msra.mxu0 %v2640
    %2662 = vmatprep.subr.bf16.mxu0 0
    %2663 = vmatpush1.bf16.msra.mxu0 %v2641
    %2664 = vmatprep.subr.bf16.mxu0 0
    %2665 = vmatpush1.bf16.msra.mxu0 %v2642
    %2666 = vmatprep.subr.bf16.mxu0 0
    %2667 = vmatpush1.bf16.msra.mxu0 %v2643
    %2668 = vmatprep.subr.bf16.mxu0 0
    %2669 = vmatpush1.bf16.msra.mxu0 0
    %2670 = vmatprep.subr.bf16.mxu0 0
    %2671 = vmatpush1.bf16.msra.mxu0 0
    %2672 = vmatprep.subr.bf16.mxu0 0
    %2673 = vmatpush1.bf16.msra.mxu0 0
    %2674 = vmatprep.subr.bf16.mxu0 0
    %2675 = vmatpush1.bf16.msra.mxu0 0
    %2676 = vmatprep.subr.bf16.mxu0 0
    %2677 = vmatpush1.bf16.msra.mxu0 0
    %2678 = vmatprep.subr.bf16.mxu0 0
    %2679 = vmatpush1.bf16.msra.mxu0 0
    %2680 = vmatprep.subr.bf16.mxu0 0
    %2681 = vmatpush1.bf16.msra.mxu0 0
    %2682 = vmatprep.subr.bf16.mxu0 0
    %2683 = vmatpush1.bf16.msra.mxu0 0
    %2684 = vmatprep.mubr.bf16.mxu0 0
    %2685 = vmatmul.mubr.bf16.gmra.mrb[0].mxu0 %v2582
    %v2686 = vpop.f32.mrb[0].mxu0
    %v2687 = vadd.f32 %v2603, %v2686
    %v2688 = vpop.f32.mrb[0].mxu0
    %v2689 = vpop.f32.mrb[0].mxu0
    %v2690 = vadd.f32 %v2603, %v2689
    %v2691 = vpop.f32.mrb[0].mxu0
    %2692 = vdwg.mxu0
    %v2693 = vadd.f32 %v2512, %v2687
    %v2694 = vadd.f32 %v2513, %v2690
    %v2695 = vsel %vm60, %v2693, 0.0
    %2696 = vadd.xlane.f32.xlu0 %v2695
    %v2697 = vpop.xlane.xlu0 %2696
    %v2698 = vsel %vm60, %v2694, 0.0
    %2699 = vadd.xlane.f32.xlu0 %v2698
    %v2700 = vpop.xlane.xlu0 %2699
    %v2701 = vmul.f32 %v2697, %v1160
    %v2702 = vmul.f32 %v2700, %v1160
    %v2703 = vsub.f32 %v2693, %v2701
    %v2704 = vsub.f32 %v2694, %v2702
    %v2705 = vmul.f32 %v2703, %v2703
    %v2706 = vmul.f32 %v2704, %v2704
    %v2707 = vsel %vm60, %v2705, 0.0
    %2708 = vadd.xlane.f32.xlu0 %v2707
    %v2709 = vpop.xlane.xlu0 %2708
    %v2710 = vsel %vm60, %v2706, 0.0
    %2711 = vadd.xlane.f32.xlu0 %v2710
    %v2712 = vpop.xlane.xlu0 %2711
    %v2713 = vmul.f32 %v2709, %v1160
    %v2714 = vmul.f32 %v2712, %v1160
    %v2715 = vadd.f32 %v2713, 1e-05
    %v2716 = vadd.f32 %v2714, 1e-05
    %v2717 = vrsqrt.pop %v2715
    %v2718 = vrsqrt.pop %v2716
    %v2719 = vmul.f32 %v2703, %v2717
    %v2720 = vmul.f32 %v2704, %v2718
    %v2721 = vlaneseq
    %v2722 = vshrl.u32 %v2721, 7
    %v2723 = vsub.s32 5, %v2722
    %v2724 = vrot.slane %v1411, %v2723
    %v2725 = vmul.f32 %v2719, %v2724
    %v2726 = vmul.f32 %v2720, %v2724
    %v2727 = vlaneseq
    %v2728 = vshrl.u32 %v2727, 7
    %v2729 = vsub.s32 6, %v2728
    %v2730 = vrot.slane %v1411, %v2729
    %v2731 = vadd.f32 %v2725, %v2730
    %v2732 = vadd.f32 %v2726, %v2730
    %2733 = vst.msk [vmem:[#allocation2] sm:$0xff] %vm60, %v2731
    %2734 = vst.msk [vmem:[#allocation2 + $0x8] sm:$0xff] %vm60, %v2732
    // Predicated region
    $region30: #{tpu_custom_call.1} parent=1 // pred_check
      _
    $region31: #{tpu_custom_call.1} parent=1 // pred_check_branch
      %2736 = sbr.rel (0) target = $region33
    $region32: #{tpu_custom_call.1} parent=1 // pred_region
      %s2738 = ssub.s32 256, 256
      %2739 = vsyncadd [#allocation3], %s2738
      %s2740 = sshll.u32 [#allocation2], 4
      %s2741 = int_to_ptr.vmem [resolvable:$true] %s2740
      %2746 = dma.vmem_to_hbm [thread:$0]  %s2741, 256, %s7, [#allocation3], 128, 128, 8
    $region33: #{tpu_custom_call.1} parent=1 // pred_fallthru
      _
    // Predicated region
    $region34: #{tpu_custom_call.1} parent=1 // pred_check
      _
    $region35: #{tpu_custom_call.1} parent=1 // pred_check_branch
      %2748 = sbr.rel (0) target = $region37
    $region36: #{tpu_custom_call.1} parent=1 // pred_region
      %2749 = dma.done [#allocation3], 256
    $region37: #{tpu_custom_call.1} parent=1 // pred_fallthru
      _
    %2750 = vsyncpa [#allocation3], 1

</llo_original>
